<compile_context>
chip_gen: v6e
topology: v6e:2x2x1
jax: 0.10.0
libtpu: 0.0.40
codegen_flags: <defaults>
</compile_context>

<pallas_src>
import math
import functools

import jax
import jax.numpy as jnp
from jax.experimental import pallas as pl
from jax.experimental.pallas import tpu as pltpu

F32 = jnp.float32
NEG_BIG = -1e30  # finite key-padding bias (avoids -inf -> NaN on fully-masked rows)


# ------------------------------ BlockSpec helpers ---------------------------

def _per_batch_spec(block_shape):
    nd = len(block_shape)
    return pl.BlockSpec(block_shape, lambda b, _nd=nd: (b,) + (0,) * (_nd - 1))


def _resident_spec(arr):
    nd = arr.ndim
    return pl.BlockSpec(arr.shape, lambda b, _nd=nd: (0,) * _nd)


# ------------------------------- fused kernel -------------------------------

def _fused_forward_kernel(
        src_col_ref, case_col_ref, src_row_ref, pe_ref,        # per-batch inputs
        wemb_ref, temb_ref,                                     # embeddings (resident)
        wqkv_ref, bqkv_ref, wo_ref, bo_ref,                     # stacked encoder weights
        w1_ref, b1_ref, w2_ref, b2_ref,
        g1_ref, be1_ref, g2_ref, be2_ref,
        wihs_ref, wihc_ref, whh_ref, bl_ref, wout_ref, bout_ref,  # decode weights
        aw_ref, pred_ref,                                       # outputs
        *, nlayers, nhead, hd, ntags, ninp, ntype, ntoken):
    d = ninp
    S = src_col_ref.shape[1]

    tok_src_c = src_col_ref[0]        # [S, 1] token ids (f32)
    tok_case_c = case_col_ref[0]      # [S, 1]
    tok_src_r = src_row_ref[0]        # [1, S]
    pe = pe_ref[0]                    # [1, d] (PyTorch pe-indexed-by-batch quirk)

    # key-padding mask -> additive bias, computed once, hoisted for all layers/heads
    bias_ss = jnp.broadcast_to(
        jnp.where((tok_src_r == 0.0) | (tok_src_r == 1.0), NEG_BIG, 0.0).astype(F32),
        (S, S))

    # hoisted loop-invariant broadcasts / index grids
    vocab_idx = jax.lax.broadcasted_iota(jnp.int32, (S, ntoken), 1).astype(F32)
    type_idx = jax.lax.broadcasted_iota(jnp.int32, (S, ntype), 1).astype(F32)
    pe_sd = jnp.broadcast_to(pe, (S, d))
    bout_sd = jnp.broadcast_to(bout_ref[...], (S, ntype))

    # embeddings as one-hot @ E matmuls (gather-free; E pre-scaled by sqrt(d))
    onehot_src = (tok_src_c == vocab_idx).astype(F32)                    # [S, ntoken]
    onehot_case = (tok_case_c == type_idx).astype(F32)                   # [S, ntype]
    src = jnp.dot(onehot_src, wemb_ref[...], preferred_element_type=F32) + pe_sd
    case = jnp.dot(onehot_case, temb_ref[...], preferred_element_type=F32) + pe_sd

    def softmax_rows(s):
        s = s - jnp.max(s, axis=-1, keepdims=True)
        p = jnp.exp(s)
        return p / jnp.sum(p, axis=-1, keepdims=True)    # exact (parity w/ reference)

    # ---------------- encoder: full layers 0 .. nlayers-2 ----------------
    x = src                                              # [S, d]
    for l in range(nlayers - 1):
        qkv = jnp.dot(x, wqkv_ref[l], preferred_element_type=F32) + bqkv_ref[l]
        head_outs = []
        for h in range(nhead):
            qh = qkv[:, h * hd:(h + 1) * hd]             # scale folded into Wq
            kh = qkv[:, d + h * hd:d + (h + 1) * hd]
            vh = qkv[:, 2 * d + h * hd:2 * d + (h + 1) * hd]
            s = jax.lax.dot_general(qh, kh, (((1,), (1,)), ((), ())),
                                    preferred_element_type=F32) + bias_ss
            head_outs.append(jnp.dot(softmax_rows(s), vh,
                                     preferred_element_type=F32))
        attn_cat = jnp.concatenate(head_outs, axis=-1)   # [S, d] single tile
        attn = jnp.dot(attn_cat, wo_ref[l], preferred_element_type=F32) + bo_ref[l]

        z = x + attn                                     # residual + LayerNorm 1
        mu = jnp.mean(z, axis=-1, keepdims=True)
        var = jnp.mean((z - mu) ** 2, axis=-1, keepdims=True)
        x1 = (z - mu) * jax.lax.rsqrt(var + 1e-5) * g1_ref[l] + be1_ref[l]

        hmid = jnp.maximum(
            jnp.dot(x1, w1_ref[l], preferred_element_type=F32) + b1_ref[l], 0.0)
        y = jnp.dot(hmid, w2_ref[l], preferred_element_type=F32) + b2_ref[l]
        z2 = x1 + y                                      # residual + LayerNorm 2
        mu2 = jnp.mean(z2, axis=-1, keepdims=True)
        var2 = jnp.mean((z2 - mu2) ** 2, axis=-1, keepdims=True)
        x = (z2 - mu2) * jax.lax.rsqrt(var2 + 1e-5) * g2_ref[l] + be2_ref[l]

    # ---- last layer: only head-averaged attention weights are consumed ----
    lq = nlayers - 1
    qk = (jnp.dot(x, wqkv_ref[lq][:, :2 * d], preferred_element_type=F32)
          + bqkv_ref[lq][:, :2 * d])
    acc = jnp.zeros((S, S), F32)
    for h in range(nhead):
        qh = qk[:, h * hd:(h + 1) * hd]
        kh = qk[:, d + h * hd:d + (h + 1) * hd]
        s = jax.lax.dot_general(qh, kh, (((1,), (1,)), ((), ())),
                                preferred_element_type=F32) + bias_ss
        acc = acc + softmax_rows(s)
    aw = acc * (1.0 / nhead)
    aw_ref[0] = aw                                       # [S, S]

    # ---------------- decode loop (LSTMCell + bmm + argmax) ----------------
    wout = wout_ref[...]                                 # [d, ntype]

    def first_argmax(out):                               # torch.argmax first-occurrence
        mx = jnp.max(out, axis=-1, keepdims=True)
        cand = jnp.where(out >= mx, type_idx, float(ntype))
        return jnp.min(cand, axis=-1, keepdims=True)     # [S, 1] (f32 index)

    hs = jnp.zeros((S, ninp), F32)
    cs = jnp.zeros((S, ninp), F32)
    # src contribution + fused LSTM biases are loop-invariant: compute once.
    gates_src = jnp.dot(src, wihs_ref[...], preferred_element_type=F32) + bl_ref[...]

    out0 = jnp.dot(case, wout, preferred_element_type=F32) + bout_sd
    preds = [first_argmax(out0)]

    for i in range(ntags - 1):
        gates = (gates_src
                 + jnp.dot(case, wihc_ref[...], preferred_element_type=F32)
                 + jnp.dot(hs, whh_ref[...], preferred_element_type=F32))
        ig = jax.nn.sigmoid(gates[:, 0 * ninp:1 * ninp])
        fg = jax.nn.sigmoid(gates[:, 1 * ninp:2 * ninp])
        gg = jnp.tanh(gates[:, 2 * ninp:3 * ninp])
        og = jax.nn.sigmoid(gates[:, 3 * ninp:4 * ninp])
        cs = fg * cs + ig * gg
        hs = og * jnp.tanh(cs)

        # reassociated: (w @ h) @ Wout == w @ (h @ Wout); S^2*ntype < S^2*d MACs
        tmp = jnp.dot(hs, wout, preferred_element_type=F32)          # [S, ntype]
        out = jnp.dot(aw, tmp, preferred_element_type=F32) + bout_sd
        typf = first_argmax(out)
        preds.append(typf)

        if i < ntags - 2:    # last step's next "case" is never consumed -> skip
            onehot = (type_idx == typf).astype(F32)
            case = jnp.dot(onehot, temb_ref[...],
                           preferred_element_type=F32) + pe_sd

    pred_ref[0] = jnp.concatenate(preds, axis=-1).astype(jnp.int32)  # [S, ntags]


# ------------------------------ parameters ----------------------------------

def make_pe(max_len, d_model):
    pos = jnp.arange(max_len, dtype=F32)[:, None]
    div = jnp.exp(jnp.arange(0, d_model, 2, dtype=F32)
                  * (-math.log(10000.0) / d_model))
    pe = jnp.zeros((max_len, d_model), F32)
    pe = pe.at[:, 0::2].set(jnp.sin(pos * div))
    pe = pe.at[:, 1::2].set(jnp.cos(pos * div))
    return pe[:, None, :]                                # [max_len, 1, d_model]


def init_params(key, ntoken, ntype, ninp, nhead, nhid, nlayers):
    keys = iter(jax.random.split(key, 32))

    def nrm(shape, s=0.1):
        return jax.random.normal(next(keys), shape, F32) * s

    layer = dict(
        in_proj_w=nrm((3 * ninp, ninp)), in_proj_b=nrm((3 * ninp,), 0.02),
        out_proj_w=nrm((ninp, ninp)), out_proj_b=nrm((ninp,), 0.02),
        w1=nrm((nhid, ninp)), b1=nrm((nhid,), 0.02),
        w2=nrm((ninp, nhid)), b2=nrm((ninp,), 0.02),
        g1=jnp.ones((ninp,), F32), be1=jnp.zeros((ninp,), F32),
        g2=jnp.ones((ninp,), F32), be2=jnp.zeros((ninp,), F32),
    )
    return dict(
        word_emb=nrm((ntoken, ninp), 1.0),
        type_emb=nrm((ntype, ninp), 1.0),
        # nn.ModuleList of deep-copied layers -> identical initial params
        layers=[layer for _ in range(nlayers)],
        lstm_wih=nrm((4 * ninp, 2 * ninp)),
        lstm_whh=nrm((4 * ninp, ninp)),
        lstm_bih=nrm((4 * ninp,), 0.02),
        lstm_bhh=nrm((4 * ninp,), 0.02),
        out_w=nrm((ntype, ninp)),
        out_b=nrm((ntype,), 0.02),
        pe=make_pe(5000, ninp),
    )


def prepare_params(params, *, ninp, nhead):
    """Kernel-ready layout: pre-transposed [in,out] weights, attention scale
    folded into Q projection, stacked [nlayers, ...] encoder weights, fused
    LSTM bias, sqrt(d)-pre-scaled embedding tables, 2-D biases."""
    hd = ninp // nhead
    scale = 1.0 / math.sqrt(hd)
    cols = {k: [] for k in ('wqkv', 'bqkv', 'wo', 'bo', 'w1', 'b1', 'w2', 'b2',
                            'g1', 'be1', 'g2', 'be2')}
    for lp in params['layers']:
        wq = lp['in_proj_w'][:ninp] * scale
        wk = lp['in_proj_w'][ninp:2 * ninp]
        wv = lp['in_proj_w'][2 * ninp:]
        bq = lp['in_proj_b'][:ninp] * scale
        bk = lp['in_proj_b'][ninp:2 * ninp]
        bv = lp['in_proj_b'][2 * ninp:]
        cols['wqkv'].append(jnp.concatenate([wq, wk, wv], axis=0).T)     # [d, 3d]
        cols['bqkv'].append(jnp.concatenate([bq, bk, bv]).reshape(1, -1))
        cols['wo'].append(lp['out_proj_w'].T)
        cols['bo'].append(lp['out_proj_b'].reshape(1, -1))
        cols['w1'].append(lp['w1'].T)
        cols['b1'].append(lp['b1'].reshape(1, -1))
        cols['w2'].append(lp['w2'].T)
        cols['b2'].append(lp['b2'].reshape(1, -1))
        cols['g1'].append(lp['g1'].reshape(1, -1))
        cols['be1'].append(lp['be1'].reshape(1, -1))
        cols['g2'].append(lp['g2'].reshape(1, -1))
        cols['be2'].append(lp['be2'].reshape(1, -1))
    st = {k + '_st': jnp.stack(v, axis=0) for k, v in cols.items()}
    wih_t = params['lstm_wih'].T                                         # [2d, 4d]
    return dict(
        word_emb_scaled=params['word_emb'] * math.sqrt(ninp),
        type_emb_scaled=params['type_emb'] * math.sqrt(ninp),
        pe=params['pe'],
        wih_src_t=wih_t[:ninp], wih_case_t=wih_t[ninp:],
        whh_t=params['lstm_whh'].T,
        b_lstm=(params['lstm_bih'] + params['lstm_bhh']).reshape(1, -1),
        wout_t=params['out_w'].T, bout=params['out_b'].reshape(1, -1),
        **st,
    )


# --------------------------------- forward ----------------------------------

def forward(prep, src_tok, case_tok, *, ninp, nhead, nlayers, ntags, ntype):
    B, S = src_tok.shape
    hd = ninp // nhead
    ntoken = prep['word_emb_scaled'].shape[0]

    # Tiny f32 token views; the only XLA-side work is casts/reshapes (no
    # gathers, no [B,S,d] HBM materialization) — everything else is in-kernel.
    src_col = src_tok.astype(F32)[:, :, None]            # [B, S, 1]
    case_col = case_tok.astype(F32)[:, :, None]          # [B, S, 1]
    src_row = src_tok.astype(F32)[:, None, :]            # [B, 1, S]
    pe_b = prep['pe'][:B]                                 # [B, 1, d] (PyTorch quirk)

    per_batch = [(src_col, (1, S, 1)), (case_col, (1, S, 1)),
                 (src_row, (1, 1, S)), (pe_b, (1, 1, ninp))]
    resident = [prep[k] for k in (
        'word_emb_scaled', 'type_emb_scaled',
        'wqkv_st', 'bqkv_st', 'wo_st', 'bo_st',
        'w1_st', 'b1_st', 'w2_st', 'b2_st',
        'g1_st', 'be1_st', 'g2_st', 'be2_st',
        'wih_src_t', 'wih_case_t', 'whh_t', 'b_lstm', 'wout_t', 'bout')]

    kernel = functools.partial(
        _fused_forward_kernel, nlayers=nlayers, nhead=nhead, hd=hd,
        ntags=ntags, ninp=ninp, ntype=ntype, ntoken=ntoken)

    aw, pred = pl.pallas_call(
        kernel,
        out_shape=(jax.ShapeDtypeStruct((B, S, S), F32),
                   jax.ShapeDtypeStruct((B, S, ntags), jnp.int32)),
        grid=(B,),
        in_specs=[_per_batch_spec(bs) for _, bs in per_batch]
                 + [_resident_spec(a) for a in resident],
        out_specs=(_per_batch_spec((1, S, S)),
                   _per_batch_spec((1, S, ntags))),
        compiler_params=pltpu.CompilerParams(dimension_semantics=("parallel",)),
    )(*(a for a, _ in per_batch), *resident)
    return pred, aw


# ---------------------------------- driver ----------------------------------

if __name__ == "__main__":
    ntoken, ntype, ninp, nhead, nhid, nlayers, ntags = 50, 10, 32, 4, 64, 2, 3
    bsz, seq = 2, 8

    key = jax.random.PRNGKey(0)
    kp, ks, kc = jax.random.split(key, 3)
    params = init_params(kp, ntoken, ntype, ninp, nhead, nhid, nlayers)
    prep = prepare_params(params, ninp=ninp, nhead=nhead)

    src_tok = jax.random.randint(ks, (bsz, seq), 2, ntoken, dtype=jnp.int32)
    src_tok = src_tok.at[:, -1].set(0)     # exercise key-padding mask
    case_tok = jax.random.randint(kc, (bsz, seq), 0, ntype, dtype=jnp.int32)

    fwd = jax.jit(functools.partial(forward, ninp=ninp, nhead=nhead,
                                    nlayers=nlayers, ntags=ntags, ntype=ntype))
    pred, attn_w = fwd(prep, src_tok, case_tok)
    jax.block_until_ready((pred, attn_w))

    assert pred.shape == (bsz, seq, ntags) and pred.dtype == jnp.int32
    assert attn_w.shape == (bsz, seq, seq)
    assert bool(jnp.all(jnp.isfinite(attn_w)))
    # exact softmax -> attention rows sum to ~1
    assert bool(jnp.all(jnp.abs(jnp.sum(attn_w, axis=-1) - 1.0) < 1e-3))
    assert bool(jnp.all((pred >= 0) & (pred < ntype)))
    print("KERNEL_OK")
</pallas_src>

<mosaic_0001>
module attributes {stable_mosaic.version = 11 : i64} {
  func.func @_fused_forward_kernel(%arg0: i32, %arg1: memref<1x8x1xf32, #tpu.memory_space<vmem>>, %arg2: memref<1x8x1xf32, #tpu.memory_space<vmem>>, %arg3: memref<1x1x8xf32, #tpu.memory_space<vmem>>, %arg4: memref<1x1x32xf32, #tpu.memory_space<vmem>>, %arg5: memref<50x32xf32, #tpu.memory_space<vmem>>, %arg6: memref<10x32xf32, #tpu.memory_space<vmem>>, %arg7: memref<2x32x96xf32, #tpu.memory_space<vmem>>, %arg8: memref<2x1x96xf32, #tpu.memory_space<vmem>>, %arg9: memref<2x32x32xf32, #tpu.memory_space<vmem>>, %arg10: memref<2x1x32xf32, #tpu.memory_space<vmem>>, %arg11: memref<2x32x64xf32, #tpu.memory_space<vmem>>, %arg12: memref<2x1x64xf32, #tpu.memory_space<vmem>>, %arg13: memref<2x64x32xf32, #tpu.memory_space<vmem>>, %arg14: memref<2x1x32xf32, #tpu.memory_space<vmem>>, %arg15: memref<2x1x32xf32, #tpu.memory_space<vmem>>, %arg16: memref<2x1x32xf32, #tpu.memory_space<vmem>>, %arg17: memref<2x1x32xf32, #tpu.memory_space<vmem>>, %arg18: memref<2x1x32xf32, #tpu.memory_space<vmem>>, %arg19: memref<32x128xf32, #tpu.memory_space<vmem>>, %arg20: memref<32x128xf32, #tpu.memory_space<vmem>>, %arg21: memref<32x128xf32, #tpu.memory_space<vmem>>, %arg22: memref<1x128xf32, #tpu.memory_space<vmem>>, %arg23: memref<32x10xf32, #tpu.memory_space<vmem>>, %arg24: memref<1x10xf32, #tpu.memory_space<vmem>>, %arg25: memref<1x8x8xf32, #tpu.memory_space<vmem>>, %arg26: memref<1x8x3xi32, #tpu.memory_space<vmem>>) attributes {dimension_semantics = [#tpu.dimension_semantics<parallel>], iteration_bounds = array<i64: 2>, scalar_prefetch = 0 : i64, scratch_operands = 0 : i64, tpu.core_type = #tpu.core_type<tc>, window_params = [{transform_indices = @transform_0, window_bounds = array<i64: 1, 8, 1>}, {transform_indices = @transform_1, window_bounds = array<i64: 1, 8, 1>}, {transform_indices = @transform_2, window_bounds = array<i64: 1, 1, 8>}, {transform_indices = @transform_3, window_bounds = array<i64: 1, 1, 32>}, {pipeline_mode = #tpu.pipeline_mode<synchronous>, transform_indices = @transform_4, window_bounds = array<i64: 50, 32>}, {pipeline_mode = #tpu.pipeline_mode<synchronous>, transform_indices = @transform_5, window_bounds = array<i64: 10, 32>}, {pipeline_mode = #tpu.pipeline_mode<synchronous>, transform_indices = @transform_6, window_bounds = array<i64: 2, 32, 96>}, {pipeline_mode = #tpu.pipeline_mode<synchronous>, transform_indices = @transform_7, window_bounds = array<i64: 2, 1, 96>}, {pipeline_mode = #tpu.pipeline_mode<synchronous>, transform_indices = @transform_8, window_bounds = array<i64: 2, 32, 32>}, {pipeline_mode = #tpu.pipeline_mode<synchronous>, transform_indices = @transform_9, window_bounds = array<i64: 2, 1, 32>}, {pipeline_mode = #tpu.pipeline_mode<synchronous>, transform_indices = @transform_10, window_bounds = array<i64: 2, 32, 64>}, {pipeline_mode = #tpu.pipeline_mode<synchronous>, transform_indices = @transform_11, window_bounds = array<i64: 2, 1, 64>}, {pipeline_mode = #tpu.pipeline_mode<synchronous>, transform_indices = @transform_12, window_bounds = array<i64: 2, 64, 32>}, {pipeline_mode = #tpu.pipeline_mode<synchronous>, transform_indices = @transform_13, window_bounds = array<i64: 2, 1, 32>}, {pipeline_mode = #tpu.pipeline_mode<synchronous>, transform_indices = @transform_14, window_bounds = array<i64: 2, 1, 32>}, {pipeline_mode = #tpu.pipeline_mode<synchronous>, transform_indices = @transform_15, window_bounds = array<i64: 2, 1, 32>}, {pipeline_mode = #tpu.pipeline_mode<synchronous>, transform_indices = @transform_16, window_bounds = array<i64: 2, 1, 32>}, {pipeline_mode = #tpu.pipeline_mode<synchronous>, transform_indices = @transform_17, window_bounds = array<i64: 2, 1, 32>}, {pipeline_mode = #tpu.pipeline_mode<synchronous>, transform_indices = @transform_18, window_bounds = array<i64: 32, 128>}, {pipeline_mode = #tpu.pipeline_mode<synchronous>, transform_indices = @transform_19, window_bounds = array<i64: 32, 128>}, {pipeline_mode = #tpu.pipeline_mode<synchronous>, transform_indices = @transform_20, window_bounds = array<i64: 32, 128>}, {pipeline_mode = #tpu.pipeline_mode<synchronous>, transform_indices = @transform_21, window_bounds = array<i64: 1, 128>}, {pipeline_mode = #tpu.pipeline_mode<synchronous>, transform_indices = @transform_22, window_bounds = array<i64: 32, 10>}, {pipeline_mode = #tpu.pipeline_mode<synchronous>, transform_indices = @transform_23, window_bounds = array<i64: 1, 10>}, {transform_indices = @transform_24, window_bounds = array<i64: 1, 8, 8>}, {transform_indices = @transform_25, window_bounds = array<i64: 1, 8, 3>}]} {
    %c0 = arith.constant 0 : index
    %c0_0 = arith.constant 0 : index
    %c0_1 = arith.constant 0 : index
    %0 = vector.load %arg1[%c0, %c0_0, %c0_1] : memref<1x8x1xf32, #tpu.memory_space<vmem>>, vector<1x8x1xf32>
    %1 = vector.shape_cast %0 : vector<1x8x1xf32> to vector<8x1xf32>
    %c0_2 = arith.constant 0 : index
    %c0_3 = arith.constant 0 : index
    %c0_4 = arith.constant 0 : index
    %2 = vector.load %arg2[%c0_2, %c0_3, %c0_4] : memref<1x8x1xf32, #tpu.memory_space<vmem>>, vector<1x8x1xf32>
    %3 = vector.shape_cast %2 : vector<1x8x1xf32> to vector<8x1xf32>
    %c0_5 = arith.constant 0 : index
    %c0_6 = arith.constant 0 : index
    %c0_7 = arith.constant 0 : index
    %4 = vector.load %arg3[%c0_5, %c0_6, %c0_7] : memref<1x1x8xf32, #tpu.memory_space<vmem>>, vector<1x1x8xf32>
    %5 = vector.shape_cast %4 : vector<1x1x8xf32> to vector<1x8xf32>
    %c0_8 = arith.constant 0 : index
    %c0_9 = arith.constant 0 : index
    %c0_10 = arith.constant 0 : index
    %6 = vector.load %arg4[%c0_8, %c0_9, %c0_10] : memref<1x1x32xf32, #tpu.memory_space<vmem>>, vector<1x1x32xf32>
    %7 = vector.shape_cast %6 : vector<1x1x32xf32> to vector<1x32xf32>
    %cst = arith.constant 0.000000e+00 : f32
    %8 = vector.broadcast %cst : f32 to vector<1x8xf32>
    %9 = arith.cmpf oeq, %5, %8 : vector<1x8xf32>
    %cst_11 = arith.constant 1.000000e+00 : f32
    %10 = vector.broadcast %cst_11 : f32 to vector<1x8xf32>
    %11 = arith.cmpf oeq, %5, %10 : vector<1x8xf32>
    %12 = arith.ori %9, %11 : vector<1x8xi1>
    %cst_12 = arith.constant -1.000000e+30 : f32
    %cst_13 = arith.constant 0.000000e+00 : f32
    %13 = vector.broadcast %cst_12 : f32 to vector<1x8xf32>
    %14 = vector.broadcast %cst_13 : f32 to vector<1x8xf32>
    %15 = arith.select %12, %13, %14 : vector<1x8xi1>, vector<1x8xf32>
    %16 = vector.shape_cast %15 : vector<1x8xf32> to vector<1x8xf32>
    %17 = vector.broadcast %16 : vector<1x8xf32> to vector<8x8xf32>
    %18 = tpu.iota {dimensions = array<i32: 1>} : vector<8x50xi32>
    %19 = arith.sitofp %18 : vector<8x50xi32> to vector<8x50xf32>
    %20 = tpu.iota {dimensions = array<i32: 1>} : vector<8x10xi32>
    %21 = arith.sitofp %20 : vector<8x10xi32> to vector<8x10xf32>
    %22 = vector.shape_cast %7 : vector<1x32xf32> to vector<1x32xf32>
    %23 = vector.broadcast %22 : vector<1x32xf32> to vector<8x32xf32>
    %c0_14 = arith.constant 0 : index
    %c0_15 = arith.constant 0 : index
    %24 = vector.load %arg24[%c0_14, %c0_15] : memref<1x10xf32, #tpu.memory_space<vmem>>, vector<1x10xf32>
    %25 = vector.shape_cast %24 : vector<1x10xf32> to vector<1x10xf32>
    %26 = vector.broadcast %25 : vector<1x10xf32> to vector<8x10xf32>
    %27 = vector.broadcast %1 : vector<8x1xf32> to vector<8x50xf32>
    %28 = arith.cmpf oeq, %27, %19 : vector<8x50xf32>
    %29 = arith.extui %28 : vector<8x50xi1> to vector<8x50xi32>
    %30 = arith.sitofp %29 : vector<8x50xi32> to vector<8x50xf32>
    %31 = vector.broadcast %3 : vector<8x1xf32> to vector<8x10xf32>
    %32 = arith.cmpf oeq, %31, %21 : vector<8x10xf32>
    %33 = arith.extui %32 : vector<8x10xi1> to vector<8x10xi32>
    %34 = arith.sitofp %33 : vector<8x10xi32> to vector<8x10xf32>
    %c0_16 = arith.constant 0 : index
    %c0_17 = arith.constant 0 : index
    %35 = vector.load %arg5[%c0_16, %c0_17] : memref<50x32xf32, #tpu.memory_space<vmem>>, vector<50x32xf32>
    %cst_18 = arith.constant dense<0.000000e+00> : vector<8x32xf32>
    %36 = tpu.matmul %30, %35, %cst_18 {dimension_numbers = #tpu.dot_dimension_numbers<[1], [0], [0], [1], [0, 0, 1, 1], [], []>} : vector<8x50xf32>, vector<50x32xf32>, vector<8x32xf32> -> vector<8x32xf32>
    %37 = arith.addf %36, %23 : vector<8x32xf32>
    %c0_19 = arith.constant 0 : index
    %c0_20 = arith.constant 0 : index
    %38 = vector.load %arg6[%c0_19, %c0_20] : memref<10x32xf32, #tpu.memory_space<vmem>>, vector<10x32xf32>
    %cst_21 = arith.constant dense<0.000000e+00> : vector<8x32xf32>
    %39 = tpu.matmul %34, %38, %cst_21 {dimension_numbers = #tpu.dot_dimension_numbers<[1], [0], [0], [1], [0, 0, 1, 1], [], []>} : vector<8x10xf32>, vector<10x32xf32>, vector<8x32xf32> -> vector<8x32xf32>
    %40 = arith.addf %39, %23 : vector<8x32xf32>
    %c0_22 = arith.constant 0 : index
    %c0_23 = arith.constant 0 : index
    %c0_24 = arith.constant 0 : index
    %41 = vector.load %arg7[%c0_22, %c0_23, %c0_24] : memref<2x32x96xf32, #tpu.memory_space<vmem>>, vector<1x32x96xf32>
    %42 = vector.shape_cast %41 : vector<1x32x96xf32> to vector<32x96xf32>
    %cst_25 = arith.constant dense<0.000000e+00> : vector<8x96xf32>
    %43 = tpu.matmul %37, %42, %cst_25 {dimension_numbers = #tpu.dot_dimension_numbers<[1], [0], [0], [1], [0, 0, 1, 1], [], []>} : vector<8x32xf32>, vector<32x96xf32>, vector<8x96xf32> -> vector<8x96xf32>
    %c0_26 = arith.constant 0 : index
    %c0_27 = arith.constant 0 : index
    %c0_28 = arith.constant 0 : index
    %44 = vector.load %arg8[%c0_26, %c0_27, %c0_28] : memref<2x1x96xf32, #tpu.memory_space<vmem>>, vector<1x1x96xf32>
    %45 = vector.shape_cast %44 : vector<1x1x96xf32> to vector<1x96xf32>
    %46 = vector.broadcast %45 : vector<1x96xf32> to vector<8x96xf32>
    %47 = arith.addf %43, %46 : vector<8x96xf32>
    %48 = vector.extract_strided_slice %47 {offsets = [0, 0], sizes = [8, 8], strides = [1, 1]} : vector<8x96xf32> to vector<8x8xf32>
    %49 = vector.extract_strided_slice %47 {offsets = [0, 32], sizes = [8, 8], strides = [1, 1]} : vector<8x96xf32> to vector<8x8xf32>
    %50 = vector.extract_strided_slice %47 {offsets = [0, 64], sizes = [8, 8], strides = [1, 1]} : vector<8x96xf32> to vector<8x8xf32>
    %cst_29 = arith.constant dense<0.000000e+00> : vector<8x8xf32>
    %51 = tpu.matmul %48, %49, %cst_29 {dimension_numbers = #tpu.dot_dimension_numbers<[1], [1], [0], [0], [0, 0, 1, 0], [], []>} : vector<8x8xf32>, vector<8x8xf32>, vector<8x8xf32> -> vector<8x8xf32>
    %52 = arith.addf %51, %17 : vector<8x8xf32>
    %cst_30 = arith.constant dense<0xFF800000> : vector<8xf32>
    %53 = vector.multi_reduction <maximumf>, %52, %cst_30 [1] : vector<8x8xf32> to vector<8xf32>
    %54 = vector.shape_cast %53 : vector<8xf32> to vector<8x1xf32>
    %55 = vector.broadcast %54 : vector<8x1xf32> to vector<8x8xf32>
    %56 = arith.subf %52, %55 : vector<8x8xf32>
    %57 = math.exp %56 : vector<8x8xf32>
    %cst_31 = arith.constant dense<0.000000e+00> : vector<8xf32>
    %58 = vector.multi_reduction <add>, %57, %cst_31 [1] : vector<8x8xf32> to vector<8xf32>
    %59 = vector.shape_cast %58 : vector<8xf32> to vector<8x1xf32>
    %60 = vector.broadcast %59 : vector<8x1xf32> to vector<8x8xf32>
    %61 = arith.divf %57, %60 : vector<8x8xf32>
    %cst_32 = arith.constant dense<0.000000e+00> : vector<8x8xf32>
    %62 = tpu.matmul %61, %50, %cst_32 {dimension_numbers = #tpu.dot_dimension_numbers<[1], [0], [0], [1], [0, 0, 1, 1], [], []>} : vector<8x8xf32>, vector<8x8xf32>, vector<8x8xf32> -> vector<8x8xf32>
    %63 = vector.extract_strided_slice %47 {offsets = [0, 8], sizes = [8, 8], strides = [1, 1]} : vector<8x96xf32> to vector<8x8xf32>
    %64 = vector.extract_strided_slice %47 {offsets = [0, 40], sizes = [8, 8], strides = [1, 1]} : vector<8x96xf32> to vector<8x8xf32>
    %65 = vector.extract_strided_slice %47 {offsets = [0, 72], sizes = [8, 8], strides = [1, 1]} : vector<8x96xf32> to vector<8x8xf32>
    %cst_33 = arith.constant dense<0.000000e+00> : vector<8x8xf32>
    %66 = tpu.matmul %63, %64, %cst_33 {dimension_numbers = #tpu.dot_dimension_numbers<[1], [1], [0], [0], [0, 0, 1, 0], [], []>} : vector<8x8xf32>, vector<8x8xf32>, vector<8x8xf32> -> vector<8x8xf32>
    %67 = arith.addf %66, %17 : vector<8x8xf32>
    %cst_34 = arith.constant dense<0xFF800000> : vector<8xf32>
    %68 = vector.multi_reduction <maximumf>, %67, %cst_34 [1] : vector<8x8xf32> to vector<8xf32>
    %69 = vector.shape_cast %68 : vector<8xf32> to vector<8x1xf32>
    %70 = vector.broadcast %69 : vector<8x1xf32> to vector<8x8xf32>
    %71 = arith.subf %67, %70 : vector<8x8xf32>
    %72 = math.exp %71 : vector<8x8xf32>
    %cst_35 = arith.constant dense<0.000000e+00> : vector<8xf32>
    %73 = vector.multi_reduction <add>, %72, %cst_35 [1] : vector<8x8xf32> to vector<8xf32>
    %74 = vector.shape_cast %73 : vector<8xf32> to vector<8x1xf32>
    %75 = vector.broadcast %74 : vector<8x1xf32> to vector<8x8xf32>
    %76 = arith.divf %72, %75 : vector<8x8xf32>
    %cst_36 = arith.constant dense<0.000000e+00> : vector<8x8xf32>
    %77 = tpu.matmul %76, %65, %cst_36 {dimension_numbers = #tpu.dot_dimension_numbers<[1], [0], [0], [1], [0, 0, 1, 1], [], []>} : vector<8x8xf32>, vector<8x8xf32>, vector<8x8xf32> -> vector<8x8xf32>
    %78 = vector.extract_strided_slice %47 {offsets = [0, 16], sizes = [8, 8], strides = [1, 1]} : vector<8x96xf32> to vector<8x8xf32>
    %79 = vector.extract_strided_slice %47 {offsets = [0, 48], sizes = [8, 8], strides = [1, 1]} : vector<8x96xf32> to vector<8x8xf32>
    %80 = vector.extract_strided_slice %47 {offsets = [0, 80], sizes = [8, 8], strides = [1, 1]} : vector<8x96xf32> to vector<8x8xf32>
    %cst_37 = arith.constant dense<0.000000e+00> : vector<8x8xf32>
    %81 = tpu.matmul %78, %79, %cst_37 {dimension_numbers = #tpu.dot_dimension_numbers<[1], [1], [0], [0], [0, 0, 1, 0], [], []>} : vector<8x8xf32>, vector<8x8xf32>, vector<8x8xf32> -> vector<8x8xf32>
    %82 = arith.addf %81, %17 : vector<8x8xf32>
    %cst_38 = arith.constant dense<0xFF800000> : vector<8xf32>
    %83 = vector.multi_reduction <maximumf>, %82, %cst_38 [1] : vector<8x8xf32> to vector<8xf32>
    %84 = vector.shape_cast %83 : vector<8xf32> to vector<8x1xf32>
    %85 = vector.broadcast %84 : vector<8x1xf32> to vector<8x8xf32>
    %86 = arith.subf %82, %85 : vector<8x8xf32>
    %87 = math.exp %86 : vector<8x8xf32>
    %cst_39 = arith.constant dense<0.000000e+00> : vector<8xf32>
    %88 = vector.multi_reduction <add>, %87, %cst_39 [1] : vector<8x8xf32> to vector<8xf32>
    %89 = vector.shape_cast %88 : vector<8xf32> to vector<8x1xf32>
    %90 = vector.broadcast %89 : vector<8x1xf32> to vector<8x8xf32>
    %91 = arith.divf %87, %90 : vector<8x8xf32>
    %cst_40 = arith.constant dense<0.000000e+00> : vector<8x8xf32>
    %92 = tpu.matmul %91, %80, %cst_40 {dimension_numbers = #tpu.dot_dimension_numbers<[1], [0], [0], [1], [0, 0, 1, 1], [], []>} : vector<8x8xf32>, vector<8x8xf32>, vector<8x8xf32> -> vector<8x8xf32>
    %93 = vector.extract_strided_slice %47 {offsets = [0, 24], sizes = [8, 8], strides = [1, 1]} : vector<8x96xf32> to vector<8x8xf32>
    %94 = vector.extract_strided_slice %47 {offsets = [0, 56], sizes = [8, 8], strides = [1, 1]} : vector<8x96xf32> to vector<8x8xf32>
    %95 = vector.extract_strided_slice %47 {offsets = [0, 88], sizes = [8, 8], strides = [1, 1]} : vector<8x96xf32> to vector<8x8xf32>
    %cst_41 = arith.constant dense<0.000000e+00> : vector<8x8xf32>
    %96 = tpu.matmul %93, %94, %cst_41 {dimension_numbers = #tpu.dot_dimension_numbers<[1], [1], [0], [0], [0, 0, 1, 0], [], []>} : vector<8x8xf32>, vector<8x8xf32>, vector<8x8xf32> -> vector<8x8xf32>
    %97 = arith.addf %96, %17 : vector<8x8xf32>
    %cst_42 = arith.constant dense<0xFF800000> : vector<8xf32>
    %98 = vector.multi_reduction <maximumf>, %97, %cst_42 [1] : vector<8x8xf32> to vector<8xf32>
    %99 = vector.shape_cast %98 : vector<8xf32> to vector<8x1xf32>
    %100 = vector.broadcast %99 : vector<8x1xf32> to vector<8x8xf32>
    %101 = arith.subf %97, %100 : vector<8x8xf32>
    %102 = math.exp %101 : vector<8x8xf32>
    %cst_43 = arith.constant dense<0.000000e+00> : vector<8xf32>
    %103 = vector.multi_reduction <add>, %102, %cst_43 [1] : vector<8x8xf32> to vector<8xf32>
    %104 = vector.shape_cast %103 : vector<8xf32> to vector<8x1xf32>
    %105 = vector.broadcast %104 : vector<8x1xf32> to vector<8x8xf32>
    %106 = arith.divf %102, %105 : vector<8x8xf32>
    %cst_44 = arith.constant dense<0.000000e+00> : vector<8x8xf32>
    %107 = tpu.matmul %106, %95, %cst_44 {dimension_numbers = #tpu.dot_dimension_numbers<[1], [0], [0], [1], [0, 0, 1, 1], [], []>} : vector<8x8xf32>, vector<8x8xf32>, vector<8x8xf32> -> vector<8x8xf32>
    %108 = tpu.concatenate %62, %77, %92, %107 in 1 : vector<8x8xf32>, vector<8x8xf32>, vector<8x8xf32>, vector<8x8xf32> -> vector<8x32xf32>
    %c0_45 = arith.constant 0 : index
    %c0_46 = arith.constant 0 : index
    %c0_47 = arith.constant 0 : index
    %109 = vector.load %arg9[%c0_45, %c0_46, %c0_47] : memref<2x32x32xf32, #tpu.memory_space<vmem>>, vector<1x32x32xf32>
    %110 = vector.shape_cast %109 : vector<1x32x32xf32> to vector<32x32xf32>
    %cst_48 = arith.constant dense<0.000000e+00> : vector<8x32xf32>
    %111 = tpu.matmul %108, %110, %cst_48 {dimension_numbers = #tpu.dot_dimension_numbers<[1], [0], [0], [1], [0, 0, 1, 1], [], []>} : vector<8x32xf32>, vector<32x32xf32>, vector<8x32xf32> -> vector<8x32xf32>
    %c0_49 = arith.constant 0 : index
    %c0_50 = arith.constant 0 : index
    %c0_51 = arith.constant 0 : index
    %112 = vector.load %arg10[%c0_49, %c0_50, %c0_51] : memref<2x1x32xf32, #tpu.memory_space<vmem>>, vector<1x1x32xf32>
    %113 = vector.shape_cast %112 : vector<1x1x32xf32> to vector<1x32xf32>
    %114 = vector.broadcast %113 : vector<1x32xf32> to vector<8x32xf32>
    %115 = arith.addf %111, %114 : vector<8x32xf32>
    %116 = arith.addf %37, %115 : vector<8x32xf32>
    %cst_52 = arith.constant dense<0.000000e+00> : vector<8xf32>
    %117 = vector.multi_reduction <add>, %116, %cst_52 [1] : vector<8x32xf32> to vector<8xf32>
    %118 = vector.shape_cast %117 : vector<8xf32> to vector<8x1xf32>
    %cst_53 = arith.constant 3.200000e+01 : f32
    %119 = vector.broadcast %cst_53 : f32 to vector<8x1xf32>
    %120 = arith.divf %118, %119 : vector<8x1xf32>
    %121 = vector.broadcast %120 : vector<8x1xf32> to vector<8x32xf32>
    %122 = arith.subf %116, %121 : vector<8x32xf32>
    %123 = arith.mulf %122, %122 : vector<8x32xf32>
    %cst_54 = arith.constant dense<0.000000e+00> : vector<8xf32>
    %124 = vector.multi_reduction <add>, %123, %cst_54 [1] : vector<8x32xf32> to vector<8xf32>
    %125 = vector.shape_cast %124 : vector<8xf32> to vector<8x1xf32>
    %cst_55 = arith.constant 3.200000e+01 : f32
    %126 = vector.broadcast %cst_55 : f32 to vector<8x1xf32>
    %127 = arith.divf %125, %126 : vector<8x1xf32>
    %128 = vector.broadcast %120 : vector<8x1xf32> to vector<8x32xf32>
    %129 = arith.subf %116, %128 : vector<8x32xf32>
    %cst_56 = arith.constant 9.99999974E-6 : f32
    %130 = vector.broadcast %cst_56 : f32 to vector<8x1xf32>
    %131 = arith.addf %127, %130 : vector<8x1xf32>
    %132 = math.rsqrt %131 : vector<8x1xf32>
    %133 = vector.broadcast %132 : vector<8x1xf32> to vector<8x32xf32>
    %134 = arith.mulf %129, %133 : vector<8x32xf32>
    %c0_57 = arith.constant 0 : index
    %c0_58 = arith.constant 0 : index
    %c0_59 = arith.constant 0 : index
    %135 = vector.load %arg15[%c0_57, %c0_58, %c0_59] : memref<2x1x32xf32, #tpu.memory_space<vmem>>, vector<1x1x32xf32>
    %136 = vector.shape_cast %135 : vector<1x1x32xf32> to vector<1x32xf32>
    %137 = vector.broadcast %136 : vector<1x32xf32> to vector<8x32xf32>
    %138 = arith.mulf %134, %137 : vector<8x32xf32>
    %c0_60 = arith.constant 0 : index
    %c0_61 = arith.constant 0 : index
    %c0_62 = arith.constant 0 : index
    %139 = vector.load %arg16[%c0_60, %c0_61, %c0_62] : memref<2x1x32xf32, #tpu.memory_space<vmem>>, vector<1x1x32xf32>
    %140 = vector.shape_cast %139 : vector<1x1x32xf32> to vector<1x32xf32>
    %141 = vector.broadcast %140 : vector<1x32xf32> to vector<8x32xf32>
    %142 = arith.addf %138, %141 : vector<8x32xf32>
    %c0_63 = arith.constant 0 : index
    %c0_64 = arith.constant 0 : index
    %c0_65 = arith.constant 0 : index
    %143 = vector.load %arg11[%c0_63, %c0_64, %c0_65] : memref<2x32x64xf32, #tpu.memory_space<vmem>>, vector<1x32x64xf32>
    %144 = vector.shape_cast %143 : vector<1x32x64xf32> to vector<32x64xf32>
    %cst_66 = arith.constant dense<0.000000e+00> : vector<8x64xf32>
    %145 = tpu.matmul %142, %144, %cst_66 {dimension_numbers = #tpu.dot_dimension_numbers<[1], [0], [0], [1], [0, 0, 1, 1], [], []>} : vector<8x32xf32>, vector<32x64xf32>, vector<8x64xf32> -> vector<8x64xf32>
    %c0_67 = arith.constant 0 : index
    %c0_68 = arith.constant 0 : index
    %c0_69 = arith.constant 0 : index
    %146 = vector.load %arg12[%c0_67, %c0_68, %c0_69] : memref<2x1x64xf32, #tpu.memory_space<vmem>>, vector<1x1x64xf32>
    %147 = vector.shape_cast %146 : vector<1x1x64xf32> to vector<1x64xf32>
    %148 = vector.broadcast %147 : vector<1x64xf32> to vector<8x64xf32>
    %149 = arith.addf %145, %148 : vector<8x64xf32>
    %cst_70 = arith.constant 0.000000e+00 : f32
    %150 = vector.broadcast %cst_70 : f32 to vector<8x64xf32>
    %151 = arith.maximumf %149, %150 : vector<8x64xf32>
    %c0_71 = arith.constant 0 : index
    %c0_72 = arith.constant 0 : index
    %c0_73 = arith.constant 0 : index
    %152 = vector.load %arg13[%c0_71, %c0_72, %c0_73] : memref<2x64x32xf32, #tpu.memory_space<vmem>>, vector<1x64x32xf32>
    %153 = vector.shape_cast %152 : vector<1x64x32xf32> to vector<64x32xf32>
    %cst_74 = arith.constant dense<0.000000e+00> : vector<8x32xf32>
    %154 = tpu.matmul %151, %153, %cst_74 {dimension_numbers = #tpu.dot_dimension_numbers<[1], [0], [0], [1], [0, 0, 1, 1], [], []>} : vector<8x64xf32>, vector<64x32xf32>, vector<8x32xf32> -> vector<8x32xf32>
    %c0_75 = arith.constant 0 : index
    %c0_76 = arith.constant 0 : index
    %c0_77 = arith.constant 0 : index
    %155 = vector.load %arg14[%c0_75, %c0_76, %c0_77] : memref<2x1x32xf32, #tpu.memory_space<vmem>>, vector<1x1x32xf32>
    %156 = vector.shape_cast %155 : vector<1x1x32xf32> to vector<1x32xf32>
    %157 = vector.broadcast %156 : vector<1x32xf32> to vector<8x32xf32>
    %158 = arith.addf %154, %157 : vector<8x32xf32>
    %159 = arith.addf %142, %158 : vector<8x32xf32>
    %cst_78 = arith.constant dense<0.000000e+00> : vector<8xf32>
    %160 = vector.multi_reduction <add>, %159, %cst_78 [1] : vector<8x32xf32> to vector<8xf32>
    %161 = vector.shape_cast %160 : vector<8xf32> to vector<8x1xf32>
    %cst_79 = arith.constant 3.200000e+01 : f32
    %162 = vector.broadcast %cst_79 : f32 to vector<8x1xf32>
    %163 = arith.divf %161, %162 : vector<8x1xf32>
    %164 = vector.broadcast %163 : vector<8x1xf32> to vector<8x32xf32>
    %165 = arith.subf %159, %164 : vector<8x32xf32>
    %166 = arith.mulf %165, %165 : vector<8x32xf32>
    %cst_80 = arith.constant dense<0.000000e+00> : vector<8xf32>
    %167 = vector.multi_reduction <add>, %166, %cst_80 [1] : vector<8x32xf32> to vector<8xf32>
    %168 = vector.shape_cast %167 : vector<8xf32> to vector<8x1xf32>
    %cst_81 = arith.constant 3.200000e+01 : f32
    %169 = vector.broadcast %cst_81 : f32 to vector<8x1xf32>
    %170 = arith.divf %168, %169 : vector<8x1xf32>
    %171 = vector.broadcast %163 : vector<8x1xf32> to vector<8x32xf32>
    %172 = arith.subf %159, %171 : vector<8x32xf32>
    %cst_82 = arith.constant 9.99999974E-6 : f32
    %173 = vector.broadcast %cst_82 : f32 to vector<8x1xf32>
    %174 = arith.addf %170, %173 : vector<8x1xf32>
    %175 = math.rsqrt %174 : vector<8x1xf32>
    %176 = vector.broadcast %175 : vector<8x1xf32> to vector<8x32xf32>
    %177 = arith.mulf %172, %176 : vector<8x32xf32>
    %c0_83 = arith.constant 0 : index
    %c0_84 = arith.constant 0 : index
    %c0_85 = arith.constant 0 : index
    %178 = vector.load %arg17[%c0_83, %c0_84, %c0_85] : memref<2x1x32xf32, #tpu.memory_space<vmem>>, vector<1x1x32xf32>
    %179 = vector.shape_cast %178 : vector<1x1x32xf32> to vector<1x32xf32>
    %180 = vector.broadcast %179 : vector<1x32xf32> to vector<8x32xf32>
    %181 = arith.mulf %177, %180 : vector<8x32xf32>
    %c0_86 = arith.constant 0 : index
    %c0_87 = arith.constant 0 : index
    %c0_88 = arith.constant 0 : index
    %182 = vector.load %arg18[%c0_86, %c0_87, %c0_88] : memref<2x1x32xf32, #tpu.memory_space<vmem>>, vector<1x1x32xf32>
    %183 = vector.shape_cast %182 : vector<1x1x32xf32> to vector<1x32xf32>
    %184 = vector.broadcast %183 : vector<1x32xf32> to vector<8x32xf32>
    %185 = arith.addf %181, %184 : vector<8x32xf32>
    %c1 = arith.constant 1 : index
    %c0_89 = arith.constant 0 : index
    %c0_90 = arith.constant 0 : index
    %186 = vector.load %arg7[%c1, %c0_89, %c0_90] : memref<2x32x96xf32, #tpu.memory_space<vmem>>, vector<1x32x96xf32>
    %187 = vector.shape_cast %186 : vector<1x32x96xf32> to vector<32x96xf32>
    %188 = vector.extract_strided_slice %187 {offsets = [0, 0], sizes = [32, 64], strides = [1, 1]} : vector<32x96xf32> to vector<32x64xf32>
    %cst_91 = arith.constant dense<0.000000e+00> : vector<8x64xf32>
    %189 = tpu.matmul %185, %188, %cst_91 {dimension_numbers = #tpu.dot_dimension_numbers<[1], [0], [0], [1], [0, 0, 1, 1], [], []>} : vector<8x32xf32>, vector<32x64xf32>, vector<8x64xf32> -> vector<8x64xf32>
    %c1_92 = arith.constant 1 : index
    %c0_93 = arith.constant 0 : index
    %c0_94 = arith.constant 0 : index
    %190 = vector.load %arg8[%c1_92, %c0_93, %c0_94] : memref<2x1x96xf32, #tpu.memory_space<vmem>>, vector<1x1x96xf32>
    %191 = vector.shape_cast %190 : vector<1x1x96xf32> to vector<1x96xf32>
    %192 = vector.extract_strided_slice %191 {offsets = [0, 0], sizes = [1, 64], strides = [1, 1]} : vector<1x96xf32> to vector<1x64xf32>
    %193 = vector.broadcast %192 : vector<1x64xf32> to vector<8x64xf32>
    %194 = arith.addf %189, %193 : vector<8x64xf32>
    %cst_95 = arith.constant 0.000000e+00 : f32
    %195 = vector.broadcast %cst_95 : f32 to vector<8x8xf32>
    %196 = vector.extract_strided_slice %194 {offsets = [0, 0], sizes = [8, 8], strides = [1, 1]} : vector<8x64xf32> to vector<8x8xf32>
    %197 = vector.extract_strided_slice %194 {offsets = [0, 32], sizes = [8, 8], strides = [1, 1]} : vector<8x64xf32> to vector<8x8xf32>
    %cst_96 = arith.constant dense<0.000000e+00> : vector<8x8xf32>
    %198 = tpu.matmul %196, %197, %cst_96 {dimension_numbers = #tpu.dot_dimension_numbers<[1], [1], [0], [0], [0, 0, 1, 0], [], []>} : vector<8x8xf32>, vector<8x8xf32>, vector<8x8xf32> -> vector<8x8xf32>
    %199 = arith.addf %198, %17 : vector<8x8xf32>
    %cst_97 = arith.constant dense<0xFF800000> : vector<8xf32>
    %200 = vector.multi_reduction <maximumf>, %199, %cst_97 [1] : vector<8x8xf32> to vector<8xf32>
    %201 = vector.shape_cast %200 : vector<8xf32> to vector<8x1xf32>
    %202 = vector.broadcast %201 : vector<8x1xf32> to vector<8x8xf32>
    %203 = arith.subf %199, %202 : vector<8x8xf32>
    %204 = math.exp %203 : vector<8x8xf32>
    %cst_98 = arith.constant dense<0.000000e+00> : vector<8xf32>
    %205 = vector.multi_reduction <add>, %204, %cst_98 [1] : vector<8x8xf32> to vector<8xf32>
    %206 = vector.shape_cast %205 : vector<8xf32> to vector<8x1xf32>
    %207 = vector.broadcast %206 : vector<8x1xf32> to vector<8x8xf32>
    %208 = arith.divf %204, %207 : vector<8x8xf32>
    %209 = arith.addf %195, %208 : vector<8x8xf32>
    %210 = vector.extract_strided_slice %194 {offsets = [0, 8], sizes = [8, 8], strides = [1, 1]} : vector<8x64xf32> to vector<8x8xf32>
    %211 = vector.extract_strided_slice %194 {offsets = [0, 40], sizes = [8, 8], strides = [1, 1]} : vector<8x64xf32> to vector<8x8xf32>
    %cst_99 = arith.constant dense<0.000000e+00> : vector<8x8xf32>
    %212 = tpu.matmul %210, %211, %cst_99 {dimension_numbers = #tpu.dot_dimension_numbers<[1], [1], [0], [0], [0, 0, 1, 0], [], []>} : vector<8x8xf32>, vector<8x8xf32>, vector<8x8xf32> -> vector<8x8xf32>
    %213 = arith.addf %212, %17 : vector<8x8xf32>
    %cst_100 = arith.constant dense<0xFF800000> : vector<8xf32>
    %214 = vector.multi_reduction <maximumf>, %213, %cst_100 [1] : vector<8x8xf32> to vector<8xf32>
    %215 = vector.shape_cast %214 : vector<8xf32> to vector<8x1xf32>
    %216 = vector.broadcast %215 : vector<8x1xf32> to vector<8x8xf32>
    %217 = arith.subf %213, %216 : vector<8x8xf32>
    %218 = math.exp %217 : vector<8x8xf32>
    %cst_101 = arith.constant dense<0.000000e+00> : vector<8xf32>
    %219 = vector.multi_reduction <add>, %218, %cst_101 [1] : vector<8x8xf32> to vector<8xf32>
    %220 = vector.shape_cast %219 : vector<8xf32> to vector<8x1xf32>
    %221 = vector.broadcast %220 : vector<8x1xf32> to vector<8x8xf32>
    %222 = arith.divf %218, %221 : vector<8x8xf32>
    %223 = arith.addf %209, %222 : vector<8x8xf32>
    %224 = vector.extract_strided_slice %194 {offsets = [0, 16], sizes = [8, 8], strides = [1, 1]} : vector<8x64xf32> to vector<8x8xf32>
    %225 = vector.extract_strided_slice %194 {offsets = [0, 48], sizes = [8, 8], strides = [1, 1]} : vector<8x64xf32> to vector<8x8xf32>
    %cst_102 = arith.constant dense<0.000000e+00> : vector<8x8xf32>
    %226 = tpu.matmul %224, %225, %cst_102 {dimension_numbers = #tpu.dot_dimension_numbers<[1], [1], [0], [0], [0, 0, 1, 0], [], []>} : vector<8x8xf32>, vector<8x8xf32>, vector<8x8xf32> -> vector<8x8xf32>
    %227 = arith.addf %226, %17 : vector<8x8xf32>
    %cst_103 = arith.constant dense<0xFF800000> : vector<8xf32>
    %228 = vector.multi_reduction <maximumf>, %227, %cst_103 [1] : vector<8x8xf32> to vector<8xf32>
    %229 = vector.shape_cast %228 : vector<8xf32> to vector<8x1xf32>
    %230 = vector.broadcast %229 : vector<8x1xf32> to vector<8x8xf32>
    %231 = arith.subf %227, %230 : vector<8x8xf32>
    %232 = math.exp %231 : vector<8x8xf32>
    %cst_104 = arith.constant dense<0.000000e+00> : vector<8xf32>
    %233 = vector.multi_reduction <add>, %232, %cst_104 [1] : vector<8x8xf32> to vector<8xf32>
    %234 = vector.shape_cast %233 : vector<8xf32> to vector<8x1xf32>
    %235 = vector.broadcast %234 : vector<8x1xf32> to vector<8x8xf32>
    %236 = arith.divf %232, %235 : vector<8x8xf32>
    %237 = arith.addf %223, %236 : vector<8x8xf32>
    %238 = vector.extract_strided_slice %194 {offsets = [0, 24], sizes = [8, 8], strides = [1, 1]} : vector<8x64xf32> to vector<8x8xf32>
    %239 = vector.extract_strided_slice %194 {offsets = [0, 56], sizes = [8, 8], strides = [1, 1]} : vector<8x64xf32> to vector<8x8xf32>
    %cst_105 = arith.constant dense<0.000000e+00> : vector<8x8xf32>
    %240 = tpu.matmul %238, %239, %cst_105 {dimension_numbers = #tpu.dot_dimension_numbers<[1], [1], [0], [0], [0, 0, 1, 0], [], []>} : vector<8x8xf32>, vector<8x8xf32>, vector<8x8xf32> -> vector<8x8xf32>
    %241 = arith.addf %240, %17 : vector<8x8xf32>
    %cst_106 = arith.constant dense<0xFF800000> : vector<8xf32>
    %242 = vector.multi_reduction <maximumf>, %241, %cst_106 [1] : vector<8x8xf32> to vector<8xf32>
    %243 = vector.shape_cast %242 : vector<8xf32> to vector<8x1xf32>
    %244 = vector.broadcast %243 : vector<8x1xf32> to vector<8x8xf32>
    %245 = arith.subf %241, %244 : vector<8x8xf32>
    %246 = math.exp %245 : vector<8x8xf32>
    %cst_107 = arith.constant dense<0.000000e+00> : vector<8xf32>
    %247 = vector.multi_reduction <add>, %246, %cst_107 [1] : vector<8x8xf32> to vector<8xf32>
    %248 = vector.shape_cast %247 : vector<8xf32> to vector<8x1xf32>
    %249 = vector.broadcast %248 : vector<8x1xf32> to vector<8x8xf32>
    %250 = arith.divf %246, %249 : vector<8x8xf32>
    %251 = arith.addf %237, %250 : vector<8x8xf32>
    %cst_108 = arith.constant 2.500000e-01 : f32
    %252 = vector.broadcast %cst_108 : f32 to vector<8x8xf32>
    %253 = arith.mulf %251, %252 : vector<8x8xf32>
    %c0_109 = arith.constant 0 : index
    %c0_110 = arith.constant 0 : index
    %c0_111 = arith.constant 0 : index
    %254 = vector.load %arg25[%c0_109, %c0_110, %c0_111] : memref<1x8x8xf32, #tpu.memory_space<vmem>>, vector<1x8x8xf32>
    %255 = vector.shape_cast %254 : vector<1x8x8xf32> to vector<8x8xf32>
    %256 = vector.shape_cast %253 : vector<8x8xf32> to vector<1x8x8xf32>
    tpu.vector_store %arg25[%c0_109, %c0_110, %c0_111], %256 {strides = array<i32>} : memref<1x8x8xf32, #tpu.memory_space<vmem>>, vector<1x8x8xf32>,
    %c0_112 = arith.constant 0 : index
    %c0_113 = arith.constant 0 : index
    %257 = vector.load %arg23[%c0_112, %c0_113] : memref<32x10xf32, #tpu.memory_space<vmem>>, vector<32x10xf32>
    %cst_114 = arith.constant 0.000000e+00 : f32
    %258 = vector.broadcast %cst_114 : f32 to vector<8x32xf32>
    %cst_115 = arith.constant 0.000000e+00 : f32
    %259 = vector.broadcast %cst_115 : f32 to vector<8x32xf32>
    %c0_116 = arith.constant 0 : index
    %c0_117 = arith.constant 0 : index
    %260 = vector.load %arg19[%c0_116, %c0_117] : memref<32x128xf32, #tpu.memory_space<vmem>>, vector<32x128xf32>
    %cst_118 = arith.constant dense<0.000000e+00> : vector<8x128xf32>
    %261 = tpu.matmul %37, %260, %cst_118 {dimension_numbers = #tpu.dot_dimension_numbers<[1], [0], [0], [1], [0, 0, 1, 1], [], []>} : vector<8x32xf32>, vector<32x128xf32>, vector<8x128xf32> -> vector<8x128xf32>
    %c0_119 = arith.constant 0 : index
    %c0_120 = arith.constant 0 : index
    %262 = vector.load %arg22[%c0_119, %c0_120] : memref<1x128xf32, #tpu.memory_space<vmem>>, vector<1x128xf32>
    %263 = vector.broadcast %262 : vector<1x128xf32> to vector<8x128xf32>
    %264 = arith.addf %261, %263 : vector<8x128xf32>
    %cst_121 = arith.constant dense<0.000000e+00> : vector<8x10xf32>
    %265 = tpu.matmul %40, %257, %cst_121 {dimension_numbers = #tpu.dot_dimension_numbers<[1], [0], [0], [1], [0, 0, 1, 1], [], []>} : vector<8x32xf32>, vector<32x10xf32>, vector<8x10xf32> -> vector<8x10xf32>
    %266 = arith.addf %265, %26 : vector<8x10xf32>
    %cst_122 = arith.constant dense<0xFF800000> : vector<8xf32>
    %267 = vector.multi_reduction <maximumf>, %266, %cst_122 [1] : vector<8x10xf32> to vector<8xf32>
    %268 = vector.shape_cast %267 : vector<8xf32> to vector<8x1xf32>
    %269 = vector.broadcast %268 : vector<8x1xf32> to vector<8x10xf32>
    %270 = arith.cmpf oge, %266, %269 : vector<8x10xf32>
    %cst_123 = arith.constant 1.000000e+01 : f32
    %271 = vector.broadcast %cst_123 : f32 to vector<8x10xf32>
    %272 = arith.select %270, %21, %271 : vector<8x10xi1>, vector<8x10xf32>
    %cst_124 = arith.constant dense<0x7F800000> : vector<8xf32>
    %273 = vector.multi_reduction <minimumf>, %272, %cst_124 [1] : vector<8x10xf32> to vector<8xf32>
    %274 = vector.shape_cast %273 : vector<8xf32> to vector<8x1xf32>
    %c0_125 = arith.constant 0 : index
    %c0_126 = arith.constant 0 : index
    %275 = vector.load %arg20[%c0_125, %c0_126] : memref<32x128xf32, #tpu.memory_space<vmem>>, vector<32x128xf32>
    %cst_127 = arith.constant dense<0.000000e+00> : vector<8x128xf32>
    %276 = tpu.matmul %40, %275, %cst_127 {dimension_numbers = #tpu.dot_dimension_numbers<[1], [0], [0], [1], [0, 0, 1, 1], [], []>} : vector<8x32xf32>, vector<32x128xf32>, vector<8x128xf32> -> vector<8x128xf32>
    %277 = arith.addf %264, %276 : vector<8x128xf32>
    %c0_128 = arith.constant 0 : index
    %c0_129 = arith.constant 0 : index
    %278 = vector.load %arg21[%c0_128, %c0_129] : memref<32x128xf32, #tpu.memory_space<vmem>>, vector<32x128xf32>
    %cst_130 = arith.constant dense<0.000000e+00> : vector<8x128xf32>
    %279 = tpu.matmul %258, %278, %cst_130 {dimension_numbers = #tpu.dot_dimension_numbers<[1], [0], [0], [1], [0, 0, 1, 1], [], []>} : vector<8x32xf32>, vector<32x128xf32>, vector<8x128xf32> -> vector<8x128xf32>
    %280 = arith.addf %277, %279 : vector<8x128xf32>
    %281 = vector.extract_strided_slice %280 {offsets = [0, 0], sizes = [8, 32], strides = [1, 1]} : vector<8x128xf32> to vector<8x32xf32>
    %282 = arith.negf %281 : vector<8x32xf32>
    %283 = math.exp %282 : vector<8x32xf32>
    %cst_131 = arith.constant 1.000000e+00 : f32
    %284 = vector.broadcast %cst_131 : f32 to vector<8x32xf32>
    %285 = arith.addf %284, %283 : vector<8x32xf32>
    %286 = arith.divf %284, %285 : vector<8x32xf32>
    %287 = vector.extract_strided_slice %280 {offsets = [0, 32], sizes = [8, 32], strides = [1, 1]} : vector<8x128xf32> to vector<8x32xf32>
    %288 = arith.negf %287 : vector<8x32xf32>
    %289 = math.exp %288 : vector<8x32xf32>
    %cst_132 = arith.constant 1.000000e+00 : f32
    %290 = vector.broadcast %cst_132 : f32 to vector<8x32xf32>
    %291 = arith.addf %290, %289 : vector<8x32xf32>
    %292 = arith.divf %290, %291 : vector<8x32xf32>
    %293 = vector.extract_strided_slice %280 {offsets = [0, 64], sizes = [8, 32], strides = [1, 1]} : vector<8x128xf32> to vector<8x32xf32>
    %294 = math.tanh %293 : vector<8x32xf32>
    %295 = vector.extract_strided_slice %280 {offsets = [0, 96], sizes = [8, 32], strides = [1, 1]} : vector<8x128xf32> to vector<8x32xf32>
    %296 = arith.negf %295 : vector<8x32xf32>
    %297 = math.exp %296 : vector<8x32xf32>
    %cst_133 = arith.constant 1.000000e+00 : f32
    %298 = vector.broadcast %cst_133 : f32 to vector<8x32xf32>
    %299 = arith.addf %298, %297 : vector<8x32xf32>
    %300 = arith.divf %298, %299 : vector<8x32xf32>
    %301 = arith.mulf %292, %259 : vector<8x32xf32>
    %302 = arith.mulf %286, %294 : vector<8x32xf32>
    %303 = arith.addf %301, %302 : vector<8x32xf32>
    %304 = math.tanh %303 : vector<8x32xf32>
    %305 = arith.mulf %300, %304 : vector<8x32xf32>
    %cst_134 = arith.constant dense<0.000000e+00> : vector<8x10xf32>
    %306 = tpu.matmul %305, %257, %cst_134 {dimension_numbers = #tpu.dot_dimension_numbers<[1], [0], [0], [1], [0, 0, 1, 1], [], []>} : vector<8x32xf32>, vector<32x10xf32>, vector<8x10xf32> -> vector<8x10xf32>
    %cst_135 = arith.constant dense<0.000000e+00> : vector<8x10xf32>
    %307 = tpu.matmul %253, %306, %cst_135 {dimension_numbers = #tpu.dot_dimension_numbers<[1], [0], [0], [1], [0, 0, 1, 1], [], []>} : vector<8x8xf32>, vector<8x10xf32>, vector<8x10xf32> -> vector<8x10xf32>
    %308 = arith.addf %307, %26 : vector<8x10xf32>
    %cst_136 = arith.constant dense<0xFF800000> : vector<8xf32>
    %309 = vector.multi_reduction <maximumf>, %308, %cst_136 [1] : vector<8x10xf32> to vector<8xf32>
    %310 = vector.shape_cast %309 : vector<8xf32> to vector<8x1xf32>
    %311 = vector.broadcast %310 : vector<8x1xf32> to vector<8x10xf32>
    %312 = arith.cmpf oge, %308, %311 : vector<8x10xf32>
    %cst_137 = arith.constant 1.000000e+01 : f32
    %313 = vector.broadcast %cst_137 : f32 to vector<8x10xf32>
    %314 = arith.select %312, %21, %313 : vector<8x10xi1>, vector<8x10xf32>
    %cst_138 = arith.constant dense<0x7F800000> : vector<8xf32>
    %315 = vector.multi_reduction <minimumf>, %314, %cst_138 [1] : vector<8x10xf32> to vector<8xf32>
    %316 = vector.shape_cast %315 : vector<8xf32> to vector<8x1xf32>
    %317 = vector.broadcast %316 : vector<8x1xf32> to vector<8x10xf32>
    %318 = arith.cmpf oeq, %21, %317 : vector<8x10xf32>
    %319 = arith.extui %318 : vector<8x10xi1> to vector<8x10xi32>
    %320 = arith.sitofp %319 : vector<8x10xi32> to vector<8x10xf32>
    %c0_139 = arith.constant 0 : index
    %c0_140 = arith.constant 0 : index
    %321 = vector.load %arg6[%c0_139, %c0_140] : memref<10x32xf32, #tpu.memory_space<vmem>>, vector<10x32xf32>
    %cst_141 = arith.constant dense<0.000000e+00> : vector<8x32xf32>
    %322 = tpu.matmul %320, %321, %cst_141 {dimension_numbers = #tpu.dot_dimension_numbers<[1], [0], [0], [1], [0, 0, 1, 1], [], []>} : vector<8x10xf32>, vector<10x32xf32>, vector<8x32xf32> -> vector<8x32xf32>
    %323 = arith.addf %322, %23 : vector<8x32xf32>
    %c0_142 = arith.constant 0 : index
    %c0_143 = arith.constant 0 : index
    %324 = vector.load %arg20[%c0_142, %c0_143] : memref<32x128xf32, #tpu.memory_space<vmem>>, vector<32x128xf32>
    %cst_144 = arith.constant dense<0.000000e+00> : vector<8x128xf32>
    %325 = tpu.matmul %323, %324, %cst_144 {dimension_numbers = #tpu.dot_dimension_numbers<[1], [0], [0], [1], [0, 0, 1, 1], [], []>} : vector<8x32xf32>, vector<32x128xf32>, vector<8x128xf32> -> vector<8x128xf32>
    %326 = arith.addf %264, %325 : vector<8x128xf32>
    %c0_145 = arith.constant 0 : index
    %c0_146 = arith.constant 0 : index
    %327 = vector.load %arg21[%c0_145, %c0_146] : memref<32x128xf32, #tpu.memory_space<vmem>>, vector<32x128xf32>
    %cst_147 = arith.constant dense<0.000000e+00> : vector<8x128xf32>
    %328 = tpu.matmul %305, %327, %cst_147 {dimension_numbers = #tpu.dot_dimension_numbers<[1], [0], [0], [1], [0, 0, 1, 1], [], []>} : vector<8x32xf32>, vector<32x128xf32>, vector<8x128xf32> -> vector<8x128xf32>
    %329 = arith.addf %326, %328 : vector<8x128xf32>
    %330 = vector.extract_strided_slice %329 {offsets = [0, 0], sizes = [8, 32], strides = [1, 1]} : vector<8x128xf32> to vector<8x32xf32>
    %331 = arith.negf %330 : vector<8x32xf32>
    %332 = math.exp %331 : vector<8x32xf32>
    %cst_148 = arith.constant 1.000000e+00 : f32
    %333 = vector.broadcast %cst_148 : f32 to vector<8x32xf32>
    %334 = arith.addf %333, %332 : vector<8x32xf32>
    %335 = arith.divf %333, %334 : vector<8x32xf32>
    %336 = vector.extract_strided_slice %329 {offsets = [0, 32], sizes = [8, 32], strides = [1, 1]} : vector<8x128xf32> to vector<8x32xf32>
    %337 = arith.negf %336 : vector<8x32xf32>
    %338 = math.exp %337 : vector<8x32xf32>
    %cst_149 = arith.constant 1.000000e+00 : f32
    %339 = vector.broadcast %cst_149 : f32 to vector<8x32xf32>
    %340 = arith.addf %339, %338 : vector<8x32xf32>
    %341 = arith.divf %339, %340 : vector<8x32xf32>
    %342 = vector.extract_strided_slice %329 {offsets = [0, 64], sizes = [8, 32], strides = [1, 1]} : vector<8x128xf32> to vector<8x32xf32>
    %343 = math.tanh %342 : vector<8x32xf32>
    %344 = vector.extract_strided_slice %329 {offsets = [0, 96], sizes = [8, 32], strides = [1, 1]} : vector<8x128xf32> to vector<8x32xf32>
    %345 = arith.negf %344 : vector<8x32xf32>
    %346 = math.exp %345 : vector<8x32xf32>
    %cst_150 = arith.constant 1.000000e+00 : f32
    %347 = vector.broadcast %cst_150 : f32 to vector<8x32xf32>
    %348 = arith.addf %347, %346 : vector<8x32xf32>
    %349 = arith.divf %347, %348 : vector<8x32xf32>
    %350 = arith.mulf %341, %303 : vector<8x32xf32>
    %351 = arith.mulf %335, %343 : vector<8x32xf32>
    %352 = arith.addf %350, %351 : vector<8x32xf32>
    %353 = math.tanh %352 : vector<8x32xf32>
    %354 = arith.mulf %349, %353 : vector<8x32xf32>
    %cst_151 = arith.constant dense<0.000000e+00> : vector<8x10xf32>
    %355 = tpu.matmul %354, %257, %cst_151 {dimension_numbers = #tpu.dot_dimension_numbers<[1], [0], [0], [1], [0, 0, 1, 1], [], []>} : vector<8x32xf32>, vector<32x10xf32>, vector<8x10xf32> -> vector<8x10xf32>
    %cst_152 = arith.constant dense<0.000000e+00> : vector<8x10xf32>
    %356 = tpu.matmul %253, %355, %cst_152 {dimension_numbers = #tpu.dot_dimension_numbers<[1], [0], [0], [1], [0, 0, 1, 1], [], []>} : vector<8x8xf32>, vector<8x10xf32>, vector<8x10xf32> -> vector<8x10xf32>
    %357 = arith.addf %356, %26 : vector<8x10xf32>
    %cst_153 = arith.constant dense<0xFF800000> : vector<8xf32>
    %358 = vector.multi_reduction <maximumf>, %357, %cst_153 [1] : vector<8x10xf32> to vector<8xf32>
    %359 = vector.shape_cast %358 : vector<8xf32> to vector<8x1xf32>
    %360 = vector.broadcast %359 : vector<8x1xf32> to vector<8x10xf32>
    %361 = arith.cmpf oge, %357, %360 : vector<8x10xf32>
    %cst_154 = arith.constant 1.000000e+01 : f32
    %362 = vector.broadcast %cst_154 : f32 to vector<8x10xf32>
    %363 = arith.select %361, %21, %362 : vector<8x10xi1>, vector<8x10xf32>
    %cst_155 = arith.constant dense<0x7F800000> : vector<8xf32>
    %364 = vector.multi_reduction <minimumf>, %363, %cst_155 [1] : vector<8x10xf32> to vector<8xf32>
    %365 = vector.shape_cast %364 : vector<8xf32> to vector<8x1xf32>
    %366 = tpu.concatenate %274, %316, %365 in 1 : vector<8x1xf32>, vector<8x1xf32>, vector<8x1xf32> -> vector<8x3xf32>
    %367 = arith.fptosi %366 : vector<8x3xf32> to vector<8x3xi32>
    %c0_156 = arith.constant 0 : index
    %c0_157 = arith.constant 0 : index
    %c0_158 = arith.constant 0 : index
    %368 = vector.load %arg26[%c0_156, %c0_157, %c0_158] : memref<1x8x3xi32, #tpu.memory_space<vmem>>, vector<1x8x3xi32>
    %369 = vector.shape_cast %368 : vector<1x8x3xi32> to vector<8x3xi32>
    %370 = vector.shape_cast %367 : vector<8x3xi32> to vector<1x8x3xi32>
    tpu.vector_store %arg26[%c0_156, %c0_157, %c0_158], %370 {strides = array<i32>} : memref<1x8x3xi32, #tpu.memory_space<vmem>>, vector<1x8x3xi32>,
    return
  }
  func.func @transform_0(%arg0: i32) -> (i32, i32, i32) {
    %c0_i32 = arith.constant 0 : i32
    %c0_i32_0 = arith.constant 0 : i32
    %c0_i32_1 = arith.constant 0 : i32
    return %arg0, %c0_i32, %c0_i32_0 : i32, i32, i32
  }
  func.func @transform_1(%arg0: i32) -> (i32, i32, i32) {
    %c0_i32 = arith.constant 0 : i32
    %c0_i32_0 = arith.constant 0 : i32
    %c0_i32_1 = arith.constant 0 : i32
    return %arg0, %c0_i32, %c0_i32_0 : i32, i32, i32
  }
  func.func @transform_2(%arg0: i32) -> (i32, i32, i32) {
    %c0_i32 = arith.constant 0 : i32
    %c0_i32_0 = arith.constant 0 : i32
    %c0_i32_1 = arith.constant 0 : i32
    return %arg0, %c0_i32, %c0_i32_0 : i32, i32, i32
  }
  func.func @transform_3(%arg0: i32) -> (i32, i32, i32) {
    %c0_i32 = arith.constant 0 : i32
    %c0_i32_0 = arith.constant 0 : i32
    %c0_i32_1 = arith.constant 0 : i32
    return %arg0, %c0_i32, %c0_i32_0 : i32, i32, i32
  }
  func.func @transform_4(%arg0: i32) -> (i32, i32) {
    %c0_i32 = arith.constant 0 : i32
    %c0_i32_0 = arith.constant 0 : i32
    %c0_i32_1 = arith.constant 0 : i32
    return %c0_i32, %c0_i32_0 : i32, i32
  }
  func.func @transform_5(%arg0: i32) -> (i32, i32) {
    %c0_i32 = arith.constant 0 : i32
    %c0_i32_0 = arith.constant 0 : i32
    %c0_i32_1 = arith.constant 0 : i32
    return %c0_i32, %c0_i32_0 : i32, i32
  }
  func.func @transform_6(%arg0: i32) -> (i32, i32, i32) {
    %c0_i32 = arith.constant 0 : i32
    %c0_i32_0 = arith.constant 0 : i32
    %c0_i32_1 = arith.constant 0 : i32
    %c0_i32_2 = arith.constant 0 : i32
    return %c0_i32, %c0_i32_0, %c0_i32_1 : i32, i32, i32
  }
  func.func @transform_7(%arg0: i32) -> (i32, i32, i32) {
    %c0_i32 = arith.constant 0 : i32
    %c0_i32_0 = arith.constant 0 : i32
    %c0_i32_1 = arith.constant 0 : i32
    %c0_i32_2 = arith.constant 0 : i32
    return %c0_i32, %c0_i32_0, %c0_i32_1 : i32, i32, i32
  }
  func.func @transform_8(%arg0: i32) -> (i32, i32, i32) {
    %c0_i32 = arith.constant 0 : i32
    %c0_i32_0 = arith.constant 0 : i32
    %c0_i32_1 = arith.constant 0 : i32
    %c0_i32_2 = arith.constant 0 : i32
    return %c0_i32, %c0_i32_0, %c0_i32_1 : i32, i32, i32
  }
  func.func @transform_9(%arg0: i32) -> (i32, i32, i32) {
    %c0_i32 = arith.constant 0 : i32
    %c0_i32_0 = arith.constant 0 : i32
    %c0_i32_1 = arith.constant 0 : i32
    %c0_i32_2 = arith.constant 0 : i32
    return %c0_i32, %c0_i32_0, %c0_i32_1 : i32, i32, i32
  }
  func.func @transform_10(%arg0: i32) -> (i32, i32, i32) {
    %c0_i32 = arith.constant 0 : i32
    %c0_i32_0 = arith.constant 0 : i32
    %c0_i32_1 = arith.constant 0 : i32
    %c0_i32_2 = arith.constant 0 : i32
    return %c0_i32, %c0_i32_0, %c0_i32_1 : i32, i32, i32
  }
  func.func @transform_11(%arg0: i32) -> (i32, i32, i32) {
    %c0_i32 = arith.constant 0 : i32
    %c0_i32_0 = arith.constant 0 : i32
    %c0_i32_1 = arith.constant 0 : i32
    %c0_i32_2 = arith.constant 0 : i32
    return %c0_i32, %c0_i32_0, %c0_i32_1 : i32, i32, i32
  }
  func.func @transform_12(%arg0: i32) -> (i32, i32, i32) {
    %c0_i32 = arith.constant 0 : i32
    %c0_i32_0 = arith.constant 0 : i32
    %c0_i32_1 = arith.constant 0 : i32
    %c0_i32_2 = arith.constant 0 : i32
    return %c0_i32, %c0_i32_0, %c0_i32_1 : i32, i32, i32
  }
  func.func @transform_13(%arg0: i32) -> (i32, i32, i32) {
    %c0_i32 = arith.constant 0 : i32
    %c0_i32_0 = arith.constant 0 : i32
    %c0_i32_1 = arith.constant 0 : i32
    %c0_i32_2 = arith.constant 0 : i32
    return %c0_i32, %c0_i32_0, %c0_i32_1 : i32, i32, i32
  }
  func.func @transform_14(%arg0: i32) -> (i32, i32, i32) {
    %c0_i32 = arith.constant 0 : i32
    %c0_i32_0 = arith.constant 0 : i32
    %c0_i32_1 = arith.constant 0 : i32
    %c0_i32_2 = arith.constant 0 : i32
    return %c0_i32, %c0_i32_0, %c0_i32_1 : i32, i32, i32
  }
  func.func @transform_15(%arg0: i32) -> (i32, i32, i32) {
    %c0_i32 = arith.constant 0 : i32
    %c0_i32_0 = arith.constant 0 : i32
    %c0_i32_1 = arith.constant 0 : i32
    %c0_i32_2 = arith.constant 0 : i32
    return %c0_i32, %c0_i32_0, %c0_i32_1 : i32, i32, i32
  }
  func.func @transform_16(%arg0: i32) -> (i32, i32, i32) {
    %c0_i32 = arith.constant 0 : i32
    %c0_i32_0 = arith.constant 0 : i32
    %c0_i32_1 = arith.constant 0 : i32
    %c0_i32_2 = arith.constant 0 : i32
    return %c0_i32, %c0_i32_0, %c0_i32_1 : i32, i32, i32
  }
  func.func @transform_17(%arg0: i32) -> (i32, i32, i32) {
    %c0_i32 = arith.constant 0 : i32
    %c0_i32_0 = arith.constant 0 : i32
    %c0_i32_1 = arith.constant 0 : i32
    %c0_i32_2 = arith.constant 0 : i32
    return %c0_i32, %c0_i32_0, %c0_i32_1 : i32, i32, i32
  }
  func.func @transform_18(%arg0: i32) -> (i32, i32) {
    %c0_i32 = arith.constant 0 : i32
    %c0_i32_0 = arith.constant 0 : i32
    %c0_i32_1 = arith.constant 0 : i32
    return %c0_i32, %c0_i32_0 : i32, i32
  }
  func.func @transform_19(%arg0: i32) -> (i32, i32) {
    %c0_i32 = arith.constant 0 : i32
    %c0_i32_0 = arith.constant 0 : i32
    %c0_i32_1 = arith.constant 0 : i32
    return %c0_i32, %c0_i32_0 : i32, i32
  }
  func.func @transform_20(%arg0: i32) -> (i32, i32) {
    %c0_i32 = arith.constant 0 : i32
    %c0_i32_0 = arith.constant 0 : i32
    %c0_i32_1 = arith.constant 0 : i32
    return %c0_i32, %c0_i32_0 : i32, i32
  }
  func.func @transform_21(%arg0: i32) -> (i32, i32) {
    %c0_i32 = arith.constant 0 : i32
    %c0_i32_0 = arith.constant 0 : i32
    %c0_i32_1 = arith.constant 0 : i32
    return %c0_i32, %c0_i32_0 : i32, i32
  }
  func.func @transform_22(%arg0: i32) -> (i32, i32) {
    %c0_i32 = arith.constant 0 : i32
    %c0_i32_0 = arith.constant 0 : i32
    %c0_i32_1 = arith.constant 0 : i32
    return %c0_i32, %c0_i32_0 : i32, i32
  }
  func.func @transform_23(%arg0: i32) -> (i32, i32) {
    %c0_i32 = arith.constant 0 : i32
    %c0_i32_0 = arith.constant 0 : i32
    %c0_i32_1 = arith.constant 0 : i32
    return %c0_i32, %c0_i32_0 : i32, i32
  }
  func.func @transform_24(%arg0: i32) -> (i32, i32, i32) {
    %c0_i32 = arith.constant 0 : i32
    %c0_i32_0 = arith.constant 0 : i32
    %c0_i32_1 = arith.constant 0 : i32
    return %arg0, %c0_i32, %c0_i32_0 : i32, i32, i32
  }
  func.func @transform_25(%arg0: i32) -> (i32, i32, i32) {
    %c0_i32 = arith.constant 0 : i32
    %c0_i32_0 = arith.constant 0 : i32
    %c0_i32_1 = arith.constant 0 : i32
    return %arg0, %c0_i32, %c0_i32_0 : i32, i32, i32
  }
}

</mosaic_0001>

<llo_original>
// kernel: forward.1
$region0: #{forward.1}
  #allocation0 [shape = 'u32[]', space=smem, size = 0x4, offset = 0x4, fixed_abs, tag = 'smem constant byte address 0x4 - core index']
  #allocation1 [shape = 'u32[144,128]{1,0:T(1,128)}', space=vmem, size = 0x12000, scoped, tag = 'internal scratch']
  %s0 = inlined_call_operand.vmem [shape: f32[2,8,1], index: 0, kind: input, shape index: {}]
  %s1 = inlined_call_operand.vmem [shape: f32[2,8,1], index: 1, kind: input, shape index: {}]
  %s2 = inlined_call_operand.vmem [shape: f32[2,1,8], index: 2, kind: input, shape index: {}]
  %s3 = inlined_call_operand.vmem [shape: f32[2,1,32], index: 3, kind: input, shape index: {}]
  %s4 = inlined_call_operand.vmem [shape: f32[50,32], index: 4, kind: input, shape index: {}]
  %s5 = inlined_call_operand.vmem [shape: f32[10,32], index: 5, kind: input, shape index: {}]
  %s6 = inlined_call_operand.vmem [shape: f32[2,32,96], index: 6, kind: input, shape index: {}]
  %s7 = inlined_call_operand.vmem [shape: f32[2,1,96], index: 7, kind: input, shape index: {}]
  %s8 = inlined_call_operand.vmem [shape: f32[2,32,32], index: 8, kind: input, shape index: {}]
  %s9 = inlined_call_operand.vmem [shape: f32[2,1,32], index: 9, kind: input, shape index: {}]
  %s10 = inlined_call_operand.vmem [shape: f32[2,32,64], index: 10, kind: input, shape index: {}]
  %s11 = inlined_call_operand.vmem [shape: f32[2,1,64], index: 11, kind: input, shape index: {}]
  %s12 = inlined_call_operand.vmem [shape: f32[2,64,32], index: 12, kind: input, shape index: {}]
  %s13 = inlined_call_operand.vmem [shape: f32[2,1,32], index: 13, kind: input, shape index: {}]
  %s14 = inlined_call_operand.vmem [shape: f32[2,1,32], index: 14, kind: input, shape index: {}]
  %s15 = inlined_call_operand.vmem [shape: f32[2,1,32], index: 15, kind: input, shape index: {}]
  %s16 = inlined_call_operand.vmem [shape: f32[2,1,32], index: 16, kind: input, shape index: {}]
  %s17 = inlined_call_operand.vmem [shape: f32[2,1,32], index: 17, kind: input, shape index: {}]
  %s18 = inlined_call_operand.vmem [shape: f32[32,128], index: 18, kind: input, shape index: {}]
  %s19 = inlined_call_operand.vmem [shape: f32[32,128], index: 19, kind: input, shape index: {}]
  %s20 = inlined_call_operand.vmem [shape: f32[32,128], index: 20, kind: input, shape index: {}]
  %s21 = inlined_call_operand.vmem [shape: f32[1,128], index: 21, kind: input, shape index: {}]
  %s22 = inlined_call_operand.vmem [shape: f32[32,10], index: 22, kind: input, shape index: {}]
  %s23 = inlined_call_operand.vmem [shape: f32[1,10], index: 23, kind: input, shape index: {}]
  %s24 = inlined_call_operand.hbm [shape: f32[2,8,8], index: 24, kind: output, shape index: {0}]
  %s25 = inlined_call_operand.vmem [shape: s32[2,8,3], index: 25, kind: output, shape index: {1}]
  %26 = xla_tuple %s24, %s25
  %s27 = sld [smem:[#allocation0]]
  $region137: #{forward.1} parent=0
    _
  %s29 = ssub.s32 1, %s27
  %s30 = scalar_select 0, %s29, %s27
  $region1: #{forward.1} parent=0
    #allocation2 [shape = 'u8[8192]{0}', space=vmem, size = 0x2000, scoped, tag = 'output window, operand 0']
    #allocation3 [shape = 's32[2]{0}', space=sflag, size = 0x8, scoped, tag = 'scoped memory for forward.1']
    %31 = vsyncpa [#allocation3], 0
    %s32 = scalar_lea.sflag [#allocation3], 1
    %33 = vsyncpa %s32, 0
    loop: start=0, step=1, limit=4
    $region2: #{forward.1} parent=1 // loop_pre_header
      _
    $region3: #{forward.1} parent=1 // loop_header
      %s35 = sphi 0, %s39
      %p36 = scmp.ge.s32.totalorder %s35, 4
      %s45 = sphi 0, %s47
      %s48 = sphi 0, %s45
      %s49 = sphi 0, %s48
      %s65 = sphi 0, %s49
      %s71 = sphi 0, %s73
      %s74 = sphi 0, %s71
      %s75 = sphi 0, %s74
      %s91 = sphi 0, %s75
      %s97 = sphi 0, %s99
      %s100 = sphi 0, %s97
      %s101 = sphi 0, %s100
      %s117 = sphi 0, %s101
      %s123 = sphi 0, %s125
      %s126 = sphi 0, %s123
      %s127 = sphi 0, %s126
      %s143 = sphi 0, %s127
      %s147 = sphi 0, %s147
      %s149 = sphi 0, %s147
      %s150 = sphi 0, %s149
      %s164 = sphi 0, %s150
      %s168 = sphi 0, %s168
      %s170 = sphi 0, %s168
      %s171 = sphi 0, %s170
      %s185 = sphi 0, %s171
      %s189 = sphi 0, %s189
      %s191 = sphi 0, %s189
      %s192 = sphi 0, %s191
      %s206 = sphi 0, %s192
      %s210 = sphi 0, %s210
      %s212 = sphi 0, %s210
      %s213 = sphi 0, %s212
      %s227 = sphi 0, %s213
      %s231 = sphi 0, %s231
      %s233 = sphi 0, %s231
      %s234 = sphi 0, %s233
      %s248 = sphi 0, %s234
      %s252 = sphi 0, %s252
      %s254 = sphi 0, %s252
      %s255 = sphi 0, %s254
      %s269 = sphi 0, %s255
      %s273 = sphi 0, %s273
      %s275 = sphi 0, %s273
      %s276 = sphi 0, %s275
      %s290 = sphi 0, %s276
      %s294 = sphi 0, %s294
      %s296 = sphi 0, %s294
      %s297 = sphi 0, %s296
      %s311 = sphi 0, %s297
      %s315 = sphi 0, %s315
      %s317 = sphi 0, %s315
      %s318 = sphi 0, %s317
      %s332 = sphi 0, %s318
      %s336 = sphi 0, %s336
      %s338 = sphi 0, %s336
      %s339 = sphi 0, %s338
      %s353 = sphi 0, %s339
      %s357 = sphi 0, %s357
      %s359 = sphi 0, %s357
      %s360 = sphi 0, %s359
      %s374 = sphi 0, %s360
      %s378 = sphi 0, %s378
      %s380 = sphi 0, %s378
      %s381 = sphi 0, %s380
      %s395 = sphi 0, %s381
      %s399 = sphi 0, %s399
      %s401 = sphi 0, %s399
      %s402 = sphi 0, %s401
      %s416 = sphi 0, %s402
      %s420 = sphi 0, %s420
      %s422 = sphi 0, %s420
      %s423 = sphi 0, %s422
      %s437 = sphi 0, %s423
      %s441 = sphi 0, %s441
      %s443 = sphi 0, %s441
      %s444 = sphi 0, %s443
      %s458 = sphi 0, %s444
      %s462 = sphi 0, %s462
      %s464 = sphi 0, %s462
      %s465 = sphi 0, %s464
      %s479 = sphi 0, %s465
      %s483 = sphi 0, %s483
      %s485 = sphi 0, %s483
      %s486 = sphi 0, %s485
      %s500 = sphi 0, %s486
      %s504 = sphi 0, %s504
      %s506 = sphi 0, %s504
      %s507 = sphi 0, %s506
      %s521 = sphi 0, %s507
      %s525 = sphi 0, %s525
      %s527 = sphi 0, %s525
      %s528 = sphi 0, %s527
      %s542 = sphi 0, %s528
      %s546 = sphi 0, %s546
      %s548 = sphi 0, %s546
      %s549 = sphi 0, %s548
      %s563 = sphi 0, %s549
      %s569 = sphi 0, %s571
      %s572 = sphi 0, %s569
      %s573 = sphi 0, %s572
      %s589 = sphi 0, %s573
      %s595 = sphi 0, %s597
      %s598 = sphi 0, %s595
      %s599 = sphi 0, %s598
      %s615 = sphi 0, %s599
    $region4: #{forward.1} parent=1 // loop_header_branch
      %38 = sbr.rel (%p36) target = $region8
    $region5: #{forward.1} parent=1 // loop_body
      %s40 = ssub.s32 %s35, 1
      %s41 = ssub.s32 %s35, 2
      %s42 = sadd.s32 %s35, 1
      %s43 = ssub.s32 %s35, %s42
      %p44 = scmp.eq.s32.totalorder %s43, 0
      %s46 = sadd.s32 %s45, 1
      %s47 = scalar_select %p44, %s45, %s46
      %p50 = pneg %p44
      %p51 = scmp.eq.s32.totalorder %s35, 1
      %p52 = por %p50, %p51
      %p53 = scmp.ne.s32.totalorder %s45, %s48
      %p54 = scmp.eq.s32.totalorder %s35, 0
      %p55 = por %p53, %p54
      %p56 = scmp.ne.s32.totalorder %s45, %s48
      %p57 = scmp.eq.s32.totalorder %s40, 1
      %p58 = por %p56, %p57
      %p59 = scmp.ne.s32.totalorder %s48, %s49
      %p60 = scmp.eq.s32.totalorder %s40, 0
      %p61 = por %p59, %p60
      %p62 = scmp.ne.s32.totalorder %s48, %s49
      %p63 = scmp.eq.s32.totalorder %s41, 1
      %p64 = por %p62, %p63
      %p66 = scmp.ne.s32.totalorder %s49, %s65
      %p67 = scmp.eq.s32.totalorder %s41, 0
      %p68 = por %p66, %p67
      %s69 = ssub.s32 %s35, %s42
      %p70 = scmp.eq.s32.totalorder %s69, 0
      %s72 = sadd.s32 %s71, 1
      %s73 = scalar_select %p70, %s71, %s72
      %p76 = pneg %p70
      %p77 = scmp.eq.s32.totalorder %s35, 1
      %p78 = por %p76, %p77
      %p79 = scmp.ne.s32.totalorder %s71, %s74
      %p80 = scmp.eq.s32.totalorder %s35, 0
      %p81 = por %p79, %p80
      %p82 = scmp.ne.s32.totalorder %s71, %s74
      %p83 = scmp.eq.s32.totalorder %s40, 1
      %p84 = por %p82, %p83
      %p85 = scmp.ne.s32.totalorder %s74, %s75
      %p86 = scmp.eq.s32.totalorder %s40, 0
      %p87 = por %p85, %p86
      %p88 = scmp.ne.s32.totalorder %s74, %s75
      %p89 = scmp.eq.s32.totalorder %s41, 1
      %p90 = por %p88, %p89
      %p92 = scmp.ne.s32.totalorder %s75, %s91
      %p93 = scmp.eq.s32.totalorder %s41, 0
      %p94 = por %p92, %p93
      %s95 = ssub.s32 %s35, %s42
      %p96 = scmp.eq.s32.totalorder %s95, 0
      %s98 = sadd.s32 %s97, 1
      %s99 = scalar_select %p96, %s97, %s98
      %p102 = pneg %p96
      %p103 = scmp.eq.s32.totalorder %s35, 1
      %p104 = por %p102, %p103
      %p105 = scmp.ne.s32.totalorder %s97, %s100
      %p106 = scmp.eq.s32.totalorder %s35, 0
      %p107 = por %p105, %p106
      %p108 = scmp.ne.s32.totalorder %s97, %s100
      %p109 = scmp.eq.s32.totalorder %s40, 1
      %p110 = por %p108, %p109
      %p111 = scmp.ne.s32.totalorder %s100, %s101
      %p112 = scmp.eq.s32.totalorder %s40, 0
      %p113 = por %p111, %p112
      %p114 = scmp.ne.s32.totalorder %s100, %s101
      %p115 = scmp.eq.s32.totalorder %s41, 1
      %p116 = por %p114, %p115
      %p118 = scmp.ne.s32.totalorder %s101, %s117
      %p119 = scmp.eq.s32.totalorder %s41, 0
      %p120 = por %p118, %p119
      %s121 = ssub.s32 %s35, %s42
      %p122 = scmp.eq.s32.totalorder %s121, 0
      %s124 = sadd.s32 %s123, 1
      %s125 = scalar_select %p122, %s123, %s124
      %p128 = pneg %p122
      %p129 = scmp.eq.s32.totalorder %s35, 1
      %p130 = por %p128, %p129
      %p131 = scmp.ne.s32.totalorder %s123, %s126
      %p132 = scmp.eq.s32.totalorder %s35, 0
      %p133 = por %p131, %p132
      %p134 = scmp.ne.s32.totalorder %s123, %s126
      %p135 = scmp.eq.s32.totalorder %s40, 1
      %p136 = por %p134, %p135
      %p137 = scmp.ne.s32.totalorder %s126, %s127
      %p138 = scmp.eq.s32.totalorder %s40, 0
      %p139 = por %p137, %p138
      %p140 = scmp.ne.s32.totalorder %s126, %s127
      %p141 = scmp.eq.s32.totalorder %s41, 1
      %p142 = por %p140, %p141
      %p144 = scmp.ne.s32.totalorder %s127, %s143
      %p145 = scmp.eq.s32.totalorder %s41, 0
      %p146 = por %p144, %p145
      %s148 = sadd.s32 %s147, 1
      %p151 = scmp.eq.s32.totalorder %s35, 1
      %p152 = scmp.ne.s32.totalorder %s147, %s149
      %p153 = scmp.eq.s32.totalorder %s35, 0
      %p154 = por %p152, %p153
      %p155 = scmp.ne.s32.totalorder %s147, %s149
      %p156 = scmp.eq.s32.totalorder %s40, 1
      %p157 = por %p155, %p156
      %p158 = scmp.ne.s32.totalorder %s149, %s150
      %p159 = scmp.eq.s32.totalorder %s40, 0
      %p160 = por %p158, %p159
      %p161 = scmp.ne.s32.totalorder %s149, %s150
      %p162 = scmp.eq.s32.totalorder %s41, 1
      %p163 = por %p161, %p162
      %p165 = scmp.ne.s32.totalorder %s150, %s164
      %p166 = scmp.eq.s32.totalorder %s41, 0
      %p167 = por %p165, %p166
      %s169 = sadd.s32 %s168, 1
      %p172 = scmp.eq.s32.totalorder %s35, 1
      %p173 = scmp.ne.s32.totalorder %s168, %s170
      %p174 = scmp.eq.s32.totalorder %s35, 0
      %p175 = por %p173, %p174
      %p176 = scmp.ne.s32.totalorder %s168, %s170
      %p177 = scmp.eq.s32.totalorder %s40, 1
      %p178 = por %p176, %p177
      %p179 = scmp.ne.s32.totalorder %s170, %s171
      %p180 = scmp.eq.s32.totalorder %s40, 0
      %p181 = por %p179, %p180
      %p182 = scmp.ne.s32.totalorder %s170, %s171
      %p183 = scmp.eq.s32.totalorder %s41, 1
      %p184 = por %p182, %p183
      %p186 = scmp.ne.s32.totalorder %s171, %s185
      %p187 = scmp.eq.s32.totalorder %s41, 0
      %p188 = por %p186, %p187
      %s190 = sadd.s32 %s189, 1
      %p193 = scmp.eq.s32.totalorder %s35, 1
      %p194 = scmp.ne.s32.totalorder %s189, %s191
      %p195 = scmp.eq.s32.totalorder %s35, 0
      %p196 = por %p194, %p195
      %p197 = scmp.ne.s32.totalorder %s189, %s191
      %p198 = scmp.eq.s32.totalorder %s40, 1
      %p199 = por %p197, %p198
      %p200 = scmp.ne.s32.totalorder %s191, %s192
      %p201 = scmp.eq.s32.totalorder %s40, 0
      %p202 = por %p200, %p201
      %p203 = scmp.ne.s32.totalorder %s191, %s192
      %p204 = scmp.eq.s32.totalorder %s41, 1
      %p205 = por %p203, %p204
      %p207 = scmp.ne.s32.totalorder %s192, %s206
      %p208 = scmp.eq.s32.totalorder %s41, 0
      %p209 = por %p207, %p208
      %s211 = sadd.s32 %s210, 1
      %p214 = scmp.eq.s32.totalorder %s35, 1
      %p215 = scmp.ne.s32.totalorder %s210, %s212
      %p216 = scmp.eq.s32.totalorder %s35, 0
      %p217 = por %p215, %p216
      %p218 = scmp.ne.s32.totalorder %s210, %s212
      %p219 = scmp.eq.s32.totalorder %s40, 1
      %p220 = por %p218, %p219
      %p221 = scmp.ne.s32.totalorder %s212, %s213
      %p222 = scmp.eq.s32.totalorder %s40, 0
      %p223 = por %p221, %p222
      %p224 = scmp.ne.s32.totalorder %s212, %s213
      %p225 = scmp.eq.s32.totalorder %s41, 1
      %p226 = por %p224, %p225
      %p228 = scmp.ne.s32.totalorder %s213, %s227
      %p229 = scmp.eq.s32.totalorder %s41, 0
      %p230 = por %p228, %p229
      %s232 = sadd.s32 %s231, 1
      %p235 = scmp.eq.s32.totalorder %s35, 1
      %p236 = scmp.ne.s32.totalorder %s231, %s233
      %p237 = scmp.eq.s32.totalorder %s35, 0
      %p238 = por %p236, %p237
      %p239 = scmp.ne.s32.totalorder %s231, %s233
      %p240 = scmp.eq.s32.totalorder %s40, 1
      %p241 = por %p239, %p240
      %p242 = scmp.ne.s32.totalorder %s233, %s234
      %p243 = scmp.eq.s32.totalorder %s40, 0
      %p244 = por %p242, %p243
      %p245 = scmp.ne.s32.totalorder %s233, %s234
      %p246 = scmp.eq.s32.totalorder %s41, 1
      %p247 = por %p245, %p246
      %p249 = scmp.ne.s32.totalorder %s234, %s248
      %p250 = scmp.eq.s32.totalorder %s41, 0
      %p251 = por %p249, %p250
      %s253 = sadd.s32 %s252, 1
      %p256 = scmp.eq.s32.totalorder %s35, 1
      %p257 = scmp.ne.s32.totalorder %s252, %s254
      %p258 = scmp.eq.s32.totalorder %s35, 0
      %p259 = por %p257, %p258
      %p260 = scmp.ne.s32.totalorder %s252, %s254
      %p261 = scmp.eq.s32.totalorder %s40, 1
      %p262 = por %p260, %p261
      %p263 = scmp.ne.s32.totalorder %s254, %s255
      %p264 = scmp.eq.s32.totalorder %s40, 0
      %p265 = por %p263, %p264
      %p266 = scmp.ne.s32.totalorder %s254, %s255
      %p267 = scmp.eq.s32.totalorder %s41, 1
      %p268 = por %p266, %p267
      %p270 = scmp.ne.s32.totalorder %s255, %s269
      %p271 = scmp.eq.s32.totalorder %s41, 0
      %p272 = por %p270, %p271
      %s274 = sadd.s32 %s273, 1
      %p277 = scmp.eq.s32.totalorder %s35, 1
      %p278 = scmp.ne.s32.totalorder %s273, %s275
      %p279 = scmp.eq.s32.totalorder %s35, 0
      %p280 = por %p278, %p279
      %p281 = scmp.ne.s32.totalorder %s273, %s275
      %p282 = scmp.eq.s32.totalorder %s40, 1
      %p283 = por %p281, %p282
      %p284 = scmp.ne.s32.totalorder %s275, %s276
      %p285 = scmp.eq.s32.totalorder %s40, 0
      %p286 = por %p284, %p285
      %p287 = scmp.ne.s32.totalorder %s275, %s276
      %p288 = scmp.eq.s32.totalorder %s41, 1
      %p289 = por %p287, %p288
      %p291 = scmp.ne.s32.totalorder %s276, %s290
      %p292 = scmp.eq.s32.totalorder %s41, 0
      %p293 = por %p291, %p292
      %s295 = sadd.s32 %s294, 1
      %p298 = scmp.eq.s32.totalorder %s35, 1
      %p299 = scmp.ne.s32.totalorder %s294, %s296
      %p300 = scmp.eq.s32.totalorder %s35, 0
      %p301 = por %p299, %p300
      %p302 = scmp.ne.s32.totalorder %s294, %s296
      %p303 = scmp.eq.s32.totalorder %s40, 1
      %p304 = por %p302, %p303
      %p305 = scmp.ne.s32.totalorder %s296, %s297
      %p306 = scmp.eq.s32.totalorder %s40, 0
      %p307 = por %p305, %p306
      %p308 = scmp.ne.s32.totalorder %s296, %s297
      %p309 = scmp.eq.s32.totalorder %s41, 1
      %p310 = por %p308, %p309
      %p312 = scmp.ne.s32.totalorder %s297, %s311
      %p313 = scmp.eq.s32.totalorder %s41, 0
      %p314 = por %p312, %p313
      %s316 = sadd.s32 %s315, 1
      %p319 = scmp.eq.s32.totalorder %s35, 1
      %p320 = scmp.ne.s32.totalorder %s315, %s317
      %p321 = scmp.eq.s32.totalorder %s35, 0
      %p322 = por %p320, %p321
      %p323 = scmp.ne.s32.totalorder %s315, %s317
      %p324 = scmp.eq.s32.totalorder %s40, 1
      %p325 = por %p323, %p324
      %p326 = scmp.ne.s32.totalorder %s317, %s318
      %p327 = scmp.eq.s32.totalorder %s40, 0
      %p328 = por %p326, %p327
      %p329 = scmp.ne.s32.totalorder %s317, %s318
      %p330 = scmp.eq.s32.totalorder %s41, 1
      %p331 = por %p329, %p330
      %p333 = scmp.ne.s32.totalorder %s318, %s332
      %p334 = scmp.eq.s32.totalorder %s41, 0
      %p335 = por %p333, %p334
      %s337 = sadd.s32 %s336, 1
      %p340 = scmp.eq.s32.totalorder %s35, 1
      %p341 = scmp.ne.s32.totalorder %s336, %s338
      %p342 = scmp.eq.s32.totalorder %s35, 0
      %p343 = por %p341, %p342
      %p344 = scmp.ne.s32.totalorder %s336, %s338
      %p345 = scmp.eq.s32.totalorder %s40, 1
      %p346 = por %p344, %p345
      %p347 = scmp.ne.s32.totalorder %s338, %s339
      %p348 = scmp.eq.s32.totalorder %s40, 0
      %p349 = por %p347, %p348
      %p350 = scmp.ne.s32.totalorder %s338, %s339
      %p351 = scmp.eq.s32.totalorder %s41, 1
      %p352 = por %p350, %p351
      %p354 = scmp.ne.s32.totalorder %s339, %s353
      %p355 = scmp.eq.s32.totalorder %s41, 0
      %p356 = por %p354, %p355
      %s358 = sadd.s32 %s357, 1
      %p361 = scmp.eq.s32.totalorder %s35, 1
      %p362 = scmp.ne.s32.totalorder %s357, %s359
      %p363 = scmp.eq.s32.totalorder %s35, 0
      %p364 = por %p362, %p363
      %p365 = scmp.ne.s32.totalorder %s357, %s359
      %p366 = scmp.eq.s32.totalorder %s40, 1
      %p367 = por %p365, %p366
      %p368 = scmp.ne.s32.totalorder %s359, %s360
      %p369 = scmp.eq.s32.totalorder %s40, 0
      %p370 = por %p368, %p369
      %p371 = scmp.ne.s32.totalorder %s359, %s360
      %p372 = scmp.eq.s32.totalorder %s41, 1
      %p373 = por %p371, %p372
      %p375 = scmp.ne.s32.totalorder %s360, %s374
      %p376 = scmp.eq.s32.totalorder %s41, 0
      %p377 = por %p375, %p376
      %s379 = sadd.s32 %s378, 1
      %p382 = scmp.eq.s32.totalorder %s35, 1
      %p383 = scmp.ne.s32.totalorder %s378, %s380
      %p384 = scmp.eq.s32.totalorder %s35, 0
      %p385 = por %p383, %p384
      %p386 = scmp.ne.s32.totalorder %s378, %s380
      %p387 = scmp.eq.s32.totalorder %s40, 1
      %p388 = por %p386, %p387
      %p389 = scmp.ne.s32.totalorder %s380, %s381
      %p390 = scmp.eq.s32.totalorder %s40, 0
      %p391 = por %p389, %p390
      %p392 = scmp.ne.s32.totalorder %s380, %s381
      %p393 = scmp.eq.s32.totalorder %s41, 1
      %p394 = por %p392, %p393
      %p396 = scmp.ne.s32.totalorder %s381, %s395
      %p397 = scmp.eq.s32.totalorder %s41, 0
      %p398 = por %p396, %p397
      %s400 = sadd.s32 %s399, 1
      %p403 = scmp.eq.s32.totalorder %s35, 1
      %p404 = scmp.ne.s32.totalorder %s399, %s401
      %p405 = scmp.eq.s32.totalorder %s35, 0
      %p406 = por %p404, %p405
      %p407 = scmp.ne.s32.totalorder %s399, %s401
      %p408 = scmp.eq.s32.totalorder %s40, 1
      %p409 = por %p407, %p408
      %p410 = scmp.ne.s32.totalorder %s401, %s402
      %p411 = scmp.eq.s32.totalorder %s40, 0
      %p412 = por %p410, %p411
      %p413 = scmp.ne.s32.totalorder %s401, %s402
      %p414 = scmp.eq.s32.totalorder %s41, 1
      %p415 = por %p413, %p414
      %p417 = scmp.ne.s32.totalorder %s402, %s416
      %p418 = scmp.eq.s32.totalorder %s41, 0
      %p419 = por %p417, %p418
      %s421 = sadd.s32 %s420, 1
      %p424 = scmp.eq.s32.totalorder %s35, 1
      %p425 = scmp.ne.s32.totalorder %s420, %s422
      %p426 = scmp.eq.s32.totalorder %s35, 0
      %p427 = por %p425, %p426
      %p428 = scmp.ne.s32.totalorder %s420, %s422
      %p429 = scmp.eq.s32.totalorder %s40, 1
      %p430 = por %p428, %p429
      %p431 = scmp.ne.s32.totalorder %s422, %s423
      %p432 = scmp.eq.s32.totalorder %s40, 0
      %p433 = por %p431, %p432
      %p434 = scmp.ne.s32.totalorder %s422, %s423
      %p435 = scmp.eq.s32.totalorder %s41, 1
      %p436 = por %p434, %p435
      %p438 = scmp.ne.s32.totalorder %s423, %s437
      %p439 = scmp.eq.s32.totalorder %s41, 0
      %p440 = por %p438, %p439
      %s442 = sadd.s32 %s441, 1
      %p445 = scmp.eq.s32.totalorder %s35, 1
      %p446 = scmp.ne.s32.totalorder %s441, %s443
      %p447 = scmp.eq.s32.totalorder %s35, 0
      %p448 = por %p446, %p447
      %p449 = scmp.ne.s32.totalorder %s441, %s443
      %p450 = scmp.eq.s32.totalorder %s40, 1
      %p451 = por %p449, %p450
      %p452 = scmp.ne.s32.totalorder %s443, %s444
      %p453 = scmp.eq.s32.totalorder %s40, 0
      %p454 = por %p452, %p453
      %p455 = scmp.ne.s32.totalorder %s443, %s444
      %p456 = scmp.eq.s32.totalorder %s41, 1
      %p457 = por %p455, %p456
      %p459 = scmp.ne.s32.totalorder %s444, %s458
      %p460 = scmp.eq.s32.totalorder %s41, 0
      %p461 = por %p459, %p460
      %s463 = sadd.s32 %s462, 1
      %p466 = scmp.eq.s32.totalorder %s35, 1
      %p467 = scmp.ne.s32.totalorder %s462, %s464
      %p468 = scmp.eq.s32.totalorder %s35, 0
      %p469 = por %p467, %p468
      %p470 = scmp.ne.s32.totalorder %s462, %s464
      %p471 = scmp.eq.s32.totalorder %s40, 1
      %p472 = por %p470, %p471
      %p473 = scmp.ne.s32.totalorder %s464, %s465
      %p474 = scmp.eq.s32.totalorder %s40, 0
      %p475 = por %p473, %p474
      %p476 = scmp.ne.s32.totalorder %s464, %s465
      %p477 = scmp.eq.s32.totalorder %s41, 1
      %p478 = por %p476, %p477
      %p480 = scmp.ne.s32.totalorder %s465, %s479
      %p481 = scmp.eq.s32.totalorder %s41, 0
      %p482 = por %p480, %p481
      %s484 = sadd.s32 %s483, 1
      %p487 = scmp.eq.s32.totalorder %s35, 1
      %p488 = scmp.ne.s32.totalorder %s483, %s485
      %p489 = scmp.eq.s32.totalorder %s35, 0
      %p490 = por %p488, %p489
      %p491 = scmp.ne.s32.totalorder %s483, %s485
      %p492 = scmp.eq.s32.totalorder %s40, 1
      %p493 = por %p491, %p492
      %p494 = scmp.ne.s32.totalorder %s485, %s486
      %p495 = scmp.eq.s32.totalorder %s40, 0
      %p496 = por %p494, %p495
      %p497 = scmp.ne.s32.totalorder %s485, %s486
      %p498 = scmp.eq.s32.totalorder %s41, 1
      %p499 = por %p497, %p498
      %p501 = scmp.ne.s32.totalorder %s486, %s500
      %p502 = scmp.eq.s32.totalorder %s41, 0
      %p503 = por %p501, %p502
      %s505 = sadd.s32 %s504, 1
      %p508 = scmp.eq.s32.totalorder %s35, 1
      %p509 = scmp.ne.s32.totalorder %s504, %s506
      %p510 = scmp.eq.s32.totalorder %s35, 0
      %p511 = por %p509, %p510
      %p512 = scmp.ne.s32.totalorder %s504, %s506
      %p513 = scmp.eq.s32.totalorder %s40, 1
      %p514 = por %p512, %p513
      %p515 = scmp.ne.s32.totalorder %s506, %s507
      %p516 = scmp.eq.s32.totalorder %s40, 0
      %p517 = por %p515, %p516
      %p518 = scmp.ne.s32.totalorder %s506, %s507
      %p519 = scmp.eq.s32.totalorder %s41, 1
      %p520 = por %p518, %p519
      %p522 = scmp.ne.s32.totalorder %s507, %s521
      %p523 = scmp.eq.s32.totalorder %s41, 0
      %p524 = por %p522, %p523
      %s526 = sadd.s32 %s525, 1
      %p529 = scmp.eq.s32.totalorder %s35, 1
      %p530 = scmp.ne.s32.totalorder %s525, %s527
      %p531 = scmp.eq.s32.totalorder %s35, 0
      %p532 = por %p530, %p531
      %p533 = scmp.ne.s32.totalorder %s525, %s527
      %p534 = scmp.eq.s32.totalorder %s40, 1
      %p535 = por %p533, %p534
      %p536 = scmp.ne.s32.totalorder %s527, %s528
      %p537 = scmp.eq.s32.totalorder %s40, 0
      %p538 = por %p536, %p537
      %p539 = scmp.ne.s32.totalorder %s527, %s528
      %p540 = scmp.eq.s32.totalorder %s41, 1
      %p541 = por %p539, %p540
      %p543 = scmp.ne.s32.totalorder %s528, %s542
      %p544 = scmp.eq.s32.totalorder %s41, 0
      %p545 = por %p543, %p544
      %s547 = sadd.s32 %s546, 1
      %p550 = scmp.eq.s32.totalorder %s35, 1
      %p551 = scmp.ne.s32.totalorder %s546, %s548
      %p552 = scmp.eq.s32.totalorder %s35, 0
      %p553 = por %p551, %p552
      %p554 = scmp.ne.s32.totalorder %s546, %s548
      %p555 = scmp.eq.s32.totalorder %s40, 1
      %p556 = por %p554, %p555
      %p557 = scmp.ne.s32.totalorder %s548, %s549
      %p558 = scmp.eq.s32.totalorder %s40, 0
      %p559 = por %p557, %p558
      %p560 = scmp.ne.s32.totalorder %s548, %s549
      %p561 = scmp.eq.s32.totalorder %s41, 1
      %p562 = por %p560, %p561
      %p564 = scmp.ne.s32.totalorder %s549, %s563
      %p565 = scmp.eq.s32.totalorder %s41, 0
      %p566 = por %p564, %p565
      %s567 = ssub.s32 %s35, %s42
      %p568 = scmp.eq.s32.totalorder %s567, 0
      %s570 = sadd.s32 %s569, 1
      %s571 = scalar_select %p568, %s569, %s570
      %p574 = pneg %p568
      %p575 = scmp.eq.s32.totalorder %s35, 1
      %p576 = por %p574, %p575
      %p577 = scmp.ne.s32.totalorder %s569, %s572
      %p578 = scmp.eq.s32.totalorder %s35, 0
      %p579 = por %p577, %p578
      %p580 = scmp.ne.s32.totalorder %s569, %s572
      %p581 = scmp.eq.s32.totalorder %s40, 1
      %p582 = por %p580, %p581
      %p583 = scmp.ne.s32.totalorder %s572, %s573
      %p584 = scmp.eq.s32.totalorder %s40, 0
      %p585 = por %p583, %p584
      %p586 = scmp.ne.s32.totalorder %s572, %s573
      %p587 = scmp.eq.s32.totalorder %s41, 1
      %p588 = por %p586, %p587
      %p590 = scmp.ne.s32.totalorder %s573, %s589
      %p591 = scmp.eq.s32.totalorder %s41, 0
      %p592 = por %p590, %p591
      %s593 = ssub.s32 %s35, %s42
      %p594 = scmp.eq.s32.totalorder %s593, 0
      %s596 = sadd.s32 %s595, 1
      %s597 = scalar_select %p594, %s595, %s596
      %p600 = pneg %p594
      %p601 = scmp.eq.s32.totalorder %s35, 1
      %p602 = por %p600, %p601
      %p603 = scmp.ne.s32.totalorder %s595, %s598
      %p604 = scmp.eq.s32.totalorder %s35, 0
      %p605 = por %p603, %p604
      %p606 = scmp.ne.s32.totalorder %s595, %s598
      %p607 = scmp.eq.s32.totalorder %s40, 1
      %p608 = por %p606, %p607
      %p609 = scmp.ne.s32.totalorder %s598, %s599
      %p610 = scmp.eq.s32.totalorder %s40, 0
      %p611 = por %p609, %p610
      %p612 = scmp.ne.s32.totalorder %s598, %s599
      %p613 = scmp.eq.s32.totalorder %s41, 1
      %p614 = por %p612, %p613
      %p616 = scmp.ne.s32.totalorder %s599, %s615
      %p617 = scmp.eq.s32.totalorder %s41, 0
      %p618 = por %p616, %p617
      %p619 = scmp.le.s32.totalorder 1, %s35
      %p620 = scmp.lt.s32.totalorder %s35, 3
      %p621 = pnand %p619, %p620
      %p622 = pneg %p621
      // Predicated region
      $region9: #{forward.1} parent=5 // pred_check
        _
      $region10: #{forward.1} parent=5 // pred_check_branch
        %624 = sbr.rel (%p621) target = $region12
      $region11: #{forward.1} parent=5 // pred_region
        %s625 = ssub.s32 %s35, 1
        // Predicated region
        $region13: #{forward.1} parent=11 // pred_check
          %p626 = pneg %p160
        $region14: #{forward.1} parent=11 // pred_check_branch
          %628 = sbr.rel (%p626) target = $region16
        $region15: #{forward.1} parent=11 // pred_region
          _
        $region16: #{forward.1} parent=11 // pred_fallthru
          _
        // Predicated region
        $region17: #{forward.1} parent=11 // pred_check
          %p629 = pneg %p181
        $region18: #{forward.1} parent=11 // pred_check_branch
          %631 = sbr.rel (%p629) target = $region20
        $region19: #{forward.1} parent=11 // pred_region
          _
        $region20: #{forward.1} parent=11 // pred_fallthru
          _
        // Predicated region
        $region21: #{forward.1} parent=11 // pred_check
          %p632 = pneg %p202
        $region22: #{forward.1} parent=11 // pred_check_branch
          %634 = sbr.rel (%p632) target = $region24
        $region23: #{forward.1} parent=11 // pred_region
          _
        $region24: #{forward.1} parent=11 // pred_fallthru
          _
        // Predicated region
        $region25: #{forward.1} parent=11 // pred_check
          %p635 = pneg %p223
        $region26: #{forward.1} parent=11 // pred_check_branch
          %637 = sbr.rel (%p635) target = $region28
        $region27: #{forward.1} parent=11 // pred_region
          _
        $region28: #{forward.1} parent=11 // pred_fallthru
          _
        // Predicated region
        $region29: #{forward.1} parent=11 // pred_check
          %p638 = pneg %p244
        $region30: #{forward.1} parent=11 // pred_check_branch
          %640 = sbr.rel (%p638) target = $region32
        $region31: #{forward.1} parent=11 // pred_region
          _
        $region32: #{forward.1} parent=11 // pred_fallthru
          _
        // Predicated region
        $region33: #{forward.1} parent=11 // pred_check
          %p641 = pneg %p265
        $region34: #{forward.1} parent=11 // pred_check_branch
          %643 = sbr.rel (%p641) target = $region36
        $region35: #{forward.1} parent=11 // pred_region
          _
        $region36: #{forward.1} parent=11 // pred_fallthru
          _
        // Predicated region
        $region37: #{forward.1} parent=11 // pred_check
          %p644 = pneg %p286
        $region38: #{forward.1} parent=11 // pred_check_branch
          %646 = sbr.rel (%p644) target = $region40
        $region39: #{forward.1} parent=11 // pred_region
          _
        $region40: #{forward.1} parent=11 // pred_fallthru
          _
        // Predicated region
        $region41: #{forward.1} parent=11 // pred_check
          %p647 = pneg %p307
        $region42: #{forward.1} parent=11 // pred_check_branch
          %649 = sbr.rel (%p647) target = $region44
        $region43: #{forward.1} parent=11 // pred_region
          _
        $region44: #{forward.1} parent=11 // pred_fallthru
          _
        // Predicated region
        $region45: #{forward.1} parent=11 // pred_check
          %p650 = pneg %p328
        $region46: #{forward.1} parent=11 // pred_check_branch
          %652 = sbr.rel (%p650) target = $region48
        $region47: #{forward.1} parent=11 // pred_region
          _
        $region48: #{forward.1} parent=11 // pred_fallthru
          _
        // Predicated region
        $region49: #{forward.1} parent=11 // pred_check
          %p653 = pneg %p349
        $region50: #{forward.1} parent=11 // pred_check_branch
          %655 = sbr.rel (%p653) target = $region52
        $region51: #{forward.1} parent=11 // pred_region
          _
        $region52: #{forward.1} parent=11 // pred_fallthru
          _
        // Predicated region
        $region53: #{forward.1} parent=11 // pred_check
          %p656 = pneg %p370
        $region54: #{forward.1} parent=11 // pred_check_branch
          %658 = sbr.rel (%p656) target = $region56
        $region55: #{forward.1} parent=11 // pred_region
          _
        $region56: #{forward.1} parent=11 // pred_fallthru
          _
        // Predicated region
        $region57: #{forward.1} parent=11 // pred_check
          %p659 = pneg %p391
        $region58: #{forward.1} parent=11 // pred_check_branch
          %661 = sbr.rel (%p659) target = $region60
        $region59: #{forward.1} parent=11 // pred_region
          _
        $region60: #{forward.1} parent=11 // pred_fallthru
          _
        // Predicated region
        $region61: #{forward.1} parent=11 // pred_check
          %p662 = pneg %p412
        $region62: #{forward.1} parent=11 // pred_check_branch
          %664 = sbr.rel (%p662) target = $region64
        $region63: #{forward.1} parent=11 // pred_region
          _
        $region64: #{forward.1} parent=11 // pred_fallthru
          _
        // Predicated region
        $region65: #{forward.1} parent=11 // pred_check
          %p665 = pneg %p433
        $region66: #{forward.1} parent=11 // pred_check_branch
          %667 = sbr.rel (%p665) target = $region68
        $region67: #{forward.1} parent=11 // pred_region
          _
        $region68: #{forward.1} parent=11 // pred_fallthru
          _
        // Predicated region
        $region69: #{forward.1} parent=11 // pred_check
          %p668 = pneg %p454
        $region70: #{forward.1} parent=11 // pred_check_branch
          %670 = sbr.rel (%p668) target = $region72
        $region71: #{forward.1} parent=11 // pred_region
          _
        $region72: #{forward.1} parent=11 // pred_fallthru
          _
        // Predicated region
        $region73: #{forward.1} parent=11 // pred_check
          %p671 = pneg %p475
        $region74: #{forward.1} parent=11 // pred_check_branch
          %673 = sbr.rel (%p671) target = $region76
        $region75: #{forward.1} parent=11 // pred_region
          _
        $region76: #{forward.1} parent=11 // pred_fallthru
          _
        // Predicated region
        $region77: #{forward.1} parent=11 // pred_check
          %p674 = pneg %p496
        $region78: #{forward.1} parent=11 // pred_check_branch
          %676 = sbr.rel (%p674) target = $region80
        $region79: #{forward.1} parent=11 // pred_region
          _
        $region80: #{forward.1} parent=11 // pred_fallthru
          _
        // Predicated region
        $region81: #{forward.1} parent=11 // pred_check
          %p677 = pneg %p517
        $region82: #{forward.1} parent=11 // pred_check_branch
          %679 = sbr.rel (%p677) target = $region84
        $region83: #{forward.1} parent=11 // pred_region
          _
        $region84: #{forward.1} parent=11 // pred_fallthru
          _
        // Predicated region
        $region85: #{forward.1} parent=11 // pred_check
          %p680 = pneg %p538
        $region86: #{forward.1} parent=11 // pred_check_branch
          %682 = sbr.rel (%p680) target = $region88
        $region87: #{forward.1} parent=11 // pred_region
          _
        $region88: #{forward.1} parent=11 // pred_fallthru
          _
        // Predicated region
        $region89: #{forward.1} parent=11 // pred_check
          %p683 = pneg %p559
        $region90: #{forward.1} parent=11 // pred_check_branch
          %685 = sbr.rel (%p683) target = $region92
        $region91: #{forward.1} parent=11 // pred_region
          _
        $region92: #{forward.1} parent=11 // pred_fallthru
          _
      $region12: #{forward.1} parent=5 // pred_fallthru
        _
      %p686 = scmp.lt.s32.totalorder %s35, 2
      // Predicated region
      $region93: #{forward.1} parent=5 // pred_check
        %p687 = pneg %p686
      $region94: #{forward.1} parent=5 // pred_check_branch
        %689 = sbr.rel (%p687) target = $region96
      $region95: #{forward.1} parent=5 // pred_region
        // Predicated region
        $region97: #{forward.1} parent=95 // pred_check
          %p690 = pneg %p55
        $region98: #{forward.1} parent=95 // pred_check_branch
          %692 = sbr.rel (%p690) target = $region100
        $region99: #{forward.1} parent=95 // pred_region
          %p693 = scmp.lt.s32.totalorder %s35, 1
          %s694 = scalar_select %p693, %s35, 1
          %s695 = smul.addr %s694, 8
          %s696 = scalar_lea.vmem %s0, %s695
        $region100: #{forward.1} parent=95 // pred_fallthru
          _
        // Predicated region
        $region101: #{forward.1} parent=95 // pred_check
          %p697 = pneg %p81
        $region102: #{forward.1} parent=95 // pred_check_branch
          %699 = sbr.rel (%p697) target = $region104
        $region103: #{forward.1} parent=95 // pred_region
          %p700 = scmp.lt.s32.totalorder %s35, 1
          %s701 = scalar_select %p700, %s35, 1
          %s702 = smul.addr %s701, 8
          %s703 = scalar_lea.vmem %s1, %s702
        $region104: #{forward.1} parent=95 // pred_fallthru
          _
        // Predicated region
        $region105: #{forward.1} parent=95 // pred_check
          %p704 = pneg %p107
        $region106: #{forward.1} parent=95 // pred_check_branch
          %706 = sbr.rel (%p704) target = $region108
        $region107: #{forward.1} parent=95 // pred_region
          %p707 = scmp.lt.s32.totalorder %s35, 1
          %s708 = scalar_select %p707, %s35, 1
          %s709 = scalar_lea.vmem %s2, %s708
        $region108: #{forward.1} parent=95 // pred_fallthru
          _
        // Predicated region
        $region109: #{forward.1} parent=95 // pred_check
          %p710 = pneg %p133
        $region110: #{forward.1} parent=95 // pred_check_branch
          %712 = sbr.rel (%p710) target = $region112
        $region111: #{forward.1} parent=95 // pred_region
          %p713 = scmp.lt.s32.totalorder %s35, 1
          %s714 = scalar_select %p713, %s35, 1
          %s715 = scalar_lea.vmem %s3, %s714
        $region112: #{forward.1} parent=95 // pred_fallthru
          _
      $region96: #{forward.1} parent=5 // pred_fallthru
        _
      %p716 = scmp.le.s32.totalorder 1, %s35
      %p717 = scmp.lt.s32.totalorder %s35, 3
      %p718 = pnand %p716, %p717
      %p719 = pneg %p718
      // Predicated region
      $region113: #{forward.1} parent=5 // pred_check
        _
      $region114: #{forward.1} parent=5 // pred_check_branch
        %721 = sbr.rel (%p718) target = $region116
      $region115: #{forward.1} parent=5 // pred_region
        %s722 = ssub.s32 %s35, 1
        %p723 = scmp.lt.s32.totalorder %s40, 1
        %s724 = scalar_select %p723, %s40, 1
        %s725 = smul.addr %s724, 8
        %s726 = scalar_lea.vmem %s0, %s725
        %p727 = pneg %p61
        %p728 = pneg %p58
        %p729 = scmp.lt.s32.totalorder %s40, 1
        %s730 = scalar_select %p729, %s40, 1
        %s731 = smul.addr %s730, 8
        %s732 = scalar_lea.vmem %s1, %s731
        %p733 = pneg %p87
        %p734 = pneg %p84
        %p735 = scmp.lt.s32.totalorder %s40, 1
        %s736 = scalar_select %p735, %s40, 1
        %s737 = scalar_lea.vmem %s2, %s736
        %p738 = pneg %p113
        %p739 = pneg %p110
        %p740 = scmp.lt.s32.totalorder %s40, 1
        %s741 = scalar_select %p740, %s40, 1
        %s742 = scalar_lea.vmem %s3, %s741
        %p743 = pneg %p139
        %p744 = pneg %p136
        %p745 = pneg %p160
        %p746 = pneg %p157
        %p747 = pneg %p181
        %p748 = pneg %p178
        %p749 = pneg %p202
        %p750 = pneg %p199
        %p751 = pneg %p223
        %p752 = pneg %p220
        %p753 = pneg %p244
        %p754 = pneg %p241
        %p755 = pneg %p265
        %p756 = pneg %p262
        %p757 = pneg %p286
        %p758 = pneg %p283
        %p759 = pneg %p307
        %p760 = pneg %p304
        %p761 = pneg %p328
        %p762 = pneg %p325
        %p763 = pneg %p349
        %p764 = pneg %p346
        %p765 = pneg %p370
        %p766 = pneg %p367
        %p767 = pneg %p391
        %p768 = pneg %p388
        %p769 = pneg %p412
        %p770 = pneg %p409
        %p771 = pneg %p433
        %p772 = pneg %p430
        %p773 = pneg %p454
        %p774 = pneg %p451
        %p775 = pneg %p475
        %p776 = pneg %p472
        %p777 = pneg %p496
        %p778 = pneg %p493
        %p779 = pneg %p517
        %p780 = pneg %p514
        %p781 = pneg %p538
        %p782 = pneg %p535
        %p783 = pneg %p559
        %p784 = pneg %p556
        %p785 = pneg %p585
        %p786 = pneg %p582
        %s787 = sand.u32 %s572, 1
        %s788 = scalar_lea.sflag [#allocation3], %s787
        %s789 = sand.u32 %s572, 1
        %s790 = smul.addr %s789, 8
        %s791 = scalar_lea.vmem [#allocation2], %s790
        %p792 = pneg %p611
        %p793 = pneg %p608
        %p794 = scmp.lt.s32.totalorder %s40, 1
        %s795 = scalar_select %p794, %s40, 1
        %s796 = smul.addr %s795, 8
        %s797 = scalar_lea.vmem %s25, %s796
        %p798 = scmp.lt.s32.totalorder %s40, 1
        %s799 = scalar_select %p798, %s40, 1
        %s800 = smul.addr %s799, 8
        %s801 = scalar_lea.vmem %s0, %s800
        %p802 = scmp.lt.s32.totalorder %s40, 1
        %s803 = scalar_select %p802, %s40, 1
        %s804 = smul.addr %s803, 8
        %s805 = scalar_lea.vmem %s1, %s804
        %p806 = scmp.lt.s32.totalorder %s40, 1
        %s807 = scalar_select %p806, %s40, 1
        %s808 = scalar_lea.vmem %s2, %s807
        %p809 = scmp.lt.s32.totalorder %s40, 1
        %s810 = scalar_select %p809, %s40, 1
        %s811 = scalar_lea.vmem %s3, %s810
        %p812 = scmp.lt.s32.totalorder %s40, 1
        %s813 = scalar_select %p812, %s40, 1
        %s814 = smul.addr %s813, 8
        %s815 = scalar_lea.vmem %s25, %s814
        %v816 = vld [vmem:[%s801] sm:$0xff]
        %v817 = vld [vmem:[%s805] sm:$0xff]
        %v818 = vld [vmem:[%s808] sm:$0x1]
        %v819 = vld [vmem:[%s811] sm:$0x1]
        %vm820 = vcmp.eq.f32.partialorder %v818, 0.0
        %vm821 = vcmp.eq.f32.partialorder %v818, 1.0
        %vm822 = vmor %vm820, %vm821
        %v823 = vsel %vm822, -1e+30, 0.0
        %v825 = vlaneseq
        %v826 = vshrl.u32 %v825, 7
        %v827 = vsub.s32 0, %v826
        %v828 = vrot.slane %v823, %v827
        %v830 = vlaneseq
        %v831 = vand.u32 %v830, 127
        %v832 = vcvt.s32.f32 %v831
        %v834 = vlaneseq
        %v835 = vshrl.u32 %v834, 7
        %v836 = vsub.s32 0, %v835
        %v837 = vrot.slane %v819, %v836
        %v839 = vld [vmem:[%s23] sm:$0x1]
        %v841 = vlaneseq
        %v842 = vshrl.u32 %v841, 7
        %v843 = vsub.s32 0, %v842
        %v844 = vrot.slane %v839, %v843
        %847 = vset.pattern.permute.xlu0 0
        %848 = vperm.xlu0 %847, %v816
        %v849 = vpop.permute.xlu0 %848
        %vm851 = vcmp.eq.f32.partialorder %v849, %v832
        %v852 = vsel %vm851, 1, 0
        %v853 = vcvt.s32.f32 %v852
        %855 = vset.pattern.permute.xlu0 0
        %856 = vperm.xlu0 %855, %v817
        %v857 = vpop.permute.xlu0 %856
        %vm859 = vcmp.eq.f32.partialorder %v857, %v832
        %v860 = vsel %vm859, 1, 0
        %v861 = vcvt.s32.f32 %v860
        %v862 = vld [vmem:[%s4] sm:$0xff]
        %v863 = vld [vmem:[%s4 + $0x8] sm:$0xff]
        %v864 = vld [vmem:[%s4 + $0x10] sm:$0xff]
        %v865 = vld [vmem:[%s4 + $0x18] sm:$0xff]
        %v866 = vld [vmem:[%s4 + $0x20] sm:$0xff]
        %v867 = vld [vmem:[%s4 + $0x28] sm:$0xff]
        %v868 = vld [vmem:[%s4 + $0x30] sm:$0x3]
        %vm869 = vcmask 408576
        %v871 = vsel %vm869, %v853, 0
        %vm873 = vcmask 1041408
        %v875 = vsel %vm873, %v868, 0
        %877 = vmatprep.subr.mxu0 0.0
        %878 = vmatpush1.msra.mxu0 0.0
        %879 = vmatprep.subr.mxu0 0.0
        %880 = vmatpush1.msra.mxu0 0.0
        %881 = vmatprep.subr.mxu0 0.0
        %882 = vmatpush1.msra.mxu0 0.0
        %883 = vmatprep.subr.mxu0 0.0
        %884 = vmatpush1.msra.mxu0 0.0
        %885 = vmatprep.subr.mxu0 0.0
        %886 = vmatpush1.msra.mxu0 0.0
        %887 = vmatprep.subr.mxu0 0.0
        %888 = vmatpush1.msra.mxu0 0.0
        %889 = vmatprep.subr.mxu0 0.0
        %890 = vmatpush1.msra.mxu0 0.0
        %891 = vmatprep.subr.mxu0 0.0
        %892 = vmatpush1.msra.mxu0 0.0
        %893 = vmatprep.subr.mxu0 0.0
        %894 = vmatpush1.msra.mxu0 0.0
        %895 = vmatprep.subr.mxu0 0.0
        %896 = vmatpush1.msra.mxu0 %v875
        %897 = vmatprep.subr.mxu0 0.0
        %898 = vmatpush1.msra.mxu0 %v867
        %899 = vmatprep.subr.mxu0 0.0
        %900 = vmatpush1.msra.mxu0 %v866
        %901 = vmatprep.subr.mxu0 0.0
        %902 = vmatpush1.msra.mxu0 %v865
        %903 = vmatprep.subr.mxu0 0.0
        %904 = vmatpush1.msra.mxu0 %v864
        %905 = vmatprep.subr.mxu0 0.0
        %906 = vmatpush1.msra.mxu0 %v863
        %907 = vmatprep.subr.mxu0 0.0
        %908 = vmatpush1.msra.mxu0 %v862
        %909 = vmatprep.subr.mxu0 0.0
        %910 = vmatpush2.msra.mxu0 0.0
        %911 = vmatprep.subr.mxu0 0.0
        %912 = vmatpush2.msra.mxu0 0.0
        %913 = vmatprep.subr.mxu0 0.0
        %914 = vmatpush2.msra.mxu0 0.0
        %915 = vmatprep.subr.mxu0 0.0
        %916 = vmatpush2.msra.mxu0 0.0
        %917 = vmatprep.subr.mxu0 0.0
        %918 = vmatpush2.msra.mxu0 0.0
        %919 = vmatprep.subr.mxu0 0.0
        %920 = vmatpush2.msra.mxu0 0.0
        %921 = vmatprep.subr.mxu0 0.0
        %922 = vmatpush2.msra.mxu0 0.0
        %923 = vmatprep.subr.mxu0 0.0
        %924 = vmatpush2.msra.mxu0 0.0
        %925 = vmatprep.subr.mxu0 0.0
        %926 = vmatpush2.msra.mxu0 0.0
        %927 = vmatprep.subr.mxu0 0.0
        %928 = vmatpush2.msra.mxu0 0.0
        %929 = vmatprep.subr.mxu0 0.0
        %930 = vmatpush2.msra.mxu0 0.0
        %931 = vmatprep.subr.mxu0 0.0
        %932 = vmatpush2.msra.mxu0 0.0
        %933 = vmatprep.subr.mxu0 0.0
        %934 = vmatpush2.msra.mxu0 0.0
        %935 = vmatprep.subr.mxu0 0.0
        %936 = vmatpush2.msra.mxu0 0.0
        %937 = vmatprep.subr.mxu0 0.0
        %938 = vmatpush2.msra.mxu0 0.0
        %939 = vmatprep.subr.mxu0 0.0
        %940 = vmatpush2.msra.mxu0 0.0
        %941 = vmatprep.mubr.f32.mxu0 0.0
        %942 = vmatmul.mubr.f32.gmra.mxu0 %v871
        %v943 = vpop.f32.mrf.mxu0
        %v944 = vadd.f32 %v837, %v943
        %v945 = vpop.f32.mrf.mxu0
        %946 = vdwg.mxu0
        %v947 = vld [vmem:[%s5] sm:$0xff]
        %v948 = vld [vmem:[%s5 + $0x8] sm:$0x3]
        %vm949 = vcmask 80896
        %v951 = vsel %vm949, %v861, 0
        %v954 = vsel %vm873, %v948, 0
        %956 = vmatprep.subr.mxu0 0.0
        %957 = vmatpush1.msra.mxu0 0.0
        %958 = vmatprep.subr.mxu0 0.0
        %959 = vmatpush1.msra.mxu0 0.0
        %960 = vmatprep.subr.mxu0 0.0
        %961 = vmatpush1.msra.mxu0 0.0
        %962 = vmatprep.subr.mxu0 0.0
        %963 = vmatpush1.msra.mxu0 0.0
        %964 = vmatprep.subr.mxu0 0.0
        %965 = vmatpush1.msra.mxu0 0.0
        %966 = vmatprep.subr.mxu0 0.0
        %967 = vmatpush1.msra.mxu0 0.0
        %968 = vmatprep.subr.mxu0 0.0
        %969 = vmatpush1.msra.mxu0 0.0
        %970 = vmatprep.subr.mxu0 0.0
        %971 = vmatpush1.msra.mxu0 0.0
        %972 = vmatprep.subr.mxu0 0.0
        %973 = vmatpush1.msra.mxu0 0.0
        %974 = vmatprep.subr.mxu0 0.0
        %975 = vmatpush1.msra.mxu0 0.0
        %976 = vmatprep.subr.mxu0 0.0
        %977 = vmatpush1.msra.mxu0 0.0
        %978 = vmatprep.subr.mxu0 0.0
        %979 = vmatpush1.msra.mxu0 0.0
        %980 = vmatprep.subr.mxu0 0.0
        %981 = vmatpush1.msra.mxu0 0.0
        %982 = vmatprep.subr.mxu0 0.0
        %983 = vmatpush1.msra.mxu0 0.0
        %984 = vmatprep.subr.mxu0 0.0
        %985 = vmatpush1.msra.mxu0 %v954
        %986 = vmatprep.subr.mxu0 0.0
        %987 = vmatpush1.msra.mxu0 %v947
        %988 = vmatprep.subr.mxu0 0.0
        %989 = vmatpush2.msra.mxu0 0.0
        %990 = vmatprep.subr.mxu0 0.0
        %991 = vmatpush2.msra.mxu0 0.0
        %992 = vmatprep.subr.mxu0 0.0
        %993 = vmatpush2.msra.mxu0 0.0
        %994 = vmatprep.subr.mxu0 0.0
        %995 = vmatpush2.msra.mxu0 0.0
        %996 = vmatprep.subr.mxu0 0.0
        %997 = vmatpush2.msra.mxu0 0.0
        %998 = vmatprep.subr.mxu0 0.0
        %999 = vmatpush2.msra.mxu0 0.0
        %1000 = vmatprep.subr.mxu0 0.0
        %1001 = vmatpush2.msra.mxu0 0.0
        %1002 = vmatprep.subr.mxu0 0.0
        %1003 = vmatpush2.msra.mxu0 0.0
        %1004 = vmatprep.subr.mxu0 0.0
        %1005 = vmatpush2.msra.mxu0 0.0
        %1006 = vmatprep.subr.mxu0 0.0
        %1007 = vmatpush2.msra.mxu0 0.0
        %1008 = vmatprep.subr.mxu0 0.0
        %1009 = vmatpush2.msra.mxu0 0.0
        %1010 = vmatprep.subr.mxu0 0.0
        %1011 = vmatpush2.msra.mxu0 0.0
        %1012 = vmatprep.subr.mxu0 0.0
        %1013 = vmatpush2.msra.mxu0 0.0
        %1014 = vmatprep.subr.mxu0 0.0
        %1015 = vmatpush2.msra.mxu0 0.0
        %1016 = vmatprep.subr.mxu0 0.0
        %1017 = vmatpush2.msra.mxu0 0.0
        %1018 = vmatprep.subr.mxu0 0.0
        %1019 = vmatpush2.msra.mxu0 0.0
        %1020 = vmatprep.mubr.f32.mxu0 0.0
        %1021 = vmatmul.mubr.f32.gmra.mxu0 %v951
        %v1022 = vpop.f32.mrf.mxu0
        %v1023 = vadd.f32 %v837, %v1022
        %v1024 = vpop.f32.mrf.mxu0
        %1025 = vdwg.mxu0
        %v1026 = vld [vmem:[%s6] sm:$0xff]
        %v1027 = vld [vmem:[%s6 + $0x8] sm:$0xff]
        %v1028 = vld [vmem:[%s6 + $0x10] sm:$0xff]
        %v1029 = vld [vmem:[%s6 + $0x18] sm:$0xff]
        %v1030 = vld [vmem:[%s7] sm:$0x1]
        %v1032 = vlaneseq
        %v1033 = vshrl.u32 %v1032, 7
        %v1034 = vsub.s32 0, %v1033
        %v1035 = vrot.slane %v1030, %v1034
        %vm1037 = vcmask 261120
        %v1039 = vsel %vm1037, %v944, 0
        %1041 = vmatprep.subr.mxu0 0.0
        %1042 = vmatpush1.msra.mxu0 0.0
        %1043 = vmatprep.subr.mxu0 0.0
        %1044 = vmatpush1.msra.mxu0 0.0
        %1045 = vmatprep.subr.mxu0 0.0
        %1046 = vmatpush1.msra.mxu0 0.0
        %1047 = vmatprep.subr.mxu0 0.0
        %1048 = vmatpush1.msra.mxu0 0.0
        %1049 = vmatprep.subr.mxu0 0.0
        %1050 = vmatpush1.msra.mxu0 0.0
        %1051 = vmatprep.subr.mxu0 0.0
        %1052 = vmatpush1.msra.mxu0 0.0
        %1053 = vmatprep.subr.mxu0 0.0
        %1054 = vmatpush1.msra.mxu0 0.0
        %1055 = vmatprep.subr.mxu0 0.0
        %1056 = vmatpush1.msra.mxu0 0.0
        %1057 = vmatprep.subr.mxu0 0.0
        %1058 = vmatpush1.msra.mxu0 0.0
        %1059 = vmatprep.subr.mxu0 0.0
        %1060 = vmatpush1.msra.mxu0 0.0
        %1061 = vmatprep.subr.mxu0 0.0
        %1062 = vmatpush1.msra.mxu0 0.0
        %1063 = vmatprep.subr.mxu0 0.0
        %1064 = vmatpush1.msra.mxu0 0.0
        %1065 = vmatprep.subr.mxu0 0.0
        %1066 = vmatpush1.msra.mxu0 %v1029
        %1067 = vmatprep.subr.mxu0 0.0
        %1068 = vmatpush1.msra.mxu0 %v1028
        %1069 = vmatprep.subr.mxu0 0.0
        %1070 = vmatpush1.msra.mxu0 %v1027
        %1071 = vmatprep.subr.mxu0 0.0
        %1072 = vmatpush1.msra.mxu0 %v1026
        %1073 = vmatprep.subr.mxu0 0.0
        %1074 = vmatpush2.msra.mxu0 0.0
        %1075 = vmatprep.subr.mxu0 0.0
        %1076 = vmatpush2.msra.mxu0 0.0
        %1077 = vmatprep.subr.mxu0 0.0
        %1078 = vmatpush2.msra.mxu0 0.0
        %1079 = vmatprep.subr.mxu0 0.0
        %1080 = vmatpush2.msra.mxu0 0.0
        %1081 = vmatprep.subr.mxu0 0.0
        %1082 = vmatpush2.msra.mxu0 0.0
        %1083 = vmatprep.subr.mxu0 0.0
        %1084 = vmatpush2.msra.mxu0 0.0
        %1085 = vmatprep.subr.mxu0 0.0
        %1086 = vmatpush2.msra.mxu0 0.0
        %1087 = vmatprep.subr.mxu0 0.0
        %1088 = vmatpush2.msra.mxu0 0.0
        %1089 = vmatprep.subr.mxu0 0.0
        %1090 = vmatpush2.msra.mxu0 0.0
        %1091 = vmatprep.subr.mxu0 0.0
        %1092 = vmatpush2.msra.mxu0 0.0
        %1093 = vmatprep.subr.mxu0 0.0
        %1094 = vmatpush2.msra.mxu0 0.0
        %1095 = vmatprep.subr.mxu0 0.0
        %1096 = vmatpush2.msra.mxu0 0.0
        %1097 = vmatprep.subr.mxu0 0.0
        %1098 = vmatpush2.msra.mxu0 0.0
        %1099 = vmatprep.subr.mxu0 0.0
        %1100 = vmatpush2.msra.mxu0 0.0
        %1101 = vmatprep.subr.mxu0 0.0
        %1102 = vmatpush2.msra.mxu0 0.0
        %1103 = vmatprep.subr.mxu0 0.0
        %1104 = vmatpush2.msra.mxu0 0.0
        %1105 = vmatprep.mubr.f32.mxu0 0.0
        %1106 = vmatmul.mubr.f32.gmra.mxu0 %v1039
        %v1107 = vpop.f32.mrf.mxu0
        %v1108 = vadd.f32 %v1035, %v1107
        %v1109 = vpop.f32.mrf.mxu0
        %1110 = vdwg.mxu0
        %1112 = vrot.lane.b32.xlu0 %v1108, 96
        %v1113 = vpop.permute.xlu0 %1112
        %vm1114 = vcmask 64512
        %v1115 = vsel %vm1114, %v1108, 0
        %v1117 = vsel %vm1114, %v1113, 0
        %1119 = vmatprep.subr.mxu0 0.0
        %1120 = vmatpush1.xpose.msra.mxu0 0.0
        %1121 = vmatprep.subr.mxu0 0.0
        %1122 = vmatpush1.xpose.msra.mxu0 0.0
        %1123 = vmatprep.subr.mxu0 0.0
        %1124 = vmatpush1.xpose.msra.mxu0 0.0
        %1125 = vmatprep.subr.mxu0 0.0
        %1126 = vmatpush1.xpose.msra.mxu0 0.0
        %1127 = vmatprep.subr.mxu0 0.0
        %1128 = vmatpush1.xpose.msra.mxu0 0.0
        %1129 = vmatprep.subr.mxu0 0.0
        %1130 = vmatpush1.xpose.msra.mxu0 0.0
        %1131 = vmatprep.subr.mxu0 0.0
        %1132 = vmatpush1.xpose.msra.mxu0 0.0
        %1133 = vmatprep.subr.mxu0 0.0
        %1134 = vmatpush1.xpose.msra.mxu0 0.0
        %1135 = vmatprep.subr.mxu0 0.0
        %1136 = vmatpush1.xpose.msra.mxu0 0.0
        %1137 = vmatprep.subr.mxu0 0.0
        %1138 = vmatpush1.xpose.msra.mxu0 0.0
        %1139 = vmatprep.subr.mxu0 0.0
        %1140 = vmatpush1.xpose.msra.mxu0 0.0
        %1141 = vmatprep.subr.mxu0 0.0
        %1142 = vmatpush1.xpose.msra.mxu0 0.0
        %1143 = vmatprep.subr.mxu0 0.0
        %1144 = vmatpush1.xpose.msra.mxu0 0.0
        %1145 = vmatprep.subr.mxu0 0.0
        %1146 = vmatpush1.xpose.msra.mxu0 0.0
        %1147 = vmatprep.subr.mxu0 0.0
        %1148 = vmatpush1.xpose.msra.mxu0 0.0
        %1149 = vmatprep.subr.mxu0 0.0
        %1150 = vmatpush1.xpose.msra.mxu0 %v1117
        %1151 = vmatprep.subr.mxu0 0.0
        %1152 = vmatpush2.xpose.msra.mxu0 0.0
        %1153 = vmatprep.subr.mxu0 0.0
        %1154 = vmatpush2.xpose.msra.mxu0 0.0
        %1155 = vmatprep.subr.mxu0 0.0
        %1156 = vmatpush2.xpose.msra.mxu0 0.0
        %1157 = vmatprep.subr.mxu0 0.0
        %1158 = vmatpush2.xpose.msra.mxu0 0.0
        %1159 = vmatprep.subr.mxu0 0.0
        %1160 = vmatpush2.xpose.msra.mxu0 0.0
        %1161 = vmatprep.subr.mxu0 0.0
        %1162 = vmatpush2.xpose.msra.mxu0 0.0
        %1163 = vmatprep.subr.mxu0 0.0
        %1164 = vmatpush2.xpose.msra.mxu0 0.0
        %1165 = vmatprep.subr.mxu0 0.0
        %1166 = vmatpush2.xpose.msra.mxu0 0.0
        %1167 = vmatprep.subr.mxu0 0.0
        %1168 = vmatpush2.xpose.msra.mxu0 0.0
        %1169 = vmatprep.subr.mxu0 0.0
        %1170 = vmatpush2.xpose.msra.mxu0 0.0
        %1171 = vmatprep.subr.mxu0 0.0
        %1172 = vmatpush2.xpose.msra.mxu0 0.0
        %1173 = vmatprep.subr.mxu0 0.0
        %1174 = vmatpush2.xpose.msra.mxu0 0.0
        %1175 = vmatprep.subr.mxu0 0.0
        %1176 = vmatpush2.xpose.msra.mxu0 0.0
        %1177 = vmatprep.subr.mxu0 0.0
        %1178 = vmatpush2.xpose.msra.mxu0 0.0
        %1179 = vmatprep.subr.mxu0 0.0
        %1180 = vmatpush2.xpose.msra.mxu0 0.0
        %1181 = vmatprep.subr.mxu0 0.0
        %1182 = vmatpush2.xpose.msra.mxu0 0.0
        %1183 = vmatprep.mubr.f32.mxu0 0.0
        %1184 = vmatmul.mubr.f32.gmra.mxu0 %v1115
        %v1185 = vpop.f32.mrf.mxu0
        %v1186 = vadd.f32 %v828, %v1185
        %v1187 = vpop.f32.mrf.mxu0
        %1188 = vdwg.mxu0
        %v1189 = vsel %vm1114, %v1186, -inf
        %1190 = vmax.xlane.f32.xlu0 %v1189
        %v1191 = vpop.xlane.xlu0 %1190
        %v1192 = vsub.f32 %v1186, %v1191
        %v1193 = vmul.f32 %v1192, 1.442695
        %v1194 = vpow.pop %v1193
        %v1195 = vsel %vm1114, %v1194, 0.0
        %1196 = vadd.xlane.f32.xlu0 %v1195
        %v1197 = vpop.xlane.xlu0 %1196
        %v1198 = vrcp.pop %v1197
        %v1199 = vmul.f32 %v1194, %v1198
        %1200 = vrot.lane.b32.xlu0 %v1108, 64
        %v1201 = vpop.permute.xlu0 %1200
        %v1204 = vsel %vm1114, %v1199, 0
        %1206 = vmatprep.subr.mxu0 0.0
        %1207 = vmatpush1.msra.mxu0 0.0
        %1208 = vmatprep.subr.mxu0 0.0
        %1209 = vmatpush1.msra.mxu0 0.0
        %1210 = vmatprep.subr.mxu0 0.0
        %1211 = vmatpush1.msra.mxu0 0.0
        %1212 = vmatprep.subr.mxu0 0.0
        %1213 = vmatpush1.msra.mxu0 0.0
        %1214 = vmatprep.subr.mxu0 0.0
        %1215 = vmatpush1.msra.mxu0 0.0
        %1216 = vmatprep.subr.mxu0 0.0
        %1217 = vmatpush1.msra.mxu0 0.0
        %1218 = vmatprep.subr.mxu0 0.0
        %1219 = vmatpush1.msra.mxu0 0.0
        %1220 = vmatprep.subr.mxu0 0.0
        %1221 = vmatpush1.msra.mxu0 0.0
        %1222 = vmatprep.subr.mxu0 0.0
        %1223 = vmatpush1.msra.mxu0 0.0
        %1224 = vmatprep.subr.mxu0 0.0
        %1225 = vmatpush1.msra.mxu0 0.0
        %1226 = vmatprep.subr.mxu0 0.0
        %1227 = vmatpush1.msra.mxu0 0.0
        %1228 = vmatprep.subr.mxu0 0.0
        %1229 = vmatpush1.msra.mxu0 0.0
        %1230 = vmatprep.subr.mxu0 0.0
        %1231 = vmatpush1.msra.mxu0 0.0
        %1232 = vmatprep.subr.mxu0 0.0
        %1233 = vmatpush1.msra.mxu0 0.0
        %1234 = vmatprep.subr.mxu0 0.0
        %1235 = vmatpush1.msra.mxu0 0.0
        %1236 = vmatprep.subr.mxu0 0.0
        %1237 = vmatpush1.msra.mxu0 %v1201
        %1238 = vmatprep.subr.mxu0 0.0
        %1239 = vmatpush2.msra.mxu0 0.0
        %1240 = vmatprep.subr.mxu0 0.0
        %1241 = vmatpush2.msra.mxu0 0.0
        %1242 = vmatprep.subr.mxu0 0.0
        %1243 = vmatpush2.msra.mxu0 0.0
        %1244 = vmatprep.subr.mxu0 0.0
        %1245 = vmatpush2.msra.mxu0 0.0
        %1246 = vmatprep.subr.mxu0 0.0
        %1247 = vmatpush2.msra.mxu0 0.0
        %1248 = vmatprep.subr.mxu0 0.0
        %1249 = vmatpush2.msra.mxu0 0.0
        %1250 = vmatprep.subr.mxu0 0.0
        %1251 = vmatpush2.msra.mxu0 0.0
        %1252 = vmatprep.subr.mxu0 0.0
        %1253 = vmatpush2.msra.mxu0 0.0
        %1254 = vmatprep.subr.mxu0 0.0
        %1255 = vmatpush2.msra.mxu0 0.0
        %1256 = vmatprep.subr.mxu0 0.0
        %1257 = vmatpush2.msra.mxu0 0.0
        %1258 = vmatprep.subr.mxu0 0.0
        %1259 = vmatpush2.msra.mxu0 0.0
        %1260 = vmatprep.subr.mxu0 0.0
        %1261 = vmatpush2.msra.mxu0 0.0
        %1262 = vmatprep.subr.mxu0 0.0
        %1263 = vmatpush2.msra.mxu0 0.0
        %1264 = vmatprep.subr.mxu0 0.0
        %1265 = vmatpush2.msra.mxu0 0.0
        %1266 = vmatprep.subr.mxu0 0.0
        %1267 = vmatpush2.msra.mxu0 0.0
        %1268 = vmatprep.subr.mxu0 0.0
        %1269 = vmatpush2.msra.mxu0 0.0
        %1270 = vmatprep.mubr.f32.mxu0 0.0
        %1271 = vmatmul.mubr.f32.gmra.mxu0 %v1204
        %v1272 = vpop.f32.mrf.mxu0
        %v1273 = vadd.f32 0.0, %v1272
        %v1274 = vpop.f32.mrf.mxu0
        %1275 = vdwg.mxu0
        %1276 = vrot.lane.b32.xlu0 %v1108, 120
        %v1277 = vpop.permute.xlu0 %1276
        %1278 = vrot.lane.b32.xlu0 %v1108, 88
        %v1279 = vpop.permute.xlu0 %1278
        %v1280 = vsel %vm1114, %v1277, 0
        %v1282 = vsel %vm1114, %v1279, 0
        %1284 = vmatprep.subr.mxu0 0.0
        %1285 = vmatpush1.xpose.msra.mxu0 0.0
        %1286 = vmatprep.subr.mxu0 0.0
        %1287 = vmatpush1.xpose.msra.mxu0 0.0
        %1288 = vmatprep.subr.mxu0 0.0
        %1289 = vmatpush1.xpose.msra.mxu0 0.0
        %1290 = vmatprep.subr.mxu0 0.0
        %1291 = vmatpush1.xpose.msra.mxu0 0.0
        %1292 = vmatprep.subr.mxu0 0.0
        %1293 = vmatpush1.xpose.msra.mxu0 0.0
        %1294 = vmatprep.subr.mxu0 0.0
        %1295 = vmatpush1.xpose.msra.mxu0 0.0
        %1296 = vmatprep.subr.mxu0 0.0
        %1297 = vmatpush1.xpose.msra.mxu0 0.0
        %1298 = vmatprep.subr.mxu0 0.0
        %1299 = vmatpush1.xpose.msra.mxu0 0.0
        %1300 = vmatprep.subr.mxu0 0.0
        %1301 = vmatpush1.xpose.msra.mxu0 0.0
        %1302 = vmatprep.subr.mxu0 0.0
        %1303 = vmatpush1.xpose.msra.mxu0 0.0
        %1304 = vmatprep.subr.mxu0 0.0
        %1305 = vmatpush1.xpose.msra.mxu0 0.0
        %1306 = vmatprep.subr.mxu0 0.0
        %1307 = vmatpush1.xpose.msra.mxu0 0.0
        %1308 = vmatprep.subr.mxu0 0.0
        %1309 = vmatpush1.xpose.msra.mxu0 0.0
        %1310 = vmatprep.subr.mxu0 0.0
        %1311 = vmatpush1.xpose.msra.mxu0 0.0
        %1312 = vmatprep.subr.mxu0 0.0
        %1313 = vmatpush1.xpose.msra.mxu0 0.0
        %1314 = vmatprep.subr.mxu0 0.0
        %1315 = vmatpush1.xpose.msra.mxu0 %v1282
        %1316 = vmatprep.subr.mxu0 0.0
        %1317 = vmatpush2.xpose.msra.mxu0 0.0
        %1318 = vmatprep.subr.mxu0 0.0
        %1319 = vmatpush2.xpose.msra.mxu0 0.0
        %1320 = vmatprep.subr.mxu0 0.0
        %1321 = vmatpush2.xpose.msra.mxu0 0.0
        %1322 = vmatprep.subr.mxu0 0.0
        %1323 = vmatpush2.xpose.msra.mxu0 0.0
        %1324 = vmatprep.subr.mxu0 0.0
        %1325 = vmatpush2.xpose.msra.mxu0 0.0
        %1326 = vmatprep.subr.mxu0 0.0
        %1327 = vmatpush2.xpose.msra.mxu0 0.0
        %1328 = vmatprep.subr.mxu0 0.0
        %1329 = vmatpush2.xpose.msra.mxu0 0.0
        %1330 = vmatprep.subr.mxu0 0.0
        %1331 = vmatpush2.xpose.msra.mxu0 0.0
        %1332 = vmatprep.subr.mxu0 0.0
        %1333 = vmatpush2.xpose.msra.mxu0 0.0
        %1334 = vmatprep.subr.mxu0 0.0
        %1335 = vmatpush2.xpose.msra.mxu0 0.0
        %1336 = vmatprep.subr.mxu0 0.0
        %1337 = vmatpush2.xpose.msra.mxu0 0.0
        %1338 = vmatprep.subr.mxu0 0.0
        %1339 = vmatpush2.xpose.msra.mxu0 0.0
        %1340 = vmatprep.subr.mxu0 0.0
        %1341 = vmatpush2.xpose.msra.mxu0 0.0
        %1342 = vmatprep.subr.mxu0 0.0
        %1343 = vmatpush2.xpose.msra.mxu0 0.0
        %1344 = vmatprep.subr.mxu0 0.0
        %1345 = vmatpush2.xpose.msra.mxu0 0.0
        %1346 = vmatprep.subr.mxu0 0.0
        %1347 = vmatpush2.xpose.msra.mxu0 0.0
        %1348 = vmatprep.mubr.f32.mxu0 0.0
        %1349 = vmatmul.mubr.f32.gmra.mxu0 %v1280
        %v1350 = vpop.f32.mrf.mxu0
        %v1351 = vadd.f32 %v828, %v1350
        %v1352 = vpop.f32.mrf.mxu0
        %1353 = vdwg.mxu0
        %v1354 = vsel %vm1114, %v1351, -inf
        %1355 = vmax.xlane.f32.xlu0 %v1354
        %v1356 = vpop.xlane.xlu0 %1355
        %v1357 = vsub.f32 %v1351, %v1356
        %v1358 = vmul.f32 %v1357, 1.442695
        %v1359 = vpow.pop %v1358
        %v1360 = vsel %vm1114, %v1359, 0.0
        %1361 = vadd.xlane.f32.xlu0 %v1360
        %v1362 = vpop.xlane.xlu0 %1361
        %v1363 = vrcp.pop %v1362
        %v1364 = vmul.f32 %v1359, %v1363
        %1365 = vrot.lane.b32.xlu0 %v1108, 56
        %v1366 = vpop.permute.xlu0 %1365
        %v1369 = vsel %vm1114, %v1364, 0
        %1371 = vmatprep.subr.mxu0 0.0
        %1372 = vmatpush1.msra.mxu0 0.0
        %1373 = vmatprep.subr.mxu0 0.0
        %1374 = vmatpush1.msra.mxu0 0.0
        %1375 = vmatprep.subr.mxu0 0.0
        %1376 = vmatpush1.msra.mxu0 0.0
        %1377 = vmatprep.subr.mxu0 0.0
        %1378 = vmatpush1.msra.mxu0 0.0
        %1379 = vmatprep.subr.mxu0 0.0
        %1380 = vmatpush1.msra.mxu0 0.0
        %1381 = vmatprep.subr.mxu0 0.0
        %1382 = vmatpush1.msra.mxu0 0.0
        %1383 = vmatprep.subr.mxu0 0.0
        %1384 = vmatpush1.msra.mxu0 0.0
        %1385 = vmatprep.subr.mxu0 0.0
        %1386 = vmatpush1.msra.mxu0 0.0
        %1387 = vmatprep.subr.mxu0 0.0
        %1388 = vmatpush1.msra.mxu0 0.0
        %1389 = vmatprep.subr.mxu0 0.0
        %1390 = vmatpush1.msra.mxu0 0.0
        %1391 = vmatprep.subr.mxu0 0.0
        %1392 = vmatpush1.msra.mxu0 0.0
        %1393 = vmatprep.subr.mxu0 0.0
        %1394 = vmatpush1.msra.mxu0 0.0
        %1395 = vmatprep.subr.mxu0 0.0
        %1396 = vmatpush1.msra.mxu0 0.0
        %1397 = vmatprep.subr.mxu0 0.0
        %1398 = vmatpush1.msra.mxu0 0.0
        %1399 = vmatprep.subr.mxu0 0.0
        %1400 = vmatpush1.msra.mxu0 0.0
        %1401 = vmatprep.subr.mxu0 0.0
        %1402 = vmatpush1.msra.mxu0 %v1366
        %1403 = vmatprep.subr.mxu0 0.0
        %1404 = vmatpush2.msra.mxu0 0.0
        %1405 = vmatprep.subr.mxu0 0.0
        %1406 = vmatpush2.msra.mxu0 0.0
        %1407 = vmatprep.subr.mxu0 0.0
        %1408 = vmatpush2.msra.mxu0 0.0
        %1409 = vmatprep.subr.mxu0 0.0
        %1410 = vmatpush2.msra.mxu0 0.0
        %1411 = vmatprep.subr.mxu0 0.0
        %1412 = vmatpush2.msra.mxu0 0.0
        %1413 = vmatprep.subr.mxu0 0.0
        %1414 = vmatpush2.msra.mxu0 0.0
        %1415 = vmatprep.subr.mxu0 0.0
        %1416 = vmatpush2.msra.mxu0 0.0
        %1417 = vmatprep.subr.mxu0 0.0
        %1418 = vmatpush2.msra.mxu0 0.0
        %1419 = vmatprep.subr.mxu0 0.0
        %1420 = vmatpush2.msra.mxu0 0.0
        %1421 = vmatprep.subr.mxu0 0.0
        %1422 = vmatpush2.msra.mxu0 0.0
        %1423 = vmatprep.subr.mxu0 0.0
        %1424 = vmatpush2.msra.mxu0 0.0
        %1425 = vmatprep.subr.mxu0 0.0
        %1426 = vmatpush2.msra.mxu0 0.0
        %1427 = vmatprep.subr.mxu0 0.0
        %1428 = vmatpush2.msra.mxu0 0.0
        %1429 = vmatprep.subr.mxu0 0.0
        %1430 = vmatpush2.msra.mxu0 0.0
        %1431 = vmatprep.subr.mxu0 0.0
        %1432 = vmatpush2.msra.mxu0 0.0
        %1433 = vmatprep.subr.mxu0 0.0
        %1434 = vmatpush2.msra.mxu0 0.0
        %1435 = vmatprep.mubr.f32.mxu0 0.0
        %1436 = vmatmul.mubr.f32.gmra.mxu0 %v1369
        %v1437 = vpop.f32.mrf.mxu0
        %v1438 = vadd.f32 0.0, %v1437
        %v1439 = vpop.f32.mrf.mxu0
        %1440 = vdwg.mxu0
        %1441 = vrot.lane.b32.xlu0 %v1108, 112
        %v1442 = vpop.permute.xlu0 %1441
        %1443 = vrot.lane.b32.xlu0 %v1108, 80
        %v1444 = vpop.permute.xlu0 %1443
        %v1445 = vsel %vm1114, %v1442, 0
        %v1447 = vsel %vm1114, %v1444, 0
        %1449 = vmatprep.subr.mxu0 0.0
        %1450 = vmatpush1.xpose.msra.mxu0 0.0
        %1451 = vmatprep.subr.mxu0 0.0
        %1452 = vmatpush1.xpose.msra.mxu0 0.0
        %1453 = vmatprep.subr.mxu0 0.0
        %1454 = vmatpush1.xpose.msra.mxu0 0.0
        %1455 = vmatprep.subr.mxu0 0.0
        %1456 = vmatpush1.xpose.msra.mxu0 0.0
        %1457 = vmatprep.subr.mxu0 0.0
        %1458 = vmatpush1.xpose.msra.mxu0 0.0
        %1459 = vmatprep.subr.mxu0 0.0
        %1460 = vmatpush1.xpose.msra.mxu0 0.0
        %1461 = vmatprep.subr.mxu0 0.0
        %1462 = vmatpush1.xpose.msra.mxu0 0.0
        %1463 = vmatprep.subr.mxu0 0.0
        %1464 = vmatpush1.xpose.msra.mxu0 0.0
        %1465 = vmatprep.subr.mxu0 0.0
        %1466 = vmatpush1.xpose.msra.mxu0 0.0
        %1467 = vmatprep.subr.mxu0 0.0
        %1468 = vmatpush1.xpose.msra.mxu0 0.0
        %1469 = vmatprep.subr.mxu0 0.0
        %1470 = vmatpush1.xpose.msra.mxu0 0.0
        %1471 = vmatprep.subr.mxu0 0.0
        %1472 = vmatpush1.xpose.msra.mxu0 0.0
        %1473 = vmatprep.subr.mxu0 0.0
        %1474 = vmatpush1.xpose.msra.mxu0 0.0
        %1475 = vmatprep.subr.mxu0 0.0
        %1476 = vmatpush1.xpose.msra.mxu0 0.0
        %1477 = vmatprep.subr.mxu0 0.0
        %1478 = vmatpush1.xpose.msra.mxu0 0.0
        %1479 = vmatprep.subr.mxu0 0.0
        %1480 = vmatpush1.xpose.msra.mxu0 %v1447
        %1481 = vmatprep.subr.mxu0 0.0
        %1482 = vmatpush2.xpose.msra.mxu0 0.0
        %1483 = vmatprep.subr.mxu0 0.0
        %1484 = vmatpush2.xpose.msra.mxu0 0.0
        %1485 = vmatprep.subr.mxu0 0.0
        %1486 = vmatpush2.xpose.msra.mxu0 0.0
        %1487 = vmatprep.subr.mxu0 0.0
        %1488 = vmatpush2.xpose.msra.mxu0 0.0
        %1489 = vmatprep.subr.mxu0 0.0
        %1490 = vmatpush2.xpose.msra.mxu0 0.0
        %1491 = vmatprep.subr.mxu0 0.0
        %1492 = vmatpush2.xpose.msra.mxu0 0.0
        %1493 = vmatprep.subr.mxu0 0.0
        %1494 = vmatpush2.xpose.msra.mxu0 0.0
        %1495 = vmatprep.subr.mxu0 0.0
        %1496 = vmatpush2.xpose.msra.mxu0 0.0
        %1497 = vmatprep.subr.mxu0 0.0
        %1498 = vmatpush2.xpose.msra.mxu0 0.0
        %1499 = vmatprep.subr.mxu0 0.0
        %1500 = vmatpush2.xpose.msra.mxu0 0.0
        %1501 = vmatprep.subr.mxu0 0.0
        %1502 = vmatpush2.xpose.msra.mxu0 0.0
        %1503 = vmatprep.subr.mxu0 0.0
        %1504 = vmatpush2.xpose.msra.mxu0 0.0
        %1505 = vmatprep.subr.mxu0 0.0
        %1506 = vmatpush2.xpose.msra.mxu0 0.0
        %1507 = vmatprep.subr.mxu0 0.0
        %1508 = vmatpush2.xpose.msra.mxu0 0.0
        %1509 = vmatprep.subr.mxu0 0.0
        %1510 = vmatpush2.xpose.msra.mxu0 0.0
        %1511 = vmatprep.subr.mxu0 0.0
        %1512 = vmatpush2.xpose.msra.mxu0 0.0
        %1513 = vmatprep.mubr.f32.mxu0 0.0
        %1514 = vmatmul.mubr.f32.gmra.mxu0 %v1445
        %v1515 = vpop.f32.mrf.mxu0
        %v1516 = vadd.f32 %v828, %v1515
        %v1517 = vpop.f32.mrf.mxu0
        %1518 = vdwg.mxu0
        %v1519 = vsel %vm1114, %v1516, -inf
        %1520 = vmax.xlane.f32.xlu0 %v1519
        %v1521 = vpop.xlane.xlu0 %1520
        %v1522 = vsub.f32 %v1516, %v1521
        %v1523 = vmul.f32 %v1522, 1.442695
        %v1524 = vpow.pop %v1523
        %v1525 = vsel %vm1114, %v1524, 0.0
        %1526 = vadd.xlane.f32.xlu0 %v1525
        %v1527 = vpop.xlane.xlu0 %1526
        %v1528 = vrcp.pop %v1527
        %v1529 = vmul.f32 %v1524, %v1528
        %1530 = vrot.lane.b32.xlu0 %v1108, 48
        %v1531 = vpop.permute.xlu0 %1530
        %v1534 = vsel %vm1114, %v1529, 0
        %1536 = vmatprep.subr.mxu0 0.0
        %1537 = vmatpush1.msra.mxu0 0.0
        %1538 = vmatprep.subr.mxu0 0.0
        %1539 = vmatpush1.msra.mxu0 0.0
        %1540 = vmatprep.subr.mxu0 0.0
        %1541 = vmatpush1.msra.mxu0 0.0
        %1542 = vmatprep.subr.mxu0 0.0
        %1543 = vmatpush1.msra.mxu0 0.0
        %1544 = vmatprep.subr.mxu0 0.0
        %1545 = vmatpush1.msra.mxu0 0.0
        %1546 = vmatprep.subr.mxu0 0.0
        %1547 = vmatpush1.msra.mxu0 0.0
        %1548 = vmatprep.subr.mxu0 0.0
        %1549 = vmatpush1.msra.mxu0 0.0
        %1550 = vmatprep.subr.mxu0 0.0
        %1551 = vmatpush1.msra.mxu0 0.0
        %1552 = vmatprep.subr.mxu0 0.0
        %1553 = vmatpush1.msra.mxu0 0.0
        %1554 = vmatprep.subr.mxu0 0.0
        %1555 = vmatpush1.msra.mxu0 0.0
        %1556 = vmatprep.subr.mxu0 0.0
        %1557 = vmatpush1.msra.mxu0 0.0
        %1558 = vmatprep.subr.mxu0 0.0
        %1559 = vmatpush1.msra.mxu0 0.0
        %1560 = vmatprep.subr.mxu0 0.0
        %1561 = vmatpush1.msra.mxu0 0.0
        %1562 = vmatprep.subr.mxu0 0.0
        %1563 = vmatpush1.msra.mxu0 0.0
        %1564 = vmatprep.subr.mxu0 0.0
        %1565 = vmatpush1.msra.mxu0 0.0
        %1566 = vmatprep.subr.mxu0 0.0
        %1567 = vmatpush1.msra.mxu0 %v1531
        %1568 = vmatprep.subr.mxu0 0.0
        %1569 = vmatpush2.msra.mxu0 0.0
        %1570 = vmatprep.subr.mxu0 0.0
        %1571 = vmatpush2.msra.mxu0 0.0
        %1572 = vmatprep.subr.mxu0 0.0
        %1573 = vmatpush2.msra.mxu0 0.0
        %1574 = vmatprep.subr.mxu0 0.0
        %1575 = vmatpush2.msra.mxu0 0.0
        %1576 = vmatprep.subr.mxu0 0.0
        %1577 = vmatpush2.msra.mxu0 0.0
        %1578 = vmatprep.subr.mxu0 0.0
        %1579 = vmatpush2.msra.mxu0 0.0
        %1580 = vmatprep.subr.mxu0 0.0
        %1581 = vmatpush2.msra.mxu0 0.0
        %1582 = vmatprep.subr.mxu0 0.0
        %1583 = vmatpush2.msra.mxu0 0.0
        %1584 = vmatprep.subr.mxu0 0.0
        %1585 = vmatpush2.msra.mxu0 0.0
        %1586 = vmatprep.subr.mxu0 0.0
        %1587 = vmatpush2.msra.mxu0 0.0
        %1588 = vmatprep.subr.mxu0 0.0
        %1589 = vmatpush2.msra.mxu0 0.0
        %1590 = vmatprep.subr.mxu0 0.0
        %1591 = vmatpush2.msra.mxu0 0.0
        %1592 = vmatprep.subr.mxu0 0.0
        %1593 = vmatpush2.msra.mxu0 0.0
        %1594 = vmatprep.subr.mxu0 0.0
        %1595 = vmatpush2.msra.mxu0 0.0
        %1596 = vmatprep.subr.mxu0 0.0
        %1597 = vmatpush2.msra.mxu0 0.0
        %1598 = vmatprep.subr.mxu0 0.0
        %1599 = vmatpush2.msra.mxu0 0.0
        %1600 = vmatprep.mubr.f32.mxu0 0.0
        %1601 = vmatmul.mubr.f32.gmra.mxu0 %v1534
        %v1602 = vpop.f32.mrf.mxu0
        %v1603 = vadd.f32 0.0, %v1602
        %v1604 = vpop.f32.mrf.mxu0
        %1605 = vdwg.mxu0
        %1606 = vrot.lane.b32.xlu0 %v1108, 104
        %v1607 = vpop.permute.xlu0 %1606
        %1608 = vrot.lane.b32.xlu0 %v1108, 72
        %v1609 = vpop.permute.xlu0 %1608
        %v1610 = vsel %vm1114, %v1607, 0
        %v1612 = vsel %vm1114, %v1609, 0
        %1614 = vmatprep.subr.mxu0 0.0
        %1615 = vmatpush1.xpose.msra.mxu0 0.0
        %1616 = vmatprep.subr.mxu0 0.0
        %1617 = vmatpush1.xpose.msra.mxu0 0.0
        %1618 = vmatprep.subr.mxu0 0.0
        %1619 = vmatpush1.xpose.msra.mxu0 0.0
        %1620 = vmatprep.subr.mxu0 0.0
        %1621 = vmatpush1.xpose.msra.mxu0 0.0
        %1622 = vmatprep.subr.mxu0 0.0
        %1623 = vmatpush1.xpose.msra.mxu0 0.0
        %1624 = vmatprep.subr.mxu0 0.0
        %1625 = vmatpush1.xpose.msra.mxu0 0.0
        %1626 = vmatprep.subr.mxu0 0.0
        %1627 = vmatpush1.xpose.msra.mxu0 0.0
        %1628 = vmatprep.subr.mxu0 0.0
        %1629 = vmatpush1.xpose.msra.mxu0 0.0
        %1630 = vmatprep.subr.mxu0 0.0
        %1631 = vmatpush1.xpose.msra.mxu0 0.0
        %1632 = vmatprep.subr.mxu0 0.0
        %1633 = vmatpush1.xpose.msra.mxu0 0.0
        %1634 = vmatprep.subr.mxu0 0.0
        %1635 = vmatpush1.xpose.msra.mxu0 0.0
        %1636 = vmatprep.subr.mxu0 0.0
        %1637 = vmatpush1.xpose.msra.mxu0 0.0
        %1638 = vmatprep.subr.mxu0 0.0
        %1639 = vmatpush1.xpose.msra.mxu0 0.0
        %1640 = vmatprep.subr.mxu0 0.0
        %1641 = vmatpush1.xpose.msra.mxu0 0.0
        %1642 = vmatprep.subr.mxu0 0.0
        %1643 = vmatpush1.xpose.msra.mxu0 0.0
        %1644 = vmatprep.subr.mxu0 0.0
        %1645 = vmatpush1.xpose.msra.mxu0 %v1612
        %1646 = vmatprep.subr.mxu0 0.0
        %1647 = vmatpush2.xpose.msra.mxu0 0.0
        %1648 = vmatprep.subr.mxu0 0.0
        %1649 = vmatpush2.xpose.msra.mxu0 0.0
        %1650 = vmatprep.subr.mxu0 0.0
        %1651 = vmatpush2.xpose.msra.mxu0 0.0
        %1652 = vmatprep.subr.mxu0 0.0
        %1653 = vmatpush2.xpose.msra.mxu0 0.0
        %1654 = vmatprep.subr.mxu0 0.0
        %1655 = vmatpush2.xpose.msra.mxu0 0.0
        %1656 = vmatprep.subr.mxu0 0.0
        %1657 = vmatpush2.xpose.msra.mxu0 0.0
        %1658 = vmatprep.subr.mxu0 0.0
        %1659 = vmatpush2.xpose.msra.mxu0 0.0
        %1660 = vmatprep.subr.mxu0 0.0
        %1661 = vmatpush2.xpose.msra.mxu0 0.0
        %1662 = vmatprep.subr.mxu0 0.0
        %1663 = vmatpush2.xpose.msra.mxu0 0.0
        %1664 = vmatprep.subr.mxu0 0.0
        %1665 = vmatpush2.xpose.msra.mxu0 0.0
        %1666 = vmatprep.subr.mxu0 0.0
        %1667 = vmatpush2.xpose.msra.mxu0 0.0
        %1668 = vmatprep.subr.mxu0 0.0
        %1669 = vmatpush2.xpose.msra.mxu0 0.0
        %1670 = vmatprep.subr.mxu0 0.0
        %1671 = vmatpush2.xpose.msra.mxu0 0.0
        %1672 = vmatprep.subr.mxu0 0.0
        %1673 = vmatpush2.xpose.msra.mxu0 0.0
        %1674 = vmatprep.subr.mxu0 0.0
        %1675 = vmatpush2.xpose.msra.mxu0 0.0
        %1676 = vmatprep.subr.mxu0 0.0
        %1677 = vmatpush2.xpose.msra.mxu0 0.0
        %1678 = vmatprep.mubr.f32.mxu0 0.0
        %1679 = vmatmul.mubr.f32.gmra.mxu0 %v1610
        %v1680 = vpop.f32.mrf.mxu0
        %v1681 = vadd.f32 %v828, %v1680
        %v1682 = vpop.f32.mrf.mxu0
        %1683 = vdwg.mxu0
        %v1684 = vsel %vm1114, %v1681, -inf
        %1685 = vmax.xlane.f32.xlu0 %v1684
        %v1686 = vpop.xlane.xlu0 %1685
        %v1687 = vsub.f32 %v1681, %v1686
        %v1688 = vmul.f32 %v1687, 1.442695
        %v1689 = vpow.pop %v1688
        %v1690 = vsel %vm1114, %v1689, 0.0
        %1691 = vadd.xlane.f32.xlu0 %v1690
        %v1692 = vpop.xlane.xlu0 %1691
        %v1693 = vrcp.pop %v1692
        %v1694 = vmul.f32 %v1689, %v1693
        %1695 = vrot.lane.b32.xlu0 %v1108, 40
        %v1696 = vpop.permute.xlu0 %1695
        %v1699 = vsel %vm1114, %v1694, 0
        %1701 = vmatprep.subr.mxu0 0.0
        %1702 = vmatpush1.msra.mxu0 0.0
        %1703 = vmatprep.subr.mxu0 0.0
        %1704 = vmatpush1.msra.mxu0 0.0
        %1705 = vmatprep.subr.mxu0 0.0
        %1706 = vmatpush1.msra.mxu0 0.0
        %1707 = vmatprep.subr.mxu0 0.0
        %1708 = vmatpush1.msra.mxu0 0.0
        %1709 = vmatprep.subr.mxu0 0.0
        %1710 = vmatpush1.msra.mxu0 0.0
        %1711 = vmatprep.subr.mxu0 0.0
        %1712 = vmatpush1.msra.mxu0 0.0
        %1713 = vmatprep.subr.mxu0 0.0
        %1714 = vmatpush1.msra.mxu0 0.0
        %1715 = vmatprep.subr.mxu0 0.0
        %1716 = vmatpush1.msra.mxu0 0.0
        %1717 = vmatprep.subr.mxu0 0.0
        %1718 = vmatpush1.msra.mxu0 0.0
        %1719 = vmatprep.subr.mxu0 0.0
        %1720 = vmatpush1.msra.mxu0 0.0
        %1721 = vmatprep.subr.mxu0 0.0
        %1722 = vmatpush1.msra.mxu0 0.0
        %1723 = vmatprep.subr.mxu0 0.0
        %1724 = vmatpush1.msra.mxu0 0.0
        %1725 = vmatprep.subr.mxu0 0.0
        %1726 = vmatpush1.msra.mxu0 0.0
        %1727 = vmatprep.subr.mxu0 0.0
        %1728 = vmatpush1.msra.mxu0 0.0
        %1729 = vmatprep.subr.mxu0 0.0
        %1730 = vmatpush1.msra.mxu0 0.0
        %1731 = vmatprep.subr.mxu0 0.0
        %1732 = vmatpush1.msra.mxu0 %v1696
        %1733 = vmatprep.subr.mxu0 0.0
        %1734 = vmatpush2.msra.mxu0 0.0
        %1735 = vmatprep.subr.mxu0 0.0
        %1736 = vmatpush2.msra.mxu0 0.0
        %1737 = vmatprep.subr.mxu0 0.0
        %1738 = vmatpush2.msra.mxu0 0.0
        %1739 = vmatprep.subr.mxu0 0.0
        %1740 = vmatpush2.msra.mxu0 0.0
        %1741 = vmatprep.subr.mxu0 0.0
        %1742 = vmatpush2.msra.mxu0 0.0
        %1743 = vmatprep.subr.mxu0 0.0
        %1744 = vmatpush2.msra.mxu0 0.0
        %1745 = vmatprep.subr.mxu0 0.0
        %1746 = vmatpush2.msra.mxu0 0.0
        %1747 = vmatprep.subr.mxu0 0.0
        %1748 = vmatpush2.msra.mxu0 0.0
        %1749 = vmatprep.subr.mxu0 0.0
        %1750 = vmatpush2.msra.mxu0 0.0
        %1751 = vmatprep.subr.mxu0 0.0
        %1752 = vmatpush2.msra.mxu0 0.0
        %1753 = vmatprep.subr.mxu0 0.0
        %1754 = vmatpush2.msra.mxu0 0.0
        %1755 = vmatprep.subr.mxu0 0.0
        %1756 = vmatpush2.msra.mxu0 0.0
        %1757 = vmatprep.subr.mxu0 0.0
        %1758 = vmatpush2.msra.mxu0 0.0
        %1759 = vmatprep.subr.mxu0 0.0
        %1760 = vmatpush2.msra.mxu0 0.0
        %1761 = vmatprep.subr.mxu0 0.0
        %1762 = vmatpush2.msra.mxu0 0.0
        %1763 = vmatprep.subr.mxu0 0.0
        %1764 = vmatpush2.msra.mxu0 0.0
        %1765 = vmatprep.mubr.f32.mxu0 0.0
        %1766 = vmatmul.mubr.f32.gmra.mxu0 %v1699
        %v1767 = vpop.f32.mrf.mxu0
        %v1768 = vadd.f32 0.0, %v1767
        %v1769 = vpop.f32.mrf.mxu0
        %1770 = vdwg.mxu0
        %1772 = vrot.lane.b32.xlu0 %v1438, 8
        %v1773 = vpop.permute.xlu0 %1772
        %1776 = vrot.lane.b32.xlu0 %v1603, 16
        %v1777 = vpop.permute.xlu0 %1776
        %1780 = vrot.lane.b32.xlu0 %v1768, 24
        %v1781 = vpop.permute.xlu0 %1780
        %v1783 = vsel %vm1114, %v1273, %v1773
        %vm1784 = vcmask 130048
        %v1785 = vsel %vm1784, %v1783, %v1777
        %vm1786 = vcmask 195584
        %v1787 = vsel %vm1786, %v1785, %v1781
        %v1788 = vld [vmem:[%s8] sm:$0xff]
        %v1789 = vld [vmem:[%s8 + $0x8] sm:$0xff]
        %v1790 = vld [vmem:[%s8 + $0x10] sm:$0xff]
        %v1791 = vld [vmem:[%s8 + $0x18] sm:$0xff]
        %v1792 = vld [vmem:[%s9] sm:$0x1]
        %v1794 = vlaneseq
        %v1795 = vshrl.u32 %v1794, 7
        %v1796 = vsub.s32 0, %v1795
        %v1797 = vrot.slane %v1792, %v1796
        %v1800 = vsel %vm1037, %v1787, 0
        %1802 = vmatprep.subr.mxu0 0.0
        %1803 = vmatpush1.msra.mxu0 0.0
        %1804 = vmatprep.subr.mxu0 0.0
        %1805 = vmatpush1.msra.mxu0 0.0
        %1806 = vmatprep.subr.mxu0 0.0
        %1807 = vmatpush1.msra.mxu0 0.0
        %1808 = vmatprep.subr.mxu0 0.0
        %1809 = vmatpush1.msra.mxu0 0.0
        %1810 = vmatprep.subr.mxu0 0.0
        %1811 = vmatpush1.msra.mxu0 0.0
        %1812 = vmatprep.subr.mxu0 0.0
        %1813 = vmatpush1.msra.mxu0 0.0
        %1814 = vmatprep.subr.mxu0 0.0
        %1815 = vmatpush1.msra.mxu0 0.0
        %1816 = vmatprep.subr.mxu0 0.0
        %1817 = vmatpush1.msra.mxu0 0.0
        %1818 = vmatprep.subr.mxu0 0.0
        %1819 = vmatpush1.msra.mxu0 0.0
        %1820 = vmatprep.subr.mxu0 0.0
        %1821 = vmatpush1.msra.mxu0 0.0
        %1822 = vmatprep.subr.mxu0 0.0
        %1823 = vmatpush1.msra.mxu0 0.0
        %1824 = vmatprep.subr.mxu0 0.0
        %1825 = vmatpush1.msra.mxu0 0.0
        %1826 = vmatprep.subr.mxu0 0.0
        %1827 = vmatpush1.msra.mxu0 %v1791
        %1828 = vmatprep.subr.mxu0 0.0
        %1829 = vmatpush1.msra.mxu0 %v1790
        %1830 = vmatprep.subr.mxu0 0.0
        %1831 = vmatpush1.msra.mxu0 %v1789
        %1832 = vmatprep.subr.mxu0 0.0
        %1833 = vmatpush1.msra.mxu0 %v1788
        %1834 = vmatprep.subr.mxu0 0.0
        %1835 = vmatpush2.msra.mxu0 0.0
        %1836 = vmatprep.subr.mxu0 0.0
        %1837 = vmatpush2.msra.mxu0 0.0
        %1838 = vmatprep.subr.mxu0 0.0
        %1839 = vmatpush2.msra.mxu0 0.0
        %1840 = vmatprep.subr.mxu0 0.0
        %1841 = vmatpush2.msra.mxu0 0.0
        %1842 = vmatprep.subr.mxu0 0.0
        %1843 = vmatpush2.msra.mxu0 0.0
        %1844 = vmatprep.subr.mxu0 0.0
        %1845 = vmatpush2.msra.mxu0 0.0
        %1846 = vmatprep.subr.mxu0 0.0
        %1847 = vmatpush2.msra.mxu0 0.0
        %1848 = vmatprep.subr.mxu0 0.0
        %1849 = vmatpush2.msra.mxu0 0.0
        %1850 = vmatprep.subr.mxu0 0.0
        %1851 = vmatpush2.msra.mxu0 0.0
        %1852 = vmatprep.subr.mxu0 0.0
        %1853 = vmatpush2.msra.mxu0 0.0
        %1854 = vmatprep.subr.mxu0 0.0
        %1855 = vmatpush2.msra.mxu0 0.0
        %1856 = vmatprep.subr.mxu0 0.0
        %1857 = vmatpush2.msra.mxu0 0.0
        %1858 = vmatprep.subr.mxu0 0.0
        %1859 = vmatpush2.msra.mxu0 0.0
        %1860 = vmatprep.subr.mxu0 0.0
        %1861 = vmatpush2.msra.mxu0 0.0
        %1862 = vmatprep.subr.mxu0 0.0
        %1863 = vmatpush2.msra.mxu0 0.0
        %1864 = vmatprep.subr.mxu0 0.0
        %1865 = vmatpush2.msra.mxu0 0.0
        %1866 = vmatprep.mubr.f32.mxu0 0.0
        %1867 = vmatmul.mubr.f32.gmra.mxu0 %v1800
        %v1868 = vpop.f32.mrf.mxu0
        %v1869 = vadd.f32 %v1797, %v1868
        %v1870 = vpop.f32.mrf.mxu0
        %1871 = vdwg.mxu0
        %v1872 = vadd.f32 %v944, %v1869
        %v1873 = vsel %vm1037, %v1872, 0.0
        %1874 = vadd.xlane.f32.xlu0 %v1873
        %v1875 = vpop.xlane.xlu0 %1874
        %v1876 = vrcp.pop 32.0
        %v1877 = vmul.f32 %v1875, %v1876
        %v1878 = vsub.f32 %v1872, %v1877
        %v1879 = vmul.f32 %v1878, %v1878
        %v1880 = vsel %vm1037, %v1879, 0.0
        %1881 = vadd.xlane.f32.xlu0 %v1880
        %v1882 = vpop.xlane.xlu0 %1881
        %v1883 = vmul.f32 %v1882, %v1876
        %v1884 = vadd.f32 %v1883, 1e-05
        %v1885 = vrsqrt.pop %v1884
        %v1886 = vmul.f32 %v1878, %v1885
        %v1887 = vld [vmem:[%s14] sm:$0x1]
        %v1889 = vlaneseq
        %v1890 = vshrl.u32 %v1889, 7
        %v1891 = vsub.s32 0, %v1890
        %v1892 = vrot.slane %v1887, %v1891
        %v1894 = vmul.f32 %v1886, %v1892
        %v1895 = vld [vmem:[%s15] sm:$0x1]
        %v1897 = vlaneseq
        %v1898 = vshrl.u32 %v1897, 7
        %v1899 = vsub.s32 0, %v1898
        %v1900 = vrot.slane %v1895, %v1899
        %v1902 = vadd.f32 %v1894, %v1900
        %v1903 = vld [vmem:[%s10] sm:$0xff]
        %v1904 = vld [vmem:[%s10 + $0x8] sm:$0xff]
        %v1905 = vld [vmem:[%s10 + $0x10] sm:$0xff]
        %v1906 = vld [vmem:[%s10 + $0x18] sm:$0xff]
        %v1907 = vld [vmem:[%s11] sm:$0x1]
        %v1909 = vlaneseq
        %v1910 = vshrl.u32 %v1909, 7
        %v1911 = vsub.s32 0, %v1910
        %v1912 = vrot.slane %v1907, %v1911
        %v1915 = vsel %vm1037, %v1902, 0
        %1917 = vmatprep.subr.mxu0 0.0
        %1918 = vmatpush1.msra.mxu0 0.0
        %1919 = vmatprep.subr.mxu0 0.0
        %1920 = vmatpush1.msra.mxu0 0.0
        %1921 = vmatprep.subr.mxu0 0.0
        %1922 = vmatpush1.msra.mxu0 0.0
        %1923 = vmatprep.subr.mxu0 0.0
        %1924 = vmatpush1.msra.mxu0 0.0
        %1925 = vmatprep.subr.mxu0 0.0
        %1926 = vmatpush1.msra.mxu0 0.0
        %1927 = vmatprep.subr.mxu0 0.0
        %1928 = vmatpush1.msra.mxu0 0.0
        %1929 = vmatprep.subr.mxu0 0.0
        %1930 = vmatpush1.msra.mxu0 0.0
        %1931 = vmatprep.subr.mxu0 0.0
        %1932 = vmatpush1.msra.mxu0 0.0
        %1933 = vmatprep.subr.mxu0 0.0
        %1934 = vmatpush1.msra.mxu0 0.0
        %1935 = vmatprep.subr.mxu0 0.0
        %1936 = vmatpush1.msra.mxu0 0.0
        %1937 = vmatprep.subr.mxu0 0.0
        %1938 = vmatpush1.msra.mxu0 0.0
        %1939 = vmatprep.subr.mxu0 0.0
        %1940 = vmatpush1.msra.mxu0 0.0
        %1941 = vmatprep.subr.mxu0 0.0
        %1942 = vmatpush1.msra.mxu0 %v1906
        %1943 = vmatprep.subr.mxu0 0.0
        %1944 = vmatpush1.msra.mxu0 %v1905
        %1945 = vmatprep.subr.mxu0 0.0
        %1946 = vmatpush1.msra.mxu0 %v1904
        %1947 = vmatprep.subr.mxu0 0.0
        %1948 = vmatpush1.msra.mxu0 %v1903
        %1949 = vmatprep.subr.mxu0 0.0
        %1950 = vmatpush2.msra.mxu0 0.0
        %1951 = vmatprep.subr.mxu0 0.0
        %1952 = vmatpush2.msra.mxu0 0.0
        %1953 = vmatprep.subr.mxu0 0.0
        %1954 = vmatpush2.msra.mxu0 0.0
        %1955 = vmatprep.subr.mxu0 0.0
        %1956 = vmatpush2.msra.mxu0 0.0
        %1957 = vmatprep.subr.mxu0 0.0
        %1958 = vmatpush2.msra.mxu0 0.0
        %1959 = vmatprep.subr.mxu0 0.0
        %1960 = vmatpush2.msra.mxu0 0.0
        %1961 = vmatprep.subr.mxu0 0.0
        %1962 = vmatpush2.msra.mxu0 0.0
        %1963 = vmatprep.subr.mxu0 0.0
        %1964 = vmatpush2.msra.mxu0 0.0
        %1965 = vmatprep.subr.mxu0 0.0
        %1966 = vmatpush2.msra.mxu0 0.0
        %1967 = vmatprep.subr.mxu0 0.0
        %1968 = vmatpush2.msra.mxu0 0.0
        %1969 = vmatprep.subr.mxu0 0.0
        %1970 = vmatpush2.msra.mxu0 0.0
        %1971 = vmatprep.subr.mxu0 0.0
        %1972 = vmatpush2.msra.mxu0 0.0
        %1973 = vmatprep.subr.mxu0 0.0
        %1974 = vmatpush2.msra.mxu0 0.0
        %1975 = vmatprep.subr.mxu0 0.0
        %1976 = vmatpush2.msra.mxu0 0.0
        %1977 = vmatprep.subr.mxu0 0.0
        %1978 = vmatpush2.msra.mxu0 0.0
        %1979 = vmatprep.subr.mxu0 0.0
        %1980 = vmatpush2.msra.mxu0 0.0
        %1981 = vmatprep.mubr.f32.mxu0 0.0
        %1982 = vmatmul.mubr.f32.gmra.mxu0 %v1915
        %v1983 = vpop.f32.mrf.mxu0
        %v1984 = vadd.f32 %v1912, %v1983
        %v1985 = vpop.f32.mrf.mxu0
        %1986 = vdwg.mxu0
        %v1987 = vmax.f32 %v1984, 0.0
        %v1988 = vld [vmem:[%s12] sm:$0xff]
        %v1989 = vld [vmem:[%s12 + $0x8] sm:$0xff]
        %v1990 = vld [vmem:[%s12 + $0x10] sm:$0xff]
        %v1991 = vld [vmem:[%s12 + $0x18] sm:$0xff]
        %v1992 = vld [vmem:[%s12 + $0x20] sm:$0xff]
        %v1993 = vld [vmem:[%s12 + $0x28] sm:$0xff]
        %v1994 = vld [vmem:[%s12 + $0x30] sm:$0xff]
        %v1995 = vld [vmem:[%s12 + $0x38] sm:$0xff]
        %v1996 = vld [vmem:[%s13] sm:$0x1]
        %v1998 = vlaneseq
        %v1999 = vshrl.u32 %v1998, 7
        %v2000 = vsub.s32 0, %v1999
        %v2001 = vrot.slane %v1996, %v2000
        %vm2003 = vcmask 523264
        %v2005 = vsel %vm2003, %v1987, 0
        %2007 = vmatprep.subr.mxu0 0.0
        %2008 = vmatpush1.msra.mxu0 0.0
        %2009 = vmatprep.subr.mxu0 0.0
        %2010 = vmatpush1.msra.mxu0 0.0
        %2011 = vmatprep.subr.mxu0 0.0
        %2012 = vmatpush1.msra.mxu0 0.0
        %2013 = vmatprep.subr.mxu0 0.0
        %2014 = vmatpush1.msra.mxu0 0.0
        %2015 = vmatprep.subr.mxu0 0.0
        %2016 = vmatpush1.msra.mxu0 0.0
        %2017 = vmatprep.subr.mxu0 0.0
        %2018 = vmatpush1.msra.mxu0 0.0
        %2019 = vmatprep.subr.mxu0 0.0
        %2020 = vmatpush1.msra.mxu0 0.0
        %2021 = vmatprep.subr.mxu0 0.0
        %2022 = vmatpush1.msra.mxu0 0.0
        %2023 = vmatprep.subr.mxu0 0.0
        %2024 = vmatpush1.msra.mxu0 %v1995
        %2025 = vmatprep.subr.mxu0 0.0
        %2026 = vmatpush1.msra.mxu0 %v1994
        %2027 = vmatprep.subr.mxu0 0.0
        %2028 = vmatpush1.msra.mxu0 %v1993
        %2029 = vmatprep.subr.mxu0 0.0
        %2030 = vmatpush1.msra.mxu0 %v1992
        %2031 = vmatprep.subr.mxu0 0.0
        %2032 = vmatpush1.msra.mxu0 %v1991
        %2033 = vmatprep.subr.mxu0 0.0
        %2034 = vmatpush1.msra.mxu0 %v1990
        %2035 = vmatprep.subr.mxu0 0.0
        %2036 = vmatpush1.msra.mxu0 %v1989
        %2037 = vmatprep.subr.mxu0 0.0
        %2038 = vmatpush1.msra.mxu0 %v1988
        %2039 = vmatprep.subr.mxu0 0.0
        %2040 = vmatpush2.msra.mxu0 0.0
        %2041 = vmatprep.subr.mxu0 0.0
        %2042 = vmatpush2.msra.mxu0 0.0
        %2043 = vmatprep.subr.mxu0 0.0
        %2044 = vmatpush2.msra.mxu0 0.0
        %2045 = vmatprep.subr.mxu0 0.0
        %2046 = vmatpush2.msra.mxu0 0.0
        %2047 = vmatprep.subr.mxu0 0.0
        %2048 = vmatpush2.msra.mxu0 0.0
        %2049 = vmatprep.subr.mxu0 0.0
        %2050 = vmatpush2.msra.mxu0 0.0
        %2051 = vmatprep.subr.mxu0 0.0
        %2052 = vmatpush2.msra.mxu0 0.0
        %2053 = vmatprep.subr.mxu0 0.0
        %2054 = vmatpush2.msra.mxu0 0.0
        %2055 = vmatprep.subr.mxu0 0.0
        %2056 = vmatpush2.msra.mxu0 0.0
        %2057 = vmatprep.subr.mxu0 0.0
        %2058 = vmatpush2.msra.mxu0 0.0
        %2059 = vmatprep.subr.mxu0 0.0
        %2060 = vmatpush2.msra.mxu0 0.0
        %2061 = vmatprep.subr.mxu0 0.0
        %2062 = vmatpush2.msra.mxu0 0.0
        %2063 = vmatprep.subr.mxu0 0.0
        %2064 = vmatpush2.msra.mxu0 0.0
        %2065 = vmatprep.subr.mxu0 0.0
        %2066 = vmatpush2.msra.mxu0 0.0
        %2067 = vmatprep.subr.mxu0 0.0
        %2068 = vmatpush2.msra.mxu0 0.0
        %2069 = vmatprep.subr.mxu0 0.0
        %2070 = vmatpush2.msra.mxu0 0.0
        %2071 = vmatprep.mubr.f32.mxu0 0.0
        %2072 = vmatmul.mubr.f32.gmra.mxu0 %v2005
        %v2073 = vpop.f32.mrf.mxu0
        %v2074 = vadd.f32 %v2001, %v2073
        %v2075 = vpop.f32.mrf.mxu0
        %2076 = vdwg.mxu0
        %v2077 = vadd.f32 %v1902, %v2074
        %v2078 = vsel %vm1037, %v2077, 0.0
        %2079 = vadd.xlane.f32.xlu0 %v2078
        %v2080 = vpop.xlane.xlu0 %2079
        %v2081 = vmul.f32 %v2080, %v1876
        %v2082 = vsub.f32 %v2077, %v2081
        %v2083 = vmul.f32 %v2082, %v2082
        %v2084 = vsel %vm1037, %v2083, 0.0
        %2085 = vadd.xlane.f32.xlu0 %v2084
        %v2086 = vpop.xlane.xlu0 %2085
        %v2087 = vmul.f32 %v2086, %v1876
        %v2088 = vadd.f32 %v2087, 1e-05
        %v2089 = vrsqrt.pop %v2088
        %v2090 = vmul.f32 %v2082, %v2089
        %v2091 = vld [vmem:[%s16] sm:$0x1]
        %v2093 = vlaneseq
        %v2094 = vshrl.u32 %v2093, 7
        %v2095 = vsub.s32 0, %v2094
        %v2096 = vrot.slane %v2091, %v2095
        %v2098 = vmul.f32 %v2090, %v2096
        %v2099 = vld [vmem:[%s17] sm:$0x1]
        %v2101 = vlaneseq
        %v2102 = vshrl.u32 %v2101, 7
        %v2103 = vsub.s32 0, %v2102
        %v2104 = vrot.slane %v2099, %v2103
        %v2106 = vadd.f32 %v2098, %v2104
        %s2107 = scalar_lea.vmem %s6, 32
        %v2108 = vld [vmem:[%s2107] sm:$0xff]
        %v2109 = vld [vmem:[%s2107 + $0x8] sm:$0xff]
        %v2110 = vld [vmem:[%s2107 + $0x10] sm:$0xff]
        %v2111 = vld [vmem:[%s2107 + $0x18] sm:$0xff]
        %s2112 = scalar_lea.vmem %s7, 1
        %v2113 = vld [vmem:[%s2112] sm:$0x1]
        %v2115 = vlaneseq
        %v2116 = vshrl.u32 %v2115, 7
        %v2117 = vsub.s32 0, %v2116
        %v2118 = vrot.slane %v2113, %v2117
        %v2121 = vsel %vm1037, %v2106, 0
        %2123 = vmatprep.subr.mxu0 0.0
        %2124 = vmatpush1.msra.mxu0 0.0
        %2125 = vmatprep.subr.mxu0 0.0
        %2126 = vmatpush1.msra.mxu0 0.0
        %2127 = vmatprep.subr.mxu0 0.0
        %2128 = vmatpush1.msra.mxu0 0.0
        %2129 = vmatprep.subr.mxu0 0.0
        %2130 = vmatpush1.msra.mxu0 0.0
        %2131 = vmatprep.subr.mxu0 0.0
        %2132 = vmatpush1.msra.mxu0 0.0
        %2133 = vmatprep.subr.mxu0 0.0
        %2134 = vmatpush1.msra.mxu0 0.0
        %2135 = vmatprep.subr.mxu0 0.0
        %2136 = vmatpush1.msra.mxu0 0.0
        %2137 = vmatprep.subr.mxu0 0.0
        %2138 = vmatpush1.msra.mxu0 0.0
        %2139 = vmatprep.subr.mxu0 0.0
        %2140 = vmatpush1.msra.mxu0 0.0
        %2141 = vmatprep.subr.mxu0 0.0
        %2142 = vmatpush1.msra.mxu0 0.0
        %2143 = vmatprep.subr.mxu0 0.0
        %2144 = vmatpush1.msra.mxu0 0.0
        %2145 = vmatprep.subr.mxu0 0.0
        %2146 = vmatpush1.msra.mxu0 0.0
        %2147 = vmatprep.subr.mxu0 0.0
        %2148 = vmatpush1.msra.mxu0 %v2111
        %2149 = vmatprep.subr.mxu0 0.0
        %2150 = vmatpush1.msra.mxu0 %v2110
        %2151 = vmatprep.subr.mxu0 0.0
        %2152 = vmatpush1.msra.mxu0 %v2109
        %2153 = vmatprep.subr.mxu0 0.0
        %2154 = vmatpush1.msra.mxu0 %v2108
        %2155 = vmatprep.subr.mxu0 0.0
        %2156 = vmatpush2.msra.mxu0 0.0
        %2157 = vmatprep.subr.mxu0 0.0
        %2158 = vmatpush2.msra.mxu0 0.0
        %2159 = vmatprep.subr.mxu0 0.0
        %2160 = vmatpush2.msra.mxu0 0.0
        %2161 = vmatprep.subr.mxu0 0.0
        %2162 = vmatpush2.msra.mxu0 0.0
        %2163 = vmatprep.subr.mxu0 0.0
        %2164 = vmatpush2.msra.mxu0 0.0
        %2165 = vmatprep.subr.mxu0 0.0
        %2166 = vmatpush2.msra.mxu0 0.0
        %2167 = vmatprep.subr.mxu0 0.0
        %2168 = vmatpush2.msra.mxu0 0.0
        %2169 = vmatprep.subr.mxu0 0.0
        %2170 = vmatpush2.msra.mxu0 0.0
        %2171 = vmatprep.subr.mxu0 0.0
        %2172 = vmatpush2.msra.mxu0 0.0
        %2173 = vmatprep.subr.mxu0 0.0
        %2174 = vmatpush2.msra.mxu0 0.0
        %2175 = vmatprep.subr.mxu0 0.0
        %2176 = vmatpush2.msra.mxu0 0.0
        %2177 = vmatprep.subr.mxu0 0.0
        %2178 = vmatpush2.msra.mxu0 0.0
        %2179 = vmatprep.subr.mxu0 0.0
        %2180 = vmatpush2.msra.mxu0 0.0
        %2181 = vmatprep.subr.mxu0 0.0
        %2182 = vmatpush2.msra.mxu0 0.0
        %2183 = vmatprep.subr.mxu0 0.0
        %2184 = vmatpush2.msra.mxu0 0.0
        %2185 = vmatprep.subr.mxu0 0.0
        %2186 = vmatpush2.msra.mxu0 0.0
        %2187 = vmatprep.mubr.f32.mxu0 0.0
        %2188 = vmatmul.mubr.f32.gmra.mxu0 %v2121
        %v2189 = vpop.f32.mrf.mxu0
        %v2190 = vadd.f32 %v2118, %v2189
        %v2191 = vpop.f32.mrf.mxu0
        %2192 = vdwg.mxu0
        %2194 = vrot.lane.b32.xlu0 %v2190, 96
        %v2195 = vpop.permute.xlu0 %2194
        %v2196 = vsel %vm1114, %v2190, 0
        %v2198 = vsel %vm1114, %v2195, 0
        %2200 = vmatprep.subr.mxu0 0.0
        %2201 = vmatpush1.xpose.msra.mxu0 0.0
        %2202 = vmatprep.subr.mxu0 0.0
        %2203 = vmatpush1.xpose.msra.mxu0 0.0
        %2204 = vmatprep.subr.mxu0 0.0
        %2205 = vmatpush1.xpose.msra.mxu0 0.0
        %2206 = vmatprep.subr.mxu0 0.0
        %2207 = vmatpush1.xpose.msra.mxu0 0.0
        %2208 = vmatprep.subr.mxu0 0.0
        %2209 = vmatpush1.xpose.msra.mxu0 0.0
        %2210 = vmatprep.subr.mxu0 0.0
        %2211 = vmatpush1.xpose.msra.mxu0 0.0
        %2212 = vmatprep.subr.mxu0 0.0
        %2213 = vmatpush1.xpose.msra.mxu0 0.0
        %2214 = vmatprep.subr.mxu0 0.0
        %2215 = vmatpush1.xpose.msra.mxu0 0.0
        %2216 = vmatprep.subr.mxu0 0.0
        %2217 = vmatpush1.xpose.msra.mxu0 0.0
        %2218 = vmatprep.subr.mxu0 0.0
        %2219 = vmatpush1.xpose.msra.mxu0 0.0
        %2220 = vmatprep.subr.mxu0 0.0
        %2221 = vmatpush1.xpose.msra.mxu0 0.0
        %2222 = vmatprep.subr.mxu0 0.0
        %2223 = vmatpush1.xpose.msra.mxu0 0.0
        %2224 = vmatprep.subr.mxu0 0.0
        %2225 = vmatpush1.xpose.msra.mxu0 0.0
        %2226 = vmatprep.subr.mxu0 0.0
        %2227 = vmatpush1.xpose.msra.mxu0 0.0
        %2228 = vmatprep.subr.mxu0 0.0
        %2229 = vmatpush1.xpose.msra.mxu0 0.0
        %2230 = vmatprep.subr.mxu0 0.0
        %2231 = vmatpush1.xpose.msra.mxu0 %v2198
        %2232 = vmatprep.subr.mxu0 0.0
        %2233 = vmatpush2.xpose.msra.mxu0 0.0
        %2234 = vmatprep.subr.mxu0 0.0
        %2235 = vmatpush2.xpose.msra.mxu0 0.0
        %2236 = vmatprep.subr.mxu0 0.0
        %2237 = vmatpush2.xpose.msra.mxu0 0.0
        %2238 = vmatprep.subr.mxu0 0.0
        %2239 = vmatpush2.xpose.msra.mxu0 0.0
        %2240 = vmatprep.subr.mxu0 0.0
        %2241 = vmatpush2.xpose.msra.mxu0 0.0
        %2242 = vmatprep.subr.mxu0 0.0
        %2243 = vmatpush2.xpose.msra.mxu0 0.0
        %2244 = vmatprep.subr.mxu0 0.0
        %2245 = vmatpush2.xpose.msra.mxu0 0.0
        %2246 = vmatprep.subr.mxu0 0.0
        %2247 = vmatpush2.xpose.msra.mxu0 0.0
        %2248 = vmatprep.subr.mxu0 0.0
        %2249 = vmatpush2.xpose.msra.mxu0 0.0
        %2250 = vmatprep.subr.mxu0 0.0
        %2251 = vmatpush2.xpose.msra.mxu0 0.0
        %2252 = vmatprep.subr.mxu0 0.0
        %2253 = vmatpush2.xpose.msra.mxu0 0.0
        %2254 = vmatprep.subr.mxu0 0.0
        %2255 = vmatpush2.xpose.msra.mxu0 0.0
        %2256 = vmatprep.subr.mxu0 0.0
        %2257 = vmatpush2.xpose.msra.mxu0 0.0
        %2258 = vmatprep.subr.mxu0 0.0
        %2259 = vmatpush2.xpose.msra.mxu0 0.0
        %2260 = vmatprep.subr.mxu0 0.0
        %2261 = vmatpush2.xpose.msra.mxu0 0.0
        %2262 = vmatprep.subr.mxu0 0.0
        %2263 = vmatpush2.xpose.msra.mxu0 0.0
        %2264 = vmatprep.mubr.f32.mxu0 0.0
        %2265 = vmatmul.mubr.f32.gmra.mxu0 %v2196
        %v2266 = vpop.f32.mrf.mxu0
        %v2267 = vadd.f32 %v828, %v2266
        %v2268 = vpop.f32.mrf.mxu0
        %2269 = vdwg.mxu0
        %v2270 = vsel %vm1114, %v2267, -inf
        %2271 = vmax.xlane.f32.xlu0 %v2270
        %v2272 = vpop.xlane.xlu0 %2271
        %v2273 = vsub.f32 %v2267, %v2272
        %v2274 = vmul.f32 %v2273, 1.442695
        %v2275 = vpow.pop %v2274
        %v2276 = vsel %vm1114, %v2275, 0.0
        %2277 = vadd.xlane.f32.xlu0 %v2276
        %v2278 = vpop.xlane.xlu0 %2277
        %v2279 = vrcp.pop %v2278
        %v2280 = vmul.f32 %v2275, %v2279
        %v2281 = vadd.f32 %v2280, 0.0
        %2282 = vrot.lane.b32.xlu0 %v2190, 120
        %v2283 = vpop.permute.xlu0 %2282
        %2284 = vrot.lane.b32.xlu0 %v2190, 88
        %v2285 = vpop.permute.xlu0 %2284
        %v2286 = vsel %vm1114, %v2283, 0
        %v2288 = vsel %vm1114, %v2285, 0
        %2290 = vmatprep.subr.mxu0 0.0
        %2291 = vmatpush1.xpose.msra.mxu0 0.0
        %2292 = vmatprep.subr.mxu0 0.0
        %2293 = vmatpush1.xpose.msra.mxu0 0.0
        %2294 = vmatprep.subr.mxu0 0.0
        %2295 = vmatpush1.xpose.msra.mxu0 0.0
        %2296 = vmatprep.subr.mxu0 0.0
        %2297 = vmatpush1.xpose.msra.mxu0 0.0
        %2298 = vmatprep.subr.mxu0 0.0
        %2299 = vmatpush1.xpose.msra.mxu0 0.0
        %2300 = vmatprep.subr.mxu0 0.0
        %2301 = vmatpush1.xpose.msra.mxu0 0.0
        %2302 = vmatprep.subr.mxu0 0.0
        %2303 = vmatpush1.xpose.msra.mxu0 0.0
        %2304 = vmatprep.subr.mxu0 0.0
        %2305 = vmatpush1.xpose.msra.mxu0 0.0
        %2306 = vmatprep.subr.mxu0 0.0
        %2307 = vmatpush1.xpose.msra.mxu0 0.0
        %2308 = vmatprep.subr.mxu0 0.0
        %2309 = vmatpush1.xpose.msra.mxu0 0.0
        %2310 = vmatprep.subr.mxu0 0.0
        %2311 = vmatpush1.xpose.msra.mxu0 0.0
        %2312 = vmatprep.subr.mxu0 0.0
        %2313 = vmatpush1.xpose.msra.mxu0 0.0
        %2314 = vmatprep.subr.mxu0 0.0
        %2315 = vmatpush1.xpose.msra.mxu0 0.0
        %2316 = vmatprep.subr.mxu0 0.0
        %2317 = vmatpush1.xpose.msra.mxu0 0.0
        %2318 = vmatprep.subr.mxu0 0.0
        %2319 = vmatpush1.xpose.msra.mxu0 0.0
        %2320 = vmatprep.subr.mxu0 0.0
        %2321 = vmatpush1.xpose.msra.mxu0 %v2288
        %2322 = vmatprep.subr.mxu0 0.0
        %2323 = vmatpush2.xpose.msra.mxu0 0.0
        %2324 = vmatprep.subr.mxu0 0.0
        %2325 = vmatpush2.xpose.msra.mxu0 0.0
        %2326 = vmatprep.subr.mxu0 0.0
        %2327 = vmatpush2.xpose.msra.mxu0 0.0
        %2328 = vmatprep.subr.mxu0 0.0
        %2329 = vmatpush2.xpose.msra.mxu0 0.0
        %2330 = vmatprep.subr.mxu0 0.0
        %2331 = vmatpush2.xpose.msra.mxu0 0.0
        %2332 = vmatprep.subr.mxu0 0.0
        %2333 = vmatpush2.xpose.msra.mxu0 0.0
        %2334 = vmatprep.subr.mxu0 0.0
        %2335 = vmatpush2.xpose.msra.mxu0 0.0
        %2336 = vmatprep.subr.mxu0 0.0
        %2337 = vmatpush2.xpose.msra.mxu0 0.0
        %2338 = vmatprep.subr.mxu0 0.0
        %2339 = vmatpush2.xpose.msra.mxu0 0.0
        %2340 = vmatprep.subr.mxu0 0.0
        %2341 = vmatpush2.xpose.msra.mxu0 0.0
        %2342 = vmatprep.subr.mxu0 0.0
        %2343 = vmatpush2.xpose.msra.mxu0 0.0
        %2344 = vmatprep.subr.mxu0 0.0
        %2345 = vmatpush2.xpose.msra.mxu0 0.0
        %2346 = vmatprep.subr.mxu0 0.0
        %2347 = vmatpush2.xpose.msra.mxu0 0.0
        %2348 = vmatprep.subr.mxu0 0.0
        %2349 = vmatpush2.xpose.msra.mxu0 0.0
        %2350 = vmatprep.subr.mxu0 0.0
        %2351 = vmatpush2.xpose.msra.mxu0 0.0
        %2352 = vmatprep.subr.mxu0 0.0
        %2353 = vmatpush2.xpose.msra.mxu0 0.0
        %2354 = vmatprep.mubr.f32.mxu0 0.0
        %2355 = vmatmul.mubr.f32.gmra.mxu0 %v2286
        %v2356 = vpop.f32.mrf.mxu0
        %v2357 = vadd.f32 %v828, %v2356
        %v2358 = vpop.f32.mrf.mxu0
        %2359 = vdwg.mxu0
        %v2360 = vsel %vm1114, %v2357, -inf
        %2361 = vmax.xlane.f32.xlu0 %v2360
        %v2362 = vpop.xlane.xlu0 %2361
        %v2363 = vsub.f32 %v2357, %v2362
        %v2364 = vmul.f32 %v2363, 1.442695
        %v2365 = vpow.pop %v2364
        %v2366 = vsel %vm1114, %v2365, 0.0
        %2367 = vadd.xlane.f32.xlu0 %v2366
        %v2368 = vpop.xlane.xlu0 %2367
        %v2369 = vrcp.pop %v2368
        %v2370 = vmul.f32 %v2365, %v2369
        %v2371 = vadd.f32 %v2281, %v2370
        %2372 = vrot.lane.b32.xlu0 %v2190, 112
        %v2373 = vpop.permute.xlu0 %2372
        %2374 = vrot.lane.b32.xlu0 %v2190, 80
        %v2375 = vpop.permute.xlu0 %2374
        %v2376 = vsel %vm1114, %v2373, 0
        %v2378 = vsel %vm1114, %v2375, 0
        %2380 = vmatprep.subr.mxu0 0.0
        %2381 = vmatpush1.xpose.msra.mxu0 0.0
        %2382 = vmatprep.subr.mxu0 0.0
        %2383 = vmatpush1.xpose.msra.mxu0 0.0
        %2384 = vmatprep.subr.mxu0 0.0
        %2385 = vmatpush1.xpose.msra.mxu0 0.0
        %2386 = vmatprep.subr.mxu0 0.0
        %2387 = vmatpush1.xpose.msra.mxu0 0.0
        %2388 = vmatprep.subr.mxu0 0.0
        %2389 = vmatpush1.xpose.msra.mxu0 0.0
        %2390 = vmatprep.subr.mxu0 0.0
        %2391 = vmatpush1.xpose.msra.mxu0 0.0
        %2392 = vmatprep.subr.mxu0 0.0
        %2393 = vmatpush1.xpose.msra.mxu0 0.0
        %2394 = vmatprep.subr.mxu0 0.0
        %2395 = vmatpush1.xpose.msra.mxu0 0.0
        %2396 = vmatprep.subr.mxu0 0.0
        %2397 = vmatpush1.xpose.msra.mxu0 0.0
        %2398 = vmatprep.subr.mxu0 0.0
        %2399 = vmatpush1.xpose.msra.mxu0 0.0
        %2400 = vmatprep.subr.mxu0 0.0
        %2401 = vmatpush1.xpose.msra.mxu0 0.0
        %2402 = vmatprep.subr.mxu0 0.0
        %2403 = vmatpush1.xpose.msra.mxu0 0.0
        %2404 = vmatprep.subr.mxu0 0.0
        %2405 = vmatpush1.xpose.msra.mxu0 0.0
        %2406 = vmatprep.subr.mxu0 0.0
        %2407 = vmatpush1.xpose.msra.mxu0 0.0
        %2408 = vmatprep.subr.mxu0 0.0
        %2409 = vmatpush1.xpose.msra.mxu0 0.0
        %2410 = vmatprep.subr.mxu0 0.0
        %2411 = vmatpush1.xpose.msra.mxu0 %v2378
        %2412 = vmatprep.subr.mxu0 0.0
        %2413 = vmatpush2.xpose.msra.mxu0 0.0
        %2414 = vmatprep.subr.mxu0 0.0
        %2415 = vmatpush2.xpose.msra.mxu0 0.0
        %2416 = vmatprep.subr.mxu0 0.0
        %2417 = vmatpush2.xpose.msra.mxu0 0.0
        %2418 = vmatprep.subr.mxu0 0.0
        %2419 = vmatpush2.xpose.msra.mxu0 0.0
        %2420 = vmatprep.subr.mxu0 0.0
        %2421 = vmatpush2.xpose.msra.mxu0 0.0
        %2422 = vmatprep.subr.mxu0 0.0
        %2423 = vmatpush2.xpose.msra.mxu0 0.0
        %2424 = vmatprep.subr.mxu0 0.0
        %2425 = vmatpush2.xpose.msra.mxu0 0.0
        %2426 = vmatprep.subr.mxu0 0.0
        %2427 = vmatpush2.xpose.msra.mxu0 0.0
        %2428 = vmatprep.subr.mxu0 0.0
        %2429 = vmatpush2.xpose.msra.mxu0 0.0
        %2430 = vmatprep.subr.mxu0 0.0
        %2431 = vmatpush2.xpose.msra.mxu0 0.0
        %2432 = vmatprep.subr.mxu0 0.0
        %2433 = vmatpush2.xpose.msra.mxu0 0.0
        %2434 = vmatprep.subr.mxu0 0.0
        %2435 = vmatpush2.xpose.msra.mxu0 0.0
        %2436 = vmatprep.subr.mxu0 0.0
        %2437 = vmatpush2.xpose.msra.mxu0 0.0
        %2438 = vmatprep.subr.mxu0 0.0
        %2439 = vmatpush2.xpose.msra.mxu0 0.0
        %2440 = vmatprep.subr.mxu0 0.0
        %2441 = vmatpush2.xpose.msra.mxu0 0.0
        %2442 = vmatprep.subr.mxu0 0.0
        %2443 = vmatpush2.xpose.msra.mxu0 0.0
        %2444 = vmatprep.mubr.f32.mxu0 0.0
        %2445 = vmatmul.mubr.f32.gmra.mxu0 %v2376
        %v2446 = vpop.f32.mrf.mxu0
        %v2447 = vadd.f32 %v828, %v2446
        %v2448 = vpop.f32.mrf.mxu0
        %2449 = vdwg.mxu0
        %v2450 = vsel %vm1114, %v2447, -inf
        %2451 = vmax.xlane.f32.xlu0 %v2450
        %v2452 = vpop.xlane.xlu0 %2451
        %v2453 = vsub.f32 %v2447, %v2452
        %v2454 = vmul.f32 %v2453, 1.442695
        %v2455 = vpow.pop %v2454
        %v2456 = vsel %vm1114, %v2455, 0.0
        %2457 = vadd.xlane.f32.xlu0 %v2456
        %v2458 = vpop.xlane.xlu0 %2457
        %v2459 = vrcp.pop %v2458
        %v2460 = vmul.f32 %v2455, %v2459
        %v2461 = vadd.f32 %v2371, %v2460
        %2462 = vrot.lane.b32.xlu0 %v2190, 104
        %v2463 = vpop.permute.xlu0 %2462
        %2464 = vrot.lane.b32.xlu0 %v2190, 72
        %v2465 = vpop.permute.xlu0 %2464
        %v2466 = vsel %vm1114, %v2463, 0
        %v2468 = vsel %vm1114, %v2465, 0
        %2470 = vmatprep.subr.mxu0 0.0
        %2471 = vmatpush1.xpose.msra.mxu0 0.0
        %2472 = vmatprep.subr.mxu0 0.0
        %2473 = vmatpush1.xpose.msra.mxu0 0.0
        %2474 = vmatprep.subr.mxu0 0.0
        %2475 = vmatpush1.xpose.msra.mxu0 0.0
        %2476 = vmatprep.subr.mxu0 0.0
        %2477 = vmatpush1.xpose.msra.mxu0 0.0
        %2478 = vmatprep.subr.mxu0 0.0
        %2479 = vmatpush1.xpose.msra.mxu0 0.0
        %2480 = vmatprep.subr.mxu0 0.0
        %2481 = vmatpush1.xpose.msra.mxu0 0.0
        %2482 = vmatprep.subr.mxu0 0.0
        %2483 = vmatpush1.xpose.msra.mxu0 0.0
        %2484 = vmatprep.subr.mxu0 0.0
        %2485 = vmatpush1.xpose.msra.mxu0 0.0
        %2486 = vmatprep.subr.mxu0 0.0
        %2487 = vmatpush1.xpose.msra.mxu0 0.0
        %2488 = vmatprep.subr.mxu0 0.0
        %2489 = vmatpush1.xpose.msra.mxu0 0.0
        %2490 = vmatprep.subr.mxu0 0.0
        %2491 = vmatpush1.xpose.msra.mxu0 0.0
        %2492 = vmatprep.subr.mxu0 0.0
        %2493 = vmatpush1.xpose.msra.mxu0 0.0
        %2494 = vmatprep.subr.mxu0 0.0
        %2495 = vmatpush1.xpose.msra.mxu0 0.0
        %2496 = vmatprep.subr.mxu0 0.0
        %2497 = vmatpush1.xpose.msra.mxu0 0.0
        %2498 = vmatprep.subr.mxu0 0.0
        %2499 = vmatpush1.xpose.msra.mxu0 0.0
        %2500 = vmatprep.subr.mxu0 0.0
        %2501 = vmatpush1.xpose.msra.mxu0 %v2468
        %2502 = vmatprep.subr.mxu0 0.0
        %2503 = vmatpush2.xpose.msra.mxu0 0.0
        %2504 = vmatprep.subr.mxu0 0.0
        %2505 = vmatpush2.xpose.msra.mxu0 0.0
        %2506 = vmatprep.subr.mxu0 0.0
        %2507 = vmatpush2.xpose.msra.mxu0 0.0
        %2508 = vmatprep.subr.mxu0 0.0
        %2509 = vmatpush2.xpose.msra.mxu0 0.0
        %2510 = vmatprep.subr.mxu0 0.0
        %2511 = vmatpush2.xpose.msra.mxu0 0.0
        %2512 = vmatprep.subr.mxu0 0.0
        %2513 = vmatpush2.xpose.msra.mxu0 0.0
        %2514 = vmatprep.subr.mxu0 0.0
        %2515 = vmatpush2.xpose.msra.mxu0 0.0
        %2516 = vmatprep.subr.mxu0 0.0
        %2517 = vmatpush2.xpose.msra.mxu0 0.0
        %2518 = vmatprep.subr.mxu0 0.0
        %2519 = vmatpush2.xpose.msra.mxu0 0.0
        %2520 = vmatprep.subr.mxu0 0.0
        %2521 = vmatpush2.xpose.msra.mxu0 0.0
        %2522 = vmatprep.subr.mxu0 0.0
        %2523 = vmatpush2.xpose.msra.mxu0 0.0
        %2524 = vmatprep.subr.mxu0 0.0
        %2525 = vmatpush2.xpose.msra.mxu0 0.0
        %2526 = vmatprep.subr.mxu0 0.0
        %2527 = vmatpush2.xpose.msra.mxu0 0.0
        %2528 = vmatprep.subr.mxu0 0.0
        %2529 = vmatpush2.xpose.msra.mxu0 0.0
        %2530 = vmatprep.subr.mxu0 0.0
        %2531 = vmatpush2.xpose.msra.mxu0 0.0
        %2532 = vmatprep.subr.mxu0 0.0
        %2533 = vmatpush2.xpose.msra.mxu0 0.0
        %2534 = vmatprep.mubr.f32.mxu0 0.0
        %2535 = vmatmul.mubr.f32.gmra.mxu0 %v2466
        %v2536 = vpop.f32.mrf.mxu0
        %v2537 = vadd.f32 %v828, %v2536
        %v2538 = vpop.f32.mrf.mxu0
        %2539 = vdwg.mxu0
        %v2540 = vsel %vm1114, %v2537, -inf
        %2541 = vmax.xlane.f32.xlu0 %v2540
        %v2542 = vpop.xlane.xlu0 %2541
        %v2543 = vsub.f32 %v2537, %v2542
        %v2544 = vmul.f32 %v2543, 1.442695
        %v2545 = vpow.pop %v2544
        %v2546 = vsel %vm1114, %v2545, 0.0
        %2547 = vadd.xlane.f32.xlu0 %v2546
        %v2548 = vpop.xlane.xlu0 %2547
        %v2549 = vrcp.pop %v2548
        %v2550 = vmul.f32 %v2545, %v2549
        %v2551 = vadd.f32 %v2461, %v2550
        %v2552 = vmul.f32 %v2551, 0.25
        %2553 = vst.msk [vmem:[%s791] sm:$0xff] %vm1114, %v2552
        %v2554 = vld [vmem:[%s22] sm:$0xff]
        %v2555 = vld [vmem:[%s22 + $0x8] sm:$0xff]
        %v2556 = vld [vmem:[%s22 + $0x10] sm:$0xff]
        %v2557 = vld [vmem:[%s22 + $0x18] sm:$0xff]
        %v2558 = vld [vmem:[%s18] sm:$0xff]
        %v2559 = vld [vmem:[%s18 + $0x8] sm:$0xff]
        %v2560 = vld [vmem:[%s18 + $0x10] sm:$0xff]
        %v2561 = vld [vmem:[%s18 + $0x18] sm:$0xff]
        %v2562 = vld [vmem:[%s21] sm:$0x1]
        %v2564 = vlaneseq
        %v2565 = vshrl.u32 %v2564, 7
        %v2566 = vsub.s32 0, %v2565
        %v2567 = vrot.slane %v2562, %v2566
        %2569 = vmatprep.subr.mxu0 0.0
        %2570 = vmatpush1.msra.mxu0 0.0
        %2571 = vmatprep.subr.mxu0 0.0
        %2572 = vmatpush1.msra.mxu0 0.0
        %2573 = vmatprep.subr.mxu0 0.0
        %2574 = vmatpush1.msra.mxu0 0.0
        %2575 = vmatprep.subr.mxu0 0.0
        %2576 = vmatpush1.msra.mxu0 0.0
        %2577 = vmatprep.subr.mxu0 0.0
        %2578 = vmatpush1.msra.mxu0 0.0
        %2579 = vmatprep.subr.mxu0 0.0
        %2580 = vmatpush1.msra.mxu0 0.0
        %2581 = vmatprep.subr.mxu0 0.0
        %2582 = vmatpush1.msra.mxu0 0.0
        %2583 = vmatprep.subr.mxu0 0.0
        %2584 = vmatpush1.msra.mxu0 0.0
        %2585 = vmatprep.subr.mxu0 0.0
        %2586 = vmatpush1.msra.mxu0 0.0
        %2587 = vmatprep.subr.mxu0 0.0
        %2588 = vmatpush1.msra.mxu0 0.0
        %2589 = vmatprep.subr.mxu0 0.0
        %2590 = vmatpush1.msra.mxu0 0.0
        %2591 = vmatprep.subr.mxu0 0.0
        %2592 = vmatpush1.msra.mxu0 0.0
        %2593 = vmatprep.subr.mxu0 0.0
        %2594 = vmatpush1.msra.mxu0 %v2561
        %2595 = vmatprep.subr.mxu0 0.0
        %2596 = vmatpush1.msra.mxu0 %v2560
        %2597 = vmatprep.subr.mxu0 0.0
        %2598 = vmatpush1.msra.mxu0 %v2559
        %2599 = vmatprep.subr.mxu0 0.0
        %2600 = vmatpush1.msra.mxu0 %v2558
        %2601 = vmatprep.subr.mxu0 0.0
        %2602 = vmatpush2.msra.mxu0 0.0
        %2603 = vmatprep.subr.mxu0 0.0
        %2604 = vmatpush2.msra.mxu0 0.0
        %2605 = vmatprep.subr.mxu0 0.0
        %2606 = vmatpush2.msra.mxu0 0.0
        %2607 = vmatprep.subr.mxu0 0.0
        %2608 = vmatpush2.msra.mxu0 0.0
        %2609 = vmatprep.subr.mxu0 0.0
        %2610 = vmatpush2.msra.mxu0 0.0
        %2611 = vmatprep.subr.mxu0 0.0
        %2612 = vmatpush2.msra.mxu0 0.0
        %2613 = vmatprep.subr.mxu0 0.0
        %2614 = vmatpush2.msra.mxu0 0.0
        %2615 = vmatprep.subr.mxu0 0.0
        %2616 = vmatpush2.msra.mxu0 0.0
        %2617 = vmatprep.subr.mxu0 0.0
        %2618 = vmatpush2.msra.mxu0 0.0
        %2619 = vmatprep.subr.mxu0 0.0
        %2620 = vmatpush2.msra.mxu0 0.0
        %2621 = vmatprep.subr.mxu0 0.0
        %2622 = vmatpush2.msra.mxu0 0.0
        %2623 = vmatprep.subr.mxu0 0.0
        %2624 = vmatpush2.msra.mxu0 0.0
        %2625 = vmatprep.subr.mxu0 0.0
        %2626 = vmatpush2.msra.mxu0 0.0
        %2627 = vmatprep.subr.mxu0 0.0
        %2628 = vmatpush2.msra.mxu0 0.0
        %2629 = vmatprep.subr.mxu0 0.0
        %2630 = vmatpush2.msra.mxu0 0.0
        %2631 = vmatprep.subr.mxu0 0.0
        %2632 = vmatpush2.msra.mxu0 0.0
        %2633 = vmatprep.mubr.f32.mxu0 0.0
        %2634 = vmatmul.mubr.f32.gmra.mxu0 %v1039
        %v2635 = vpop.f32.mrf.mxu0
        %v2636 = vadd.f32 %v2567, %v2635
        %v2637 = vpop.f32.mrf.mxu0
        %2638 = vdwg.mxu0
        %v2640 = vsel %vm1037, %v1023, 0
        %2642 = vmatprep.subr.mxu0 0.0
        %2643 = vmatpush1.msra.mxu0 0.0
        %2644 = vmatprep.subr.mxu0 0.0
        %2645 = vmatpush1.msra.mxu0 0.0
        %2646 = vmatprep.subr.mxu0 0.0
        %2647 = vmatpush1.msra.mxu0 0.0
        %2648 = vmatprep.subr.mxu0 0.0
        %2649 = vmatpush1.msra.mxu0 0.0
        %2650 = vmatprep.subr.mxu0 0.0
        %2651 = vmatpush1.msra.mxu0 0.0
        %2652 = vmatprep.subr.mxu0 0.0
        %2653 = vmatpush1.msra.mxu0 0.0
        %2654 = vmatprep.subr.mxu0 0.0
        %2655 = vmatpush1.msra.mxu0 0.0
        %2656 = vmatprep.subr.mxu0 0.0
        %2657 = vmatpush1.msra.mxu0 0.0
        %2658 = vmatprep.subr.mxu0 0.0
        %2659 = vmatpush1.msra.mxu0 0.0
        %2660 = vmatprep.subr.mxu0 0.0
        %2661 = vmatpush1.msra.mxu0 0.0
        %2662 = vmatprep.subr.mxu0 0.0
        %2663 = vmatpush1.msra.mxu0 0.0
        %2664 = vmatprep.subr.mxu0 0.0
        %2665 = vmatpush1.msra.mxu0 0.0
        %2666 = vmatprep.subr.mxu0 0.0
        %2667 = vmatpush1.msra.mxu0 %v2557
        %2668 = vmatprep.subr.mxu0 0.0
        %2669 = vmatpush1.msra.mxu0 %v2556
        %2670 = vmatprep.subr.mxu0 0.0
        %2671 = vmatpush1.msra.mxu0 %v2555
        %2672 = vmatprep.subr.mxu0 0.0
        %2673 = vmatpush1.msra.mxu0 %v2554
        %2674 = vmatprep.subr.mxu0 0.0
        %2675 = vmatpush2.msra.mxu0 0.0
        %2676 = vmatprep.subr.mxu0 0.0
        %2677 = vmatpush2.msra.mxu0 0.0
        %2678 = vmatprep.subr.mxu0 0.0
        %2679 = vmatpush2.msra.mxu0 0.0
        %2680 = vmatprep.subr.mxu0 0.0
        %2681 = vmatpush2.msra.mxu0 0.0
        %2682 = vmatprep.subr.mxu0 0.0
        %2683 = vmatpush2.msra.mxu0 0.0
        %2684 = vmatprep.subr.mxu0 0.0
        %2685 = vmatpush2.msra.mxu0 0.0
        %2686 = vmatprep.subr.mxu0 0.0
        %2687 = vmatpush2.msra.mxu0 0.0
        %2688 = vmatprep.subr.mxu0 0.0
        %2689 = vmatpush2.msra.mxu0 0.0
        %2690 = vmatprep.subr.mxu0 0.0
        %2691 = vmatpush2.msra.mxu0 0.0
        %2692 = vmatprep.subr.mxu0 0.0
        %2693 = vmatpush2.msra.mxu0 0.0
        %2694 = vmatprep.subr.mxu0 0.0
        %2695 = vmatpush2.msra.mxu0 0.0
        %2696 = vmatprep.subr.mxu0 0.0
        %2697 = vmatpush2.msra.mxu0 0.0
        %2698 = vmatprep.subr.mxu0 0.0
        %2699 = vmatpush2.msra.mxu0 0.0
        %2700 = vmatprep.subr.mxu0 0.0
        %2701 = vmatpush2.msra.mxu0 0.0
        %2702 = vmatprep.subr.mxu0 0.0
        %2703 = vmatpush2.msra.mxu0 0.0
        %2704 = vmatprep.subr.mxu0 0.0
        %2705 = vmatpush2.msra.mxu0 0.0
        %2706 = vmatprep.mubr.f32.mxu0 0.0
        %2707 = vmatmul.mubr.f32.gmra.mxu0 %v2640
        %v2708 = vpop.f32.mrf.mxu0
        %v2709 = vadd.f32 %v844, %v2708
        %v2710 = vpop.f32.mrf.mxu0
        %2711 = vdwg.mxu0
        %v2712 = vsel %vm949, %v2709, -inf
        %2713 = vmax.xlane.f32.xlu0 %v2712
        %v2714 = vpop.xlane.xlu0 %2713
        %vm2715 = vcmp.ge.f32.partialorder %v2709, %v2714
        %v2716 = vsel %vm2715, %v832, 10.0
        %v2717 = vsel %vm949, %v2716, inf
        %2718 = vmin.xlane.f32.xlu0 %v2717
        %v2719 = vpop.xlane.xlu0 %2718
        %v2720 = vld [vmem:[%s19] sm:$0xff]
        %v2721 = vld [vmem:[%s19 + $0x8] sm:$0xff]
        %v2722 = vld [vmem:[%s19 + $0x10] sm:$0xff]
        %v2723 = vld [vmem:[%s19 + $0x18] sm:$0xff]
        %2724 = vmatprep.subr.mxu0 0.0
        %2725 = vmatpush1.msra.mxu0 0.0
        %2726 = vmatprep.subr.mxu0 0.0
        %2727 = vmatpush1.msra.mxu0 0.0
        %2728 = vmatprep.subr.mxu0 0.0
        %2729 = vmatpush1.msra.mxu0 0.0
        %2730 = vmatprep.subr.mxu0 0.0
        %2731 = vmatpush1.msra.mxu0 0.0
        %2732 = vmatprep.subr.mxu0 0.0
        %2733 = vmatpush1.msra.mxu0 0.0
        %2734 = vmatprep.subr.mxu0 0.0
        %2735 = vmatpush1.msra.mxu0 0.0
        %2736 = vmatprep.subr.mxu0 0.0
        %2737 = vmatpush1.msra.mxu0 0.0
        %2738 = vmatprep.subr.mxu0 0.0
        %2739 = vmatpush1.msra.mxu0 0.0
        %2740 = vmatprep.subr.mxu0 0.0
        %2741 = vmatpush1.msra.mxu0 0.0
        %2742 = vmatprep.subr.mxu0 0.0
        %2743 = vmatpush1.msra.mxu0 0.0
        %2744 = vmatprep.subr.mxu0 0.0
        %2745 = vmatpush1.msra.mxu0 0.0
        %2746 = vmatprep.subr.mxu0 0.0
        %2747 = vmatpush1.msra.mxu0 0.0
        %2748 = vmatprep.subr.mxu0 0.0
        %2749 = vmatpush1.msra.mxu0 %v2723
        %2750 = vmatprep.subr.mxu0 0.0
        %2751 = vmatpush1.msra.mxu0 %v2722
        %2752 = vmatprep.subr.mxu0 0.0
        %2753 = vmatpush1.msra.mxu0 %v2721
        %2754 = vmatprep.subr.mxu0 0.0
        %2755 = vmatpush1.msra.mxu0 %v2720
        %2756 = vmatprep.subr.mxu0 0.0
        %2757 = vmatpush2.msra.mxu0 0.0
        %2758 = vmatprep.subr.mxu0 0.0
        %2759 = vmatpush2.msra.mxu0 0.0
        %2760 = vmatprep.subr.mxu0 0.0
        %2761 = vmatpush2.msra.mxu0 0.0
        %2762 = vmatprep.subr.mxu0 0.0
        %2763 = vmatpush2.msra.mxu0 0.0
        %2764 = vmatprep.subr.mxu0 0.0
        %2765 = vmatpush2.msra.mxu0 0.0
        %2766 = vmatprep.subr.mxu0 0.0
        %2767 = vmatpush2.msra.mxu0 0.0
        %2768 = vmatprep.subr.mxu0 0.0
        %2769 = vmatpush2.msra.mxu0 0.0
        %2770 = vmatprep.subr.mxu0 0.0
        %2771 = vmatpush2.msra.mxu0 0.0
        %2772 = vmatprep.subr.mxu0 0.0
        %2773 = vmatpush2.msra.mxu0 0.0
        %2774 = vmatprep.subr.mxu0 0.0
        %2775 = vmatpush2.msra.mxu0 0.0
        %2776 = vmatprep.subr.mxu0 0.0
        %2777 = vmatpush2.msra.mxu0 0.0
        %2778 = vmatprep.subr.mxu0 0.0
        %2779 = vmatpush2.msra.mxu0 0.0
        %2780 = vmatprep.subr.mxu0 0.0
        %2781 = vmatpush2.msra.mxu0 0.0
        %2782 = vmatprep.subr.mxu0 0.0
        %2783 = vmatpush2.msra.mxu0 0.0
        %2784 = vmatprep.subr.mxu0 0.0
        %2785 = vmatpush2.msra.mxu0 0.0
        %2786 = vmatprep.subr.mxu0 0.0
        %2787 = vmatpush2.msra.mxu0 0.0
        %2788 = vmatprep.mubr.f32.mxu0 0.0
        %2789 = vmatmul.mubr.f32.gmra.mxu0 %v2640
        %v2790 = vpop.f32.mrf.mxu0
        %v2791 = vadd.f32 0.0, %v2790
        %v2792 = vpop.f32.mrf.mxu0
        %2793 = vdwg.mxu0
        %v2794 = vadd.f32 %v2636, %v2791
        %v2795 = vld [vmem:[%s20] sm:$0xff]
        %v2796 = vld [vmem:[%s20 + $0x8] sm:$0xff]
        %v2797 = vld [vmem:[%s20 + $0x10] sm:$0xff]
        %v2798 = vld [vmem:[%s20 + $0x18] sm:$0xff]
        %v2800 = vsel %vm1037, 0.0, 0
        %2802 = vmatprep.subr.mxu0 0.0
        %2803 = vmatpush1.msra.mxu0 0.0
        %2804 = vmatprep.subr.mxu0 0.0
        %2805 = vmatpush1.msra.mxu0 0.0
        %2806 = vmatprep.subr.mxu0 0.0
        %2807 = vmatpush1.msra.mxu0 0.0
        %2808 = vmatprep.subr.mxu0 0.0
        %2809 = vmatpush1.msra.mxu0 0.0
        %2810 = vmatprep.subr.mxu0 0.0
        %2811 = vmatpush1.msra.mxu0 0.0
        %2812 = vmatprep.subr.mxu0 0.0
        %2813 = vmatpush1.msra.mxu0 0.0
        %2814 = vmatprep.subr.mxu0 0.0
        %2815 = vmatpush1.msra.mxu0 0.0
        %2816 = vmatprep.subr.mxu0 0.0
        %2817 = vmatpush1.msra.mxu0 0.0
        %2818 = vmatprep.subr.mxu0 0.0
        %2819 = vmatpush1.msra.mxu0 0.0
        %2820 = vmatprep.subr.mxu0 0.0
        %2821 = vmatpush1.msra.mxu0 0.0
        %2822 = vmatprep.subr.mxu0 0.0
        %2823 = vmatpush1.msra.mxu0 0.0
        %2824 = vmatprep.subr.mxu0 0.0
        %2825 = vmatpush1.msra.mxu0 0.0
        %2826 = vmatprep.subr.mxu0 0.0
        %2827 = vmatpush1.msra.mxu0 %v2798
        %2828 = vmatprep.subr.mxu0 0.0
        %2829 = vmatpush1.msra.mxu0 %v2797
        %2830 = vmatprep.subr.mxu0 0.0
        %2831 = vmatpush1.msra.mxu0 %v2796
        %2832 = vmatprep.subr.mxu0 0.0
        %2833 = vmatpush1.msra.mxu0 %v2795
        %2834 = vmatprep.subr.mxu0 0.0
        %2835 = vmatpush2.msra.mxu0 0.0
        %2836 = vmatprep.subr.mxu0 0.0
        %2837 = vmatpush2.msra.mxu0 0.0
        %2838 = vmatprep.subr.mxu0 0.0
        %2839 = vmatpush2.msra.mxu0 0.0
        %2840 = vmatprep.subr.mxu0 0.0
        %2841 = vmatpush2.msra.mxu0 0.0
        %2842 = vmatprep.subr.mxu0 0.0
        %2843 = vmatpush2.msra.mxu0 0.0
        %2844 = vmatprep.subr.mxu0 0.0
        %2845 = vmatpush2.msra.mxu0 0.0
        %2846 = vmatprep.subr.mxu0 0.0
        %2847 = vmatpush2.msra.mxu0 0.0
        %2848 = vmatprep.subr.mxu0 0.0
        %2849 = vmatpush2.msra.mxu0 0.0
        %2850 = vmatprep.subr.mxu0 0.0
        %2851 = vmatpush2.msra.mxu0 0.0
        %2852 = vmatprep.subr.mxu0 0.0
        %2853 = vmatpush2.msra.mxu0 0.0
        %2854 = vmatprep.subr.mxu0 0.0
        %2855 = vmatpush2.msra.mxu0 0.0
        %2856 = vmatprep.subr.mxu0 0.0
        %2857 = vmatpush2.msra.mxu0 0.0
        %2858 = vmatprep.subr.mxu0 0.0
        %2859 = vmatpush2.msra.mxu0 0.0
        %2860 = vmatprep.subr.mxu0 0.0
        %2861 = vmatpush2.msra.mxu0 0.0
        %2862 = vmatprep.subr.mxu0 0.0
        %2863 = vmatpush2.msra.mxu0 0.0
        %2864 = vmatprep.subr.mxu0 0.0
        %2865 = vmatpush2.msra.mxu0 0.0
        %2866 = vmatprep.mubr.f32.mxu0 0.0
        %2867 = vmatmul.mubr.f32.gmra.mxu0 %v2800
        %v2868 = vpop.f32.mrf.mxu0
        %v2869 = vadd.f32 0.0, %v2868
        %v2870 = vpop.f32.mrf.mxu0
        %2871 = vdwg.mxu0
        %v2872 = vadd.f32 %v2794, %v2869
        %v2873 = vxor.u32 %v2872, 2147483648
        %v2874 = vmul.f32 %v2873, 1.442695
        %v2875 = vpow.pop %v2874
        %v2876 = vadd.f32 %v2875, 1.0
        %v2877 = vrcp.pop %v2876
        %v2878 = vmul.f32 1.0, %v2877
        %v2879 = vtanh.pop %v2872
        %v2880 = vmul.f32 %v2878, 0.0
        %2882 = vrot.lane.b32.xlu0 %v2879, 64
        %v2883 = vpop.permute.xlu0 %2882
        %v2885 = vmul.f32 %v2878, %v2883
        %2887 = vrot.lane.b32.xlu0 %v2885, 32
        %v2888 = vpop.permute.xlu0 %2887
        %v2890 = vadd.f32 %v2880, %v2888
        %v2891 = vtanh.pop %v2890
        %2893 = vrot.lane.b32.xlu0 %v2891, 64
        %v2894 = vpop.permute.xlu0 %2893
        %v2896 = vmul.f32 %v2878, %v2894
        %2898 = vrot.lane.b32.xlu0 %v2896, 32
        %v2899 = vpop.permute.xlu0 %2898
        %v2900 = vsel %vm1037, %v2899, 0
        %2902 = vmatprep.subr.mxu0 0.0
        %2903 = vmatpush1.msra.mxu0 0.0
        %2904 = vmatprep.subr.mxu0 0.0
        %2905 = vmatpush1.msra.mxu0 0.0
        %2906 = vmatprep.subr.mxu0 0.0
        %2907 = vmatpush1.msra.mxu0 0.0
        %2908 = vmatprep.subr.mxu0 0.0
        %2909 = vmatpush1.msra.mxu0 0.0
        %2910 = vmatprep.subr.mxu0 0.0
        %2911 = vmatpush1.msra.mxu0 0.0
        %2912 = vmatprep.subr.mxu0 0.0
        %2913 = vmatpush1.msra.mxu0 0.0
        %2914 = vmatprep.subr.mxu0 0.0
        %2915 = vmatpush1.msra.mxu0 0.0
        %2916 = vmatprep.subr.mxu0 0.0
        %2917 = vmatpush1.msra.mxu0 0.0
        %2918 = vmatprep.subr.mxu0 0.0
        %2919 = vmatpush1.msra.mxu0 0.0
        %2920 = vmatprep.subr.mxu0 0.0
        %2921 = vmatpush1.msra.mxu0 0.0
        %2922 = vmatprep.subr.mxu0 0.0
        %2923 = vmatpush1.msra.mxu0 0.0
        %2924 = vmatprep.subr.mxu0 0.0
        %2925 = vmatpush1.msra.mxu0 0.0
        %2926 = vmatprep.subr.mxu0 0.0
        %2927 = vmatpush1.msra.mxu0 %v2557
        %2928 = vmatprep.subr.mxu0 0.0
        %2929 = vmatpush1.msra.mxu0 %v2556
        %2930 = vmatprep.subr.mxu0 0.0
        %2931 = vmatpush1.msra.mxu0 %v2555
        %2932 = vmatprep.subr.mxu0 0.0
        %2933 = vmatpush1.msra.mxu0 %v2554
        %2934 = vmatprep.subr.mxu0 0.0
        %2935 = vmatpush2.msra.mxu0 0.0
        %2936 = vmatprep.subr.mxu0 0.0
        %2937 = vmatpush2.msra.mxu0 0.0
        %2938 = vmatprep.subr.mxu0 0.0
        %2939 = vmatpush2.msra.mxu0 0.0
        %2940 = vmatprep.subr.mxu0 0.0
        %2941 = vmatpush2.msra.mxu0 0.0
        %2942 = vmatprep.subr.mxu0 0.0
        %2943 = vmatpush2.msra.mxu0 0.0
        %2944 = vmatprep.subr.mxu0 0.0
        %2945 = vmatpush2.msra.mxu0 0.0
        %2946 = vmatprep.subr.mxu0 0.0
        %2947 = vmatpush2.msra.mxu0 0.0
        %2948 = vmatprep.subr.mxu0 0.0
        %2949 = vmatpush2.msra.mxu0 0.0
        %2950 = vmatprep.subr.mxu0 0.0
        %2951 = vmatpush2.msra.mxu0 0.0
        %2952 = vmatprep.subr.mxu0 0.0
        %2953 = vmatpush2.msra.mxu0 0.0
        %2954 = vmatprep.subr.mxu0 0.0
        %2955 = vmatpush2.msra.mxu0 0.0
        %2956 = vmatprep.subr.mxu0 0.0
        %2957 = vmatpush2.msra.mxu0 0.0
        %2958 = vmatprep.subr.mxu0 0.0
        %2959 = vmatpush2.msra.mxu0 0.0
        %2960 = vmatprep.subr.mxu0 0.0
        %2961 = vmatpush2.msra.mxu0 0.0
        %2962 = vmatprep.subr.mxu0 0.0
        %2963 = vmatpush2.msra.mxu0 0.0
        %2964 = vmatprep.subr.mxu0 0.0
        %2965 = vmatpush2.msra.mxu0 0.0
        %2966 = vmatprep.mubr.f32.mxu0 0.0
        %2967 = vmatmul.mubr.f32.gmra.mxu0 %v2900
        %v2968 = vpop.f32.mrf.mxu0
        %v2969 = vadd.f32 0.0, %v2968
        %v2970 = vpop.f32.mrf.mxu0
        %2971 = vdwg.mxu0
        %v2973 = vsel %vm1114, %v2552, 0
        %2975 = vmatprep.subr.mxu0 0.0
        %2976 = vmatpush1.msra.mxu0 0.0
        %2977 = vmatprep.subr.mxu0 0.0
        %2978 = vmatpush1.msra.mxu0 0.0
        %2979 = vmatprep.subr.mxu0 0.0
        %2980 = vmatpush1.msra.mxu0 0.0
        %2981 = vmatprep.subr.mxu0 0.0
        %2982 = vmatpush1.msra.mxu0 0.0
        %2983 = vmatprep.subr.mxu0 0.0
        %2984 = vmatpush1.msra.mxu0 0.0
        %2985 = vmatprep.subr.mxu0 0.0
        %2986 = vmatpush1.msra.mxu0 0.0
        %2987 = vmatprep.subr.mxu0 0.0
        %2988 = vmatpush1.msra.mxu0 0.0
        %2989 = vmatprep.subr.mxu0 0.0
        %2990 = vmatpush1.msra.mxu0 0.0
        %2991 = vmatprep.subr.mxu0 0.0
        %2992 = vmatpush1.msra.mxu0 0.0
        %2993 = vmatprep.subr.mxu0 0.0
        %2994 = vmatpush1.msra.mxu0 0.0
        %2995 = vmatprep.subr.mxu0 0.0
        %2996 = vmatpush1.msra.mxu0 0.0
        %2997 = vmatprep.subr.mxu0 0.0
        %2998 = vmatpush1.msra.mxu0 0.0
        %2999 = vmatprep.subr.mxu0 0.0
        %3000 = vmatpush1.msra.mxu0 0.0
        %3001 = vmatprep.subr.mxu0 0.0
        %3002 = vmatpush1.msra.mxu0 0.0
        %3003 = vmatprep.subr.mxu0 0.0
        %3004 = vmatpush1.msra.mxu0 0.0
        %3005 = vmatprep.subr.mxu0 0.0
        %3006 = vmatpush1.msra.mxu0 %v2969
        %3007 = vmatprep.subr.mxu0 0.0
        %3008 = vmatpush2.msra.mxu0 0.0
        %3009 = vmatprep.subr.mxu0 0.0
        %3010 = vmatpush2.msra.mxu0 0.0
        %3011 = vmatprep.subr.mxu0 0.0
        %3012 = vmatpush2.msra.mxu0 0.0
        %3013 = vmatprep.subr.mxu0 0.0
        %3014 = vmatpush2.msra.mxu0 0.0
        %3015 = vmatprep.subr.mxu0 0.0
        %3016 = vmatpush2.msra.mxu0 0.0
        %3017 = vmatprep.subr.mxu0 0.0
        %3018 = vmatpush2.msra.mxu0 0.0
        %3019 = vmatprep.subr.mxu0 0.0
        %3020 = vmatpush2.msra.mxu0 0.0
        %3021 = vmatprep.subr.mxu0 0.0
        %3022 = vmatpush2.msra.mxu0 0.0
        %3023 = vmatprep.subr.mxu0 0.0
        %3024 = vmatpush2.msra.mxu0 0.0
        %3025 = vmatprep.subr.mxu0 0.0
        %3026 = vmatpush2.msra.mxu0 0.0
        %3027 = vmatprep.subr.mxu0 0.0
        %3028 = vmatpush2.msra.mxu0 0.0
        %3029 = vmatprep.subr.mxu0 0.0
        %3030 = vmatpush2.msra.mxu0 0.0
        %3031 = vmatprep.subr.mxu0 0.0
        %3032 = vmatpush2.msra.mxu0 0.0
        %3033 = vmatprep.subr.mxu0 0.0
        %3034 = vmatpush2.msra.mxu0 0.0
        %3035 = vmatprep.subr.mxu0 0.0
        %3036 = vmatpush2.msra.mxu0 0.0
        %3037 = vmatprep.subr.mxu0 0.0
        %3038 = vmatpush2.msra.mxu0 0.0
        %3039 = vmatprep.mubr.f32.mxu0 0.0
        %3040 = vmatmul.mubr.f32.gmra.mxu0 %v2973
        %v3041 = vpop.f32.mrf.mxu0
        %v3042 = vadd.f32 %v844, %v3041
        %v3043 = vpop.f32.mrf.mxu0
        %3044 = vdwg.mxu0
        %v3045 = vsel %vm949, %v3042, -inf
        %3046 = vmax.xlane.f32.xlu0 %v3045
        %v3047 = vpop.xlane.xlu0 %3046
        %vm3048 = vcmp.ge.f32.partialorder %v3042, %v3047
        %v3049 = vsel %vm3048, %v832, 10.0
        %v3050 = vsel %vm949, %v3049, inf
        %3051 = vmin.xlane.f32.xlu0 %v3050
        %v3052 = vpop.xlane.xlu0 %3051
        %vm3053 = vcmp.eq.f32.partialorder %v832, %v3052
        %v3054 = vsel %vm3053, 1, 0
        %v3055 = vcvt.s32.f32 %v3054
        %v3056 = vld [vmem:[%s5] sm:$0xff]
        %v3057 = vld [vmem:[%s5 + $0x8] sm:$0x3]
        %v3059 = vsel %vm949, %v3055, 0
        %v3062 = vsel %vm873, %v3057, 0
        %3064 = vmatprep.subr.mxu0 0.0
        %3065 = vmatpush1.msra.mxu0 0.0
        %3066 = vmatprep.subr.mxu0 0.0
        %3067 = vmatpush1.msra.mxu0 0.0
        %3068 = vmatprep.subr.mxu0 0.0
        %3069 = vmatpush1.msra.mxu0 0.0
        %3070 = vmatprep.subr.mxu0 0.0
        %3071 = vmatpush1.msra.mxu0 0.0
        %3072 = vmatprep.subr.mxu0 0.0
        %3073 = vmatpush1.msra.mxu0 0.0
        %3074 = vmatprep.subr.mxu0 0.0
        %3075 = vmatpush1.msra.mxu0 0.0
        %3076 = vmatprep.subr.mxu0 0.0
        %3077 = vmatpush1.msra.mxu0 0.0
        %3078 = vmatprep.subr.mxu0 0.0
        %3079 = vmatpush1.msra.mxu0 0.0
        %3080 = vmatprep.subr.mxu0 0.0
        %3081 = vmatpush1.msra.mxu0 0.0
        %3082 = vmatprep.subr.mxu0 0.0
        %3083 = vmatpush1.msra.mxu0 0.0
        %3084 = vmatprep.subr.mxu0 0.0
        %3085 = vmatpush1.msra.mxu0 0.0
        %3086 = vmatprep.subr.mxu0 0.0
        %3087 = vmatpush1.msra.mxu0 0.0
        %3088 = vmatprep.subr.mxu0 0.0
        %3089 = vmatpush1.msra.mxu0 0.0
        %3090 = vmatprep.subr.mxu0 0.0
        %3091 = vmatpush1.msra.mxu0 0.0
        %3092 = vmatprep.subr.mxu0 0.0
        %3093 = vmatpush1.msra.mxu0 %v3062
        %3094 = vmatprep.subr.mxu0 0.0
        %3095 = vmatpush1.msra.mxu0 %v3056
        %3096 = vmatprep.subr.mxu0 0.0
        %3097 = vmatpush2.msra.mxu0 0.0
        %3098 = vmatprep.subr.mxu0 0.0
        %3099 = vmatpush2.msra.mxu0 0.0
        %3100 = vmatprep.subr.mxu0 0.0
        %3101 = vmatpush2.msra.mxu0 0.0
        %3102 = vmatprep.subr.mxu0 0.0
        %3103 = vmatpush2.msra.mxu0 0.0
        %3104 = vmatprep.subr.mxu0 0.0
        %3105 = vmatpush2.msra.mxu0 0.0
        %3106 = vmatprep.subr.mxu0 0.0
        %3107 = vmatpush2.msra.mxu0 0.0
        %3108 = vmatprep.subr.mxu0 0.0
        %3109 = vmatpush2.msra.mxu0 0.0
        %3110 = vmatprep.subr.mxu0 0.0
        %3111 = vmatpush2.msra.mxu0 0.0
        %3112 = vmatprep.subr.mxu0 0.0
        %3113 = vmatpush2.msra.mxu0 0.0
        %3114 = vmatprep.subr.mxu0 0.0
        %3115 = vmatpush2.msra.mxu0 0.0
        %3116 = vmatprep.subr.mxu0 0.0
        %3117 = vmatpush2.msra.mxu0 0.0
        %3118 = vmatprep.subr.mxu0 0.0
        %3119 = vmatpush2.msra.mxu0 0.0
        %3120 = vmatprep.subr.mxu0 0.0
        %3121 = vmatpush2.msra.mxu0 0.0
        %3122 = vmatprep.subr.mxu0 0.0
        %3123 = vmatpush2.msra.mxu0 0.0
        %3124 = vmatprep.subr.mxu0 0.0
        %3125 = vmatpush2.msra.mxu0 0.0
        %3126 = vmatprep.subr.mxu0 0.0
        %3127 = vmatpush2.msra.mxu0 0.0
        %3128 = vmatprep.mubr.f32.mxu0 0.0
        %3129 = vmatmul.mubr.f32.gmra.mxu0 %v3059
        %v3130 = vpop.f32.mrf.mxu0
        %v3131 = vadd.f32 %v837, %v3130
        %v3132 = vpop.f32.mrf.mxu0
        %3133 = vdwg.mxu0
        %v3135 = vsel %vm1037, %v3131, 0
        %3137 = vmatprep.subr.mxu0 0.0
        %3138 = vmatpush1.msra.mxu0 0.0
        %3139 = vmatprep.subr.mxu0 0.0
        %3140 = vmatpush1.msra.mxu0 0.0
        %3141 = vmatprep.subr.mxu0 0.0
        %3142 = vmatpush1.msra.mxu0 0.0
        %3143 = vmatprep.subr.mxu0 0.0
        %3144 = vmatpush1.msra.mxu0 0.0
        %3145 = vmatprep.subr.mxu0 0.0
        %3146 = vmatpush1.msra.mxu0 0.0
        %3147 = vmatprep.subr.mxu0 0.0
        %3148 = vmatpush1.msra.mxu0 0.0
        %3149 = vmatprep.subr.mxu0 0.0
        %3150 = vmatpush1.msra.mxu0 0.0
        %3151 = vmatprep.subr.mxu0 0.0
        %3152 = vmatpush1.msra.mxu0 0.0
        %3153 = vmatprep.subr.mxu0 0.0
        %3154 = vmatpush1.msra.mxu0 0.0
        %3155 = vmatprep.subr.mxu0 0.0
        %3156 = vmatpush1.msra.mxu0 0.0
        %3157 = vmatprep.subr.mxu0 0.0
        %3158 = vmatpush1.msra.mxu0 0.0
        %3159 = vmatprep.subr.mxu0 0.0
        %3160 = vmatpush1.msra.mxu0 0.0
        %3161 = vmatprep.subr.mxu0 0.0
        %3162 = vmatpush1.msra.mxu0 %v2723
        %3163 = vmatprep.subr.mxu0 0.0
        %3164 = vmatpush1.msra.mxu0 %v2722
        %3165 = vmatprep.subr.mxu0 0.0
        %3166 = vmatpush1.msra.mxu0 %v2721
        %3167 = vmatprep.subr.mxu0 0.0
        %3168 = vmatpush1.msra.mxu0 %v2720
        %3169 = vmatprep.subr.mxu0 0.0
        %3170 = vmatpush2.msra.mxu0 0.0
        %3171 = vmatprep.subr.mxu0 0.0
        %3172 = vmatpush2.msra.mxu0 0.0
        %3173 = vmatprep.subr.mxu0 0.0
        %3174 = vmatpush2.msra.mxu0 0.0
        %3175 = vmatprep.subr.mxu0 0.0
        %3176 = vmatpush2.msra.mxu0 0.0
        %3177 = vmatprep.subr.mxu0 0.0
        %3178 = vmatpush2.msra.mxu0 0.0
        %3179 = vmatprep.subr.mxu0 0.0
        %3180 = vmatpush2.msra.mxu0 0.0
        %3181 = vmatprep.subr.mxu0 0.0
        %3182 = vmatpush2.msra.mxu0 0.0
        %3183 = vmatprep.subr.mxu0 0.0
        %3184 = vmatpush2.msra.mxu0 0.0
        %3185 = vmatprep.subr.mxu0 0.0
        %3186 = vmatpush2.msra.mxu0 0.0
        %3187 = vmatprep.subr.mxu0 0.0
        %3188 = vmatpush2.msra.mxu0 0.0
        %3189 = vmatprep.subr.mxu0 0.0
        %3190 = vmatpush2.msra.mxu0 0.0
        %3191 = vmatprep.subr.mxu0 0.0
        %3192 = vmatpush2.msra.mxu0 0.0
        %3193 = vmatprep.subr.mxu0 0.0
        %3194 = vmatpush2.msra.mxu0 0.0
        %3195 = vmatprep.subr.mxu0 0.0
        %3196 = vmatpush2.msra.mxu0 0.0
        %3197 = vmatprep.subr.mxu0 0.0
        %3198 = vmatpush2.msra.mxu0 0.0
        %3199 = vmatprep.subr.mxu0 0.0
        %3200 = vmatpush2.msra.mxu0 0.0
        %3201 = vmatprep.mubr.f32.mxu0 0.0
        %3202 = vmatmul.mubr.f32.gmra.mxu0 %v3135
        %v3203 = vpop.f32.mrf.mxu0
        %v3204 = vadd.f32 0.0, %v3203
        %v3205 = vpop.f32.mrf.mxu0
        %3206 = vdwg.mxu0
        %v3207 = vadd.f32 %v2636, %v3204
        %3208 = vmatprep.subr.mxu0 0.0
        %3209 = vmatpush1.msra.mxu0 0.0
        %3210 = vmatprep.subr.mxu0 0.0
        %3211 = vmatpush1.msra.mxu0 0.0
        %3212 = vmatprep.subr.mxu0 0.0
        %3213 = vmatpush1.msra.mxu0 0.0
        %3214 = vmatprep.subr.mxu0 0.0
        %3215 = vmatpush1.msra.mxu0 0.0
        %3216 = vmatprep.subr.mxu0 0.0
        %3217 = vmatpush1.msra.mxu0 0.0
        %3218 = vmatprep.subr.mxu0 0.0
        %3219 = vmatpush1.msra.mxu0 0.0
        %3220 = vmatprep.subr.mxu0 0.0
        %3221 = vmatpush1.msra.mxu0 0.0
        %3222 = vmatprep.subr.mxu0 0.0
        %3223 = vmatpush1.msra.mxu0 0.0
        %3224 = vmatprep.subr.mxu0 0.0
        %3225 = vmatpush1.msra.mxu0 0.0
        %3226 = vmatprep.subr.mxu0 0.0
        %3227 = vmatpush1.msra.mxu0 0.0
        %3228 = vmatprep.subr.mxu0 0.0
        %3229 = vmatpush1.msra.mxu0 0.0
        %3230 = vmatprep.subr.mxu0 0.0
        %3231 = vmatpush1.msra.mxu0 0.0
        %3232 = vmatprep.subr.mxu0 0.0
        %3233 = vmatpush1.msra.mxu0 %v2798
        %3234 = vmatprep.subr.mxu0 0.0
        %3235 = vmatpush1.msra.mxu0 %v2797
        %3236 = vmatprep.subr.mxu0 0.0
        %3237 = vmatpush1.msra.mxu0 %v2796
        %3238 = vmatprep.subr.mxu0 0.0
        %3239 = vmatpush1.msra.mxu0 %v2795
        %3240 = vmatprep.subr.mxu0 0.0
        %3241 = vmatpush2.msra.mxu0 0.0
        %3242 = vmatprep.subr.mxu0 0.0
        %3243 = vmatpush2.msra.mxu0 0.0
        %3244 = vmatprep.subr.mxu0 0.0
        %3245 = vmatpush2.msra.mxu0 0.0
        %3246 = vmatprep.subr.mxu0 0.0
        %3247 = vmatpush2.msra.mxu0 0.0
        %3248 = vmatprep.subr.mxu0 0.0
        %3249 = vmatpush2.msra.mxu0 0.0
        %3250 = vmatprep.subr.mxu0 0.0
        %3251 = vmatpush2.msra.mxu0 0.0
        %3252 = vmatprep.subr.mxu0 0.0
        %3253 = vmatpush2.msra.mxu0 0.0
        %3254 = vmatprep.subr.mxu0 0.0
        %3255 = vmatpush2.msra.mxu0 0.0
        %3256 = vmatprep.subr.mxu0 0.0
        %3257 = vmatpush2.msra.mxu0 0.0
        %3258 = vmatprep.subr.mxu0 0.0
        %3259 = vmatpush2.msra.mxu0 0.0
        %3260 = vmatprep.subr.mxu0 0.0
        %3261 = vmatpush2.msra.mxu0 0.0
        %3262 = vmatprep.subr.mxu0 0.0
        %3263 = vmatpush2.msra.mxu0 0.0
        %3264 = vmatprep.subr.mxu0 0.0
        %3265 = vmatpush2.msra.mxu0 0.0
        %3266 = vmatprep.subr.mxu0 0.0
        %3267 = vmatpush2.msra.mxu0 0.0
        %3268 = vmatprep.subr.mxu0 0.0
        %3269 = vmatpush2.msra.mxu0 0.0
        %3270 = vmatprep.subr.mxu0 0.0
        %3271 = vmatpush2.msra.mxu0 0.0
        %3272 = vmatprep.mubr.f32.mxu0 0.0
        %3273 = vmatmul.mubr.f32.gmra.mxu0 %v2900
        %v3274 = vpop.f32.mrf.mxu0
        %v3275 = vadd.f32 0.0, %v3274
        %v3276 = vpop.f32.mrf.mxu0
        %3277 = vdwg.mxu0
        %v3278 = vadd.f32 %v3207, %v3275
        %v3279 = vxor.u32 %v3278, 2147483648
        %v3280 = vmul.f32 %v3279, 1.442695
        %v3281 = vpow.pop %v3280
        %v3282 = vadd.f32 %v3281, 1.0
        %v3283 = vrcp.pop %v3282
        %v3284 = vmul.f32 1.0, %v3283
        %v3285 = vtanh.pop %v3278
        %v3286 = vmul.f32 %v3284, %v2890
        %3288 = vrot.lane.b32.xlu0 %v3285, 64
        %v3289 = vpop.permute.xlu0 %3288
        %v3291 = vmul.f32 %v3284, %v3289
        %3293 = vrot.lane.b32.xlu0 %v3291, 32
        %v3294 = vpop.permute.xlu0 %3293
        %v3296 = vadd.f32 %v3286, %v3294
        %v3297 = vtanh.pop %v3296
        %3299 = vrot.lane.b32.xlu0 %v3297, 64
        %v3300 = vpop.permute.xlu0 %3299
        %v3302 = vmul.f32 %v3284, %v3300
        %3304 = vrot.lane.b32.xlu0 %v3302, 32
        %v3305 = vpop.permute.xlu0 %3304
        %v3306 = vsel %vm1037, %v3305, 0
        %3308 = vmatprep.subr.mxu0 0.0
        %3309 = vmatpush1.msra.mxu0 0.0
        %3310 = vmatprep.subr.mxu0 0.0
        %3311 = vmatpush1.msra.mxu0 0.0
        %3312 = vmatprep.subr.mxu0 0.0
        %3313 = vmatpush1.msra.mxu0 0.0
        %3314 = vmatprep.subr.mxu0 0.0
        %3315 = vmatpush1.msra.mxu0 0.0
        %3316 = vmatprep.subr.mxu0 0.0
        %3317 = vmatpush1.msra.mxu0 0.0
        %3318 = vmatprep.subr.mxu0 0.0
        %3319 = vmatpush1.msra.mxu0 0.0
        %3320 = vmatprep.subr.mxu0 0.0
        %3321 = vmatpush1.msra.mxu0 0.0
        %3322 = vmatprep.subr.mxu0 0.0
        %3323 = vmatpush1.msra.mxu0 0.0
        %3324 = vmatprep.subr.mxu0 0.0
        %3325 = vmatpush1.msra.mxu0 0.0
        %3326 = vmatprep.subr.mxu0 0.0
        %3327 = vmatpush1.msra.mxu0 0.0
        %3328 = vmatprep.subr.mxu0 0.0
        %3329 = vmatpush1.msra.mxu0 0.0
        %3330 = vmatprep.subr.mxu0 0.0
        %3331 = vmatpush1.msra.mxu0 0.0
        %3332 = vmatprep.subr.mxu0 0.0
        %3333 = vmatpush1.msra.mxu0 %v2557
        %3334 = vmatprep.subr.mxu0 0.0
        %3335 = vmatpush1.msra.mxu0 %v2556
        %3336 = vmatprep.subr.mxu0 0.0
        %3337 = vmatpush1.msra.mxu0 %v2555
        %3338 = vmatprep.subr.mxu0 0.0
        %3339 = vmatpush1.msra.mxu0 %v2554
        %3340 = vmatprep.subr.mxu0 0.0
        %3341 = vmatpush2.msra.mxu0 0.0
        %3342 = vmatprep.subr.mxu0 0.0
        %3343 = vmatpush2.msra.mxu0 0.0
        %3344 = vmatprep.subr.mxu0 0.0
        %3345 = vmatpush2.msra.mxu0 0.0
        %3346 = vmatprep.subr.mxu0 0.0
        %3347 = vmatpush2.msra.mxu0 0.0
        %3348 = vmatprep.subr.mxu0 0.0
        %3349 = vmatpush2.msra.mxu0 0.0
        %3350 = vmatprep.subr.mxu0 0.0
        %3351 = vmatpush2.msra.mxu0 0.0
        %3352 = vmatprep.subr.mxu0 0.0
        %3353 = vmatpush2.msra.mxu0 0.0
        %3354 = vmatprep.subr.mxu0 0.0
        %3355 = vmatpush2.msra.mxu0 0.0
        %3356 = vmatprep.subr.mxu0 0.0
        %3357 = vmatpush2.msra.mxu0 0.0
        %3358 = vmatprep.subr.mxu0 0.0
        %3359 = vmatpush2.msra.mxu0 0.0
        %3360 = vmatprep.subr.mxu0 0.0
        %3361 = vmatpush2.msra.mxu0 0.0
        %3362 = vmatprep.subr.mxu0 0.0
        %3363 = vmatpush2.msra.mxu0 0.0
        %3364 = vmatprep.subr.mxu0 0.0
        %3365 = vmatpush2.msra.mxu0 0.0
        %3366 = vmatprep.subr.mxu0 0.0
        %3367 = vmatpush2.msra.mxu0 0.0
        %3368 = vmatprep.subr.mxu0 0.0
        %3369 = vmatpush2.msra.mxu0 0.0
        %3370 = vmatprep.subr.mxu0 0.0
        %3371 = vmatpush2.msra.mxu0 0.0
        %3372 = vmatprep.mubr.f32.mxu0 0.0
        %3373 = vmatmul.mubr.f32.gmra.mxu0 %v3306
        %v3374 = vpop.f32.mrf.mxu0
        %v3375 = vadd.f32 0.0, %v3374
        %v3376 = vpop.f32.mrf.mxu0
        %3377 = vdwg.mxu0
        %3378 = vmatprep.subr.mxu0 0.0
        %3379 = vmatpush1.msra.mxu0 0.0
        %3380 = vmatprep.subr.mxu0 0.0
        %3381 = vmatpush1.msra.mxu0 0.0
        %3382 = vmatprep.subr.mxu0 0.0
        %3383 = vmatpush1.msra.mxu0 0.0
        %3384 = vmatprep.subr.mxu0 0.0
        %3385 = vmatpush1.msra.mxu0 0.0
        %3386 = vmatprep.subr.mxu0 0.0
        %3387 = vmatpush1.msra.mxu0 0.0
        %3388 = vmatprep.subr.mxu0 0.0
        %3389 = vmatpush1.msra.mxu0 0.0
        %3390 = vmatprep.subr.mxu0 0.0
        %3391 = vmatpush1.msra.mxu0 0.0
        %3392 = vmatprep.subr.mxu0 0.0
        %3393 = vmatpush1.msra.mxu0 0.0
        %3394 = vmatprep.subr.mxu0 0.0
        %3395 = vmatpush1.msra.mxu0 0.0
        %3396 = vmatprep.subr.mxu0 0.0
        %3397 = vmatpush1.msra.mxu0 0.0
        %3398 = vmatprep.subr.mxu0 0.0
        %3399 = vmatpush1.msra.mxu0 0.0
        %3400 = vmatprep.subr.mxu0 0.0
        %3401 = vmatpush1.msra.mxu0 0.0
        %3402 = vmatprep.subr.mxu0 0.0
        %3403 = vmatpush1.msra.mxu0 0.0
        %3404 = vmatprep.subr.mxu0 0.0
        %3405 = vmatpush1.msra.mxu0 0.0
        %3406 = vmatprep.subr.mxu0 0.0
        %3407 = vmatpush1.msra.mxu0 0.0
        %3408 = vmatprep.subr.mxu0 0.0
        %3409 = vmatpush1.msra.mxu0 %v3375
        %3410 = vmatprep.subr.mxu0 0.0
        %3411 = vmatpush2.msra.mxu0 0.0
        %3412 = vmatprep.subr.mxu0 0.0
        %3413 = vmatpush2.msra.mxu0 0.0
        %3414 = vmatprep.subr.mxu0 0.0
        %3415 = vmatpush2.msra.mxu0 0.0
        %3416 = vmatprep.subr.mxu0 0.0
        %3417 = vmatpush2.msra.mxu0 0.0
        %3418 = vmatprep.subr.mxu0 0.0
        %3419 = vmatpush2.msra.mxu0 0.0
        %3420 = vmatprep.subr.mxu0 0.0
        %3421 = vmatpush2.msra.mxu0 0.0
        %3422 = vmatprep.subr.mxu0 0.0
        %3423 = vmatpush2.msra.mxu0 0.0
        %3424 = vmatprep.subr.mxu0 0.0
        %3425 = vmatpush2.msra.mxu0 0.0
        %3426 = vmatprep.subr.mxu0 0.0
        %3427 = vmatpush2.msra.mxu0 0.0
        %3428 = vmatprep.subr.mxu0 0.0
        %3429 = vmatpush2.msra.mxu0 0.0
        %3430 = vmatprep.subr.mxu0 0.0
        %3431 = vmatpush2.msra.mxu0 0.0
        %3432 = vmatprep.subr.mxu0 0.0
        %3433 = vmatpush2.msra.mxu0 0.0
        %3434 = vmatprep.subr.mxu0 0.0
        %3435 = vmatpush2.msra.mxu0 0.0
        %3436 = vmatprep.subr.mxu0 0.0
        %3437 = vmatpush2.msra.mxu0 0.0
        %3438 = vmatprep.subr.mxu0 0.0
        %3439 = vmatpush2.msra.mxu0 0.0
        %3440 = vmatprep.subr.mxu0 0.0
        %3441 = vmatpush2.msra.mxu0 0.0
        %3442 = vmatprep.mubr.f32.mxu0 0.0
        %3443 = vmatmul.mubr.f32.gmra.mxu0 %v2973
        %v3444 = vpop.f32.mrf.mxu0
        %v3445 = vadd.f32 %v844, %v3444
        %v3446 = vpop.f32.mrf.mxu0
        %3447 = vdwg.mxu0
        %v3448 = vsel %vm949, %v3445, -inf
        %3449 = vmax.xlane.f32.xlu0 %v3448
        %v3450 = vpop.xlane.xlu0 %3449
        %vm3451 = vcmp.ge.f32.partialorder %v3445, %v3450
        %v3452 = vsel %vm3451, %v832, 10.0
        %v3453 = vsel %vm949, %v3452, inf
        %3454 = vmin.xlane.f32.xlu0 %v3453
        %v3455 = vpop.xlane.xlu0 %3454
        %vm3456 = vcmask 7168
        %v3457 = vsel %vm3456, %v2719, %v3052
        %vm3458 = vcmask 15360
        %v3459 = vsel %vm3458, %v3457, %v3455
        %v3460 = vcvt.f32.s32.to.zero.pseudo %v3459
        %vm3461 = vcmask 23552
        %3462 = vst.msk [vmem:[%s815] sm:$0xff] %vm3461, %v3460
        %s3463 = sand.u32 %s572, 1
        %s3464 = scalar_lea.sflag [#allocation3], %s3463
        %s3465 = sand.u32 %s572, 1
        %s3466 = smul.addr %s3465, 8
        %s3467 = scalar_lea.vmem [#allocation2], %s3466
        %p3468 = scmp.lt.s32.totalorder %s40, 1
        %s3469 = scalar_select %p3468, %s40, 1
        %s3470 = smul.addr %s3469, 8
        %s3471 = scalar_lea.vmem %s25, %s3470
        // Predicated region
        $region117: #{forward.1} parent=115 // pred_check
          %p3472 = pneg %p582
        $region118: #{forward.1} parent=115 // pred_check_branch
          %3474 = sbr.rel (%p3472) target = $region120
        $region119: #{forward.1} parent=115 // pred_region
          %s3476 = ssub.s32 128, 128
          %3477 = vsyncadd %s3464, %s3476
          %s3478 = smul.addr %s40, 128
          %s3479 = scalar_lea.hbm %s24, %s3478
          %s3481 = sshll.u32 %s3467, 4
          %s3482 = int_to_ptr.vmem [resolvable:$true] %s3481
          %3484 = dma.vmem_to_hbm [thread:$0]  %s3482, 128, %s3479, %s3464
        $region120: #{forward.1} parent=115 // pred_fallthru
          _
        // Predicated region
        $region121: #{forward.1} parent=115 // pred_check
          %p3485 = pneg %p608
        $region122: #{forward.1} parent=115 // pred_check_branch
          %3487 = sbr.rel (%p3485) target = $region124
        $region123: #{forward.1} parent=115 // pred_region
          _
        $region124: #{forward.1} parent=115 // pred_fallthru
          _
      $region116: #{forward.1} parent=5 // pred_fallthru
        _
      %p3488 = scmp.le.s32.totalorder 2, %s35
      // Predicated region
      $region125: #{forward.1} parent=5 // pred_check
        %p3489 = pneg %p3488
      $region126: #{forward.1} parent=5 // pred_check_branch
        %3491 = sbr.rel (%p3489) target = $region128
      $region127: #{forward.1} parent=5 // pred_region
        %s3492 = ssub.s32 %s35, 2
        // Predicated region
        $region129: #{forward.1} parent=127 // pred_check
          %p3493 = pneg %p588
        $region130: #{forward.1} parent=127 // pred_check_branch
          %3495 = sbr.rel (%p3493) target = $region132
        $region131: #{forward.1} parent=127 // pred_region
          %s3496 = sand.u32 %s573, 1
          %s3497 = scalar_lea.sflag [#allocation3], %s3496
          %s3498 = sand.u32 %s573, 1
          %s3499 = smul.addr %s3498, 8
          %s3500 = scalar_lea.vmem [#allocation2], %s3499
          %3501 = dma.done %s3497, 128
        $region132: #{forward.1} parent=127 // pred_fallthru
          _
        // Predicated region
        $region133: #{forward.1} parent=127 // pred_check
          %p3502 = pneg %p614
        $region134: #{forward.1} parent=127 // pred_check_branch
          %3504 = sbr.rel (%p3502) target = $region136
        $region135: #{forward.1} parent=127 // pred_region
          %p3505 = scmp.lt.s32.totalorder %s41, 1
          %s3506 = scalar_select %p3505, %s41, 1
          %s3507 = smul.addr %s3506, 8
          %s3508 = scalar_lea.vmem %s25, %s3507
        $region136: #{forward.1} parent=127 // pred_fallthru
          _
      $region128: #{forward.1} parent=5 // pred_fallthru
        _
    $region6: #{forward.1} parent=1 // loop_footer
      %s39 = sadd.s32 1, %s35
    $region7: #{forward.1} parent=1 // loop_footer_branch
      %34 = sbr.rel target = $region3
    $region8: #{forward.1} parent=1 // loop_exit
      _
    %3509 = vsyncpa [#allocation3], 1
    %s3510 = scalar_lea.sflag [#allocation3], 1
    %3511 = vsyncpa %s3510, 1

</llo_original>
